<compile_context>
chip_gen: v6e
topology: v6e:2x2x1
jax: 0.10.0
libtpu: 0.0.40
codegen_flags: <defaults>
</compile_context>

<pallas_src>
import numpy as np

import jax
import jax.numpy as jnp
from jax import lax
from jax.experimental import pallas as pl
from jax.experimental.pallas import tpu as pltpu


# ---------------------------------------------------------------------------
# In-kernel helpers
# ---------------------------------------------------------------------------
def _sel_matrix(rows, cols, parity):
    """0/1 matrix S with S[p, 2p+parity] = 1 (row-pair selection for max-pool)."""
    r = lax.broadcasted_iota(jnp.int32, (rows, cols), 0)
    c = lax.broadcasted_iota(jnp.int32, (rows, cols), 1)
    return (c == 2 * r + parity).astype(jnp.float32)


# ---------------------------------------------------------------------------
# The fused LeNet kernel (one image per grid step)
# ---------------------------------------------------------------------------
def _lenet_kernel(x_ref, w1e_ref, w1o_ref, b1_ref, w2e_ref, w2o_ref, b2_ref,
                  fc1w_ref, fc1b_ref, fc2w_ref, fc2b_ref, fc3w_ref, fc3b_ref,
                  out_ref):
    f32 = jnp.float32
    x = x_ref[...]                                            # (28, 28)

    # ---- conv1 (5x5, 1->6) + bias + relu + 2x2 max-pool --------------------
    # e1/o1: (24, 72), columns = [q*6 + oc] for even / odd output width 2q(+1)
    e1 = jnp.zeros((24, 72), f32)
    o1 = jnp.zeros((24, 72), f32)
    for ki in range(5):
        rows = x[ki:ki + 24, :]                               # (24, 28)
        e1 = e1 + jnp.dot(rows, w1e_ref[ki], preferred_element_type=f32)
        o1 = o1 + jnp.dot(rows, w1o_ref[ki], preferred_element_type=f32)
    zw = jnp.maximum(e1, o1)                                  # pool along W
    se, so = _sel_matrix(12, 24, 0), _sel_matrix(12, 24, 1)
    zh = jnp.maximum(jnp.dot(se, zw, preferred_element_type=f32),
                     jnp.dot(so, zw, preferred_element_type=f32))  # pool along H
    p1 = jnp.maximum(zh + b1_ref[...], 0.0)                   # (12, 72) [h, w*6+ic]

    # ---- conv2 (5x5, 6->16) + bias + relu + 2x2 max-pool -------------------
    e2 = jnp.zeros((8, 64), f32)
    o2 = jnp.zeros((8, 64), f32)
    for ki in range(5):
        rows = p1[ki:ki + 8, :]                               # (8, 72)
        e2 = e2 + jnp.dot(rows, w2e_ref[ki], preferred_element_type=f32)
        o2 = o2 + jnp.dot(rows, w2o_ref[ki], preferred_element_type=f32)
    zw2 = jnp.maximum(e2, o2)                                 # (8, 64)
    se2, so2 = _sel_matrix(4, 8, 0), _sel_matrix(4, 8, 1)
    zh2 = jnp.maximum(jnp.dot(se2, zw2, preferred_element_type=f32),
                      jnp.dot(so2, zw2, preferred_element_type=f32))  # (4, 64)
    p2 = jnp.maximum(zh2 + b2_ref[...], 0.0)                  # (4, 64) [p, q*16+oc]

    # ---- FC head (fc1 as sum of 4 row matmuls; weights pre-permuted) -------
    h1 = fc1b_ref[...]                                        # (1, 120)
    for p in range(4):
        h1 = h1 + jnp.dot(p2[p:p + 1, :], fc1w_ref[p], preferred_element_type=f32)
    h1 = jnp.maximum(h1, 0.0)
    h2 = jnp.maximum(
        jnp.dot(h1, fc2w_ref[...], preferred_element_type=f32) + fc2b_ref[...],
        0.0)                                                  # (1, 84)
    out = jnp.dot(h2, fc3w_ref[...], preferred_element_type=f32) + fc3b_ref[...]
    out_ref[...] = out                                        # (1, 128) lane-dense


# ---------------------------------------------------------------------------
# Weight repacking (host/XLA side, once per call -- tiny)
# ---------------------------------------------------------------------------
def _toeplitz(wconv, iw, parity):
    """Toeplitz conv weights.

    Returns W of shape (KH, IW*IC, Q*OC) such that, for input rows laid out as
    [w*IC + ic], the matmul  sum_ki  input[oh+ki, :] @ W[ki]  equals the valid
    cross-correlation evaluated at output columns ow = parity, parity+2, ...
    (output column layout [q*OC + oc]).
    """
    wconv = jnp.asarray(wconv, jnp.float32)
    oc, ic, kh, kw = wconv.shape
    ow = iw - kw + 1
    ows = np.arange(parity, ow, 2)
    t = np.zeros((kw, iw, ows.size), np.float32)
    for j in range(kw):
        t[j, ows + j, np.arange(ows.size)] = 1.0
    # m[ki, w, ic, q, oc] = wconv[oc, ic, ki, w - ows[q]]  (0 outside the band)
    m = jnp.einsum("jwq,oikj->kwiqo", jnp.asarray(t), wconv)
    return m.reshape(kh, iw * ic, ows.size * oc)


def _prepare(params):
    # conv1: input width 28, 1 channel -> (5, 28, 12*6)
    w1e = _toeplitz(params["conv1_w"], 28, 0)
    w1o = _toeplitz(params["conv1_w"], 28, 1)
    b1t = jnp.tile(params["conv1_b"].astype(jnp.float32), 12).reshape(1, 72)
    # conv2: input width 12, 6 channels -> (5, 72, 4*16)
    w2e = _toeplitz(params["conv2_w"], 12, 0)
    w2o = _toeplitz(params["conv2_w"], 12, 1)
    b2t = jnp.tile(params["conv2_b"].astype(jnp.float32), 4).reshape(1, 64)
    # fc1: kernel feature order is f_k = p*64 + q*16 + oc,
    #      PyTorch view(-1, 256) order is f_pt = oc*16 + p*4 + q.
    perm = np.array([oc * 16 + p * 4 + q
                     for p in range(4) for q in range(4) for oc in range(16)],
                    np.int32)
    fc1w = params["fc1_w"].astype(jnp.float32).T[perm].reshape(4, 64, 120)
    fc1b = params["fc1_b"].astype(jnp.float32).reshape(1, 120)
    fc2w = params["fc2_w"].astype(jnp.float32).T                      # (120, 84)
    fc2b = params["fc2_b"].astype(jnp.float32).reshape(1, 84)
    # fc3 padded to 128 output lanes for an unmasked, lane-dense store.
    fc3w = jnp.zeros((84, 128), jnp.float32).at[:, :10].set(
        params["fc3_w"].astype(jnp.float32).T)
    fc3b = jnp.zeros((1, 128), jnp.float32).at[0, :10].set(
        params["fc3_b"].astype(jnp.float32))
    return w1e, w1o, b1t, w2e, w2o, b2t, fc1w, fc1b, fc2w, fc2b, fc3w, fc3b


# ---------------------------------------------------------------------------
# Forward pass wrapper
# ---------------------------------------------------------------------------
def lenet_forward(x, params):
    """x: (B, 1, 28, 28) float32 (PyTorch NCHW). Returns (B, 10) logits."""
    B = x.shape[0]
    x2 = x.astype(jnp.float32).reshape(B, 28, 28)
    (w1e, w1o, b1t, w2e, w2o, b2t,
     fc1w, fc1b, fc2w, fc2b, fc3w, fc3b) = _prepare(params)

    const3 = lambda b: (0, 0, 0)
    const2 = lambda b: (0, 0)
    out = pl.pallas_call(
        _lenet_kernel,
        out_shape=jax.ShapeDtypeStruct((B, 1, 128), jnp.float32),
        grid=(B,),
        in_specs=[
            pl.BlockSpec((None, 28, 28), lambda b: (b, 0, 0)),   # x (one image)
            pl.BlockSpec((5, 28, 72), const3),                   # w1e
            pl.BlockSpec((5, 28, 72), const3),                   # w1o
            pl.BlockSpec((1, 72), const2),                       # b1
            pl.BlockSpec((5, 72, 64), const3),                   # w2e
            pl.BlockSpec((5, 72, 64), const3),                   # w2o
            pl.BlockSpec((1, 64), const2),                       # b2
            pl.BlockSpec((4, 64, 120), const3),                  # fc1 w
            pl.BlockSpec((1, 120), const2),                      # fc1 b
            pl.BlockSpec((120, 84), const2),                     # fc2 w
            pl.BlockSpec((1, 84), const2),                       # fc2 b
            pl.BlockSpec((84, 128), const2),                     # fc3 w (padded)
            pl.BlockSpec((1, 128), const2),                      # fc3 b (padded)
        ],
        out_specs=pl.BlockSpec((None, 1, 128), lambda b: (b, 0, 0)),
        compiler_params=pltpu.CompilerParams(
            dimension_semantics=("parallel",)),
    )(x2, w1e, w1o, b1t, w2e, w2o, b2t, fc1w, fc1b, fc2w, fc2b, fc3w, fc3b)
    return out.reshape(B, 128)[:, :10]


# ---------------------------------------------------------------------------
# Pure-JAX reference (for correctness check)
# ---------------------------------------------------------------------------
def lenet_reference(x, params):
    def conv(xx, w, b):
        y = lax.conv_general_dilated(
            xx, w, (1, 1), "VALID",
            dimension_numbers=("NCHW", "OIHW", "NCHW"))
        return jax.nn.relu(y + b[None, :, None, None])

    def pool(xx):
        return lax.reduce_window(xx, -jnp.inf, lax.max,
                                 (1, 1, 2, 2), (1, 1, 2, 2), "VALID")

    y = pool(conv(x, params["conv1_w"], params["conv1_b"]))
    y = pool(conv(y, params["conv2_w"], params["conv2_b"]))
    y = y.reshape(y.shape[0], -1)
    y = jax.nn.relu(y @ params["fc1_w"].T + params["fc1_b"])
    y = jax.nn.relu(y @ params["fc2_w"].T + params["fc2_b"])
    return y @ params["fc3_w"].T + params["fc3_b"]


# ---------------------------------------------------------------------------
# Deterministic parameter init (PyTorch-style shapes)
# ---------------------------------------------------------------------------
def init_params(key):
    keys = jax.random.split(key, 10)

    def u(k, shape, fan_in):
        bound = 1.0 / jnp.sqrt(float(fan_in))
        return jax.random.uniform(k, shape, jnp.float32, -bound, bound)

    return {
        "conv1_w": u(keys[0], (6, 1, 5, 5), 1 * 5 * 5),
        "conv1_b": u(keys[1], (6,), 1 * 5 * 5),
        "conv2_w": u(keys[2], (16, 6, 5, 5), 6 * 5 * 5),
        "conv2_b": u(keys[3], (16,), 6 * 5 * 5),
        "fc1_w":   u(keys[4], (120, 16 * 4 * 4), 16 * 4 * 4),
        "fc1_b":   u(keys[5], (120,), 16 * 4 * 4),
        "fc2_w":   u(keys[6], (84, 120), 120),
        "fc2_b":   u(keys[7], (84,), 120),
        "fc3_w":   u(keys[8], (10, 84), 84),
        "fc3_b":   u(keys[9], (10,), 84),
    }


if __name__ == "__main__":
    key = jax.random.PRNGKey(0)
    pkey, xkey = jax.random.split(key)
    params = init_params(pkey)

    # LeNet's fc1 (16*4*4) implies 28x28 single-channel inputs; batch=2.
    x = jax.random.normal(xkey, (2, 1, 28, 28), jnp.float32)

    fwd = jax.jit(lenet_forward)
    out = jax.block_until_ready(fwd(x, params))
    assert out.shape == (2, 10), out.shape

    ref = lenet_reference(x, params)
    assert jnp.allclose(out, ref, atol=1e-2, rtol=1e-2), (
        f"max abs diff = {jnp.max(jnp.abs(out - ref))}")

    print("KERNEL_OK")
</pallas_src>

<mosaic_0001>
module attributes {stable_mosaic.version = 11 : i64} {
  func.func @_lenet_kernel(%arg0: i32, %arg1: memref<1x28x28xf32, #tpu.memory_space<vmem>>, %arg2: memref<5x28x72xf32, #tpu.memory_space<vmem>>, %arg3: memref<5x28x72xf32, #tpu.memory_space<vmem>>, %arg4: memref<1x72xf32, #tpu.memory_space<vmem>>, %arg5: memref<5x72x64xf32, #tpu.memory_space<vmem>>, %arg6: memref<5x72x64xf32, #tpu.memory_space<vmem>>, %arg7: memref<1x64xf32, #tpu.memory_space<vmem>>, %arg8: memref<4x64x120xf32, #tpu.memory_space<vmem>>, %arg9: memref<1x120xf32, #tpu.memory_space<vmem>>, %arg10: memref<120x84xf32, #tpu.memory_space<vmem>>, %arg11: memref<1x84xf32, #tpu.memory_space<vmem>>, %arg12: memref<84x128xf32, #tpu.memory_space<vmem>>, %arg13: memref<1x128xf32, #tpu.memory_space<vmem>>, %arg14: memref<1x1x128xf32, #tpu.memory_space<vmem>>) attributes {dimension_semantics = [#tpu.dimension_semantics<parallel>], iteration_bounds = array<i64: 2>, scalar_prefetch = 0 : i64, scratch_operands = 0 : i64, tpu.core_type = #tpu.core_type<tc>, window_params = [{transform_indices = @transform_0, window_bounds = array<i64: 1, 28, 28>}, {pipeline_mode = #tpu.pipeline_mode<synchronous>, transform_indices = @transform_1, window_bounds = array<i64: 5, 28, 72>}, {pipeline_mode = #tpu.pipeline_mode<synchronous>, transform_indices = @transform_2, window_bounds = array<i64: 5, 28, 72>}, {pipeline_mode = #tpu.pipeline_mode<synchronous>, transform_indices = @transform_3, window_bounds = array<i64: 1, 72>}, {pipeline_mode = #tpu.pipeline_mode<synchronous>, transform_indices = @transform_4, window_bounds = array<i64: 5, 72, 64>}, {pipeline_mode = #tpu.pipeline_mode<synchronous>, transform_indices = @transform_5, window_bounds = array<i64: 5, 72, 64>}, {pipeline_mode = #tpu.pipeline_mode<synchronous>, transform_indices = @transform_6, window_bounds = array<i64: 1, 64>}, {pipeline_mode = #tpu.pipeline_mode<synchronous>, transform_indices = @transform_7, window_bounds = array<i64: 4, 64, 120>}, {pipeline_mode = #tpu.pipeline_mode<synchronous>, transform_indices = @transform_8, window_bounds = array<i64: 1, 120>}, {pipeline_mode = #tpu.pipeline_mode<synchronous>, transform_indices = @transform_9, window_bounds = array<i64: 120, 84>}, {pipeline_mode = #tpu.pipeline_mode<synchronous>, transform_indices = @transform_10, window_bounds = array<i64: 1, 84>}, {pipeline_mode = #tpu.pipeline_mode<synchronous>, transform_indices = @transform_11, window_bounds = array<i64: 84, 128>}, {pipeline_mode = #tpu.pipeline_mode<synchronous>, transform_indices = @transform_12, window_bounds = array<i64: 1, 128>}, {transform_indices = @transform_13, window_bounds = array<i64: 1, 1, 128>}]} {
    %c0 = arith.constant 0 : index
    %c0_0 = arith.constant 0 : index
    %c0_1 = arith.constant 0 : index
    %0 = vector.load %arg1[%c0, %c0_0, %c0_1] : memref<1x28x28xf32, #tpu.memory_space<vmem>>, vector<1x28x28xf32>
    %1 = vector.shape_cast %0 : vector<1x28x28xf32> to vector<28x28xf32>
    %cst = arith.constant 0.000000e+00 : f32
    %2 = vector.broadcast %cst : f32 to vector<24x72xf32>
    %cst_2 = arith.constant 0.000000e+00 : f32
    %3 = vector.broadcast %cst_2 : f32 to vector<24x72xf32>
    %4 = vector.extract_strided_slice %1 {offsets = [0, 0], sizes = [24, 28], strides = [1, 1]} : vector<28x28xf32> to vector<24x28xf32>
    %c0_3 = arith.constant 0 : index
    %c0_4 = arith.constant 0 : index
    %c0_5 = arith.constant 0 : index
    %5 = vector.load %arg2[%c0_3, %c0_4, %c0_5] : memref<5x28x72xf32, #tpu.memory_space<vmem>>, vector<1x28x72xf32>
    %6 = vector.shape_cast %5 : vector<1x28x72xf32> to vector<28x72xf32>
    %cst_6 = arith.constant dense<0.000000e+00> : vector<24x72xf32>
    %7 = tpu.matmul %4, %6, %cst_6 {dimension_numbers = #tpu.dot_dimension_numbers<[1], [0], [0], [1], [0, 0, 1, 1], [], []>} : vector<24x28xf32>, vector<28x72xf32>, vector<24x72xf32> -> vector<24x72xf32>
    %8 = arith.addf %2, %7 : vector<24x72xf32>
    %c0_7 = arith.constant 0 : index
    %c0_8 = arith.constant 0 : index
    %c0_9 = arith.constant 0 : index
    %9 = vector.load %arg3[%c0_7, %c0_8, %c0_9] : memref<5x28x72xf32, #tpu.memory_space<vmem>>, vector<1x28x72xf32>
    %10 = vector.shape_cast %9 : vector<1x28x72xf32> to vector<28x72xf32>
    %cst_10 = arith.constant dense<0.000000e+00> : vector<24x72xf32>
    %11 = tpu.matmul %4, %10, %cst_10 {dimension_numbers = #tpu.dot_dimension_numbers<[1], [0], [0], [1], [0, 0, 1, 1], [], []>} : vector<24x28xf32>, vector<28x72xf32>, vector<24x72xf32> -> vector<24x72xf32>
    %12 = arith.addf %3, %11 : vector<24x72xf32>
    %13 = vector.extract_strided_slice %1 {offsets = [1, 0], sizes = [24, 28], strides = [1, 1]} : vector<28x28xf32> to vector<24x28xf32>
    %c1 = arith.constant 1 : index
    %c0_11 = arith.constant 0 : index
    %c0_12 = arith.constant 0 : index
    %14 = vector.load %arg2[%c1, %c0_11, %c0_12] : memref<5x28x72xf32, #tpu.memory_space<vmem>>, vector<1x28x72xf32>
    %15 = vector.shape_cast %14 : vector<1x28x72xf32> to vector<28x72xf32>
    %cst_13 = arith.constant dense<0.000000e+00> : vector<24x72xf32>
    %16 = tpu.matmul %13, %15, %cst_13 {dimension_numbers = #tpu.dot_dimension_numbers<[1], [0], [0], [1], [0, 0, 1, 1], [], []>} : vector<24x28xf32>, vector<28x72xf32>, vector<24x72xf32> -> vector<24x72xf32>
    %17 = arith.addf %8, %16 : vector<24x72xf32>
    %c1_14 = arith.constant 1 : index
    %c0_15 = arith.constant 0 : index
    %c0_16 = arith.constant 0 : index
    %18 = vector.load %arg3[%c1_14, %c0_15, %c0_16] : memref<5x28x72xf32, #tpu.memory_space<vmem>>, vector<1x28x72xf32>
    %19 = vector.shape_cast %18 : vector<1x28x72xf32> to vector<28x72xf32>
    %cst_17 = arith.constant dense<0.000000e+00> : vector<24x72xf32>
    %20 = tpu.matmul %13, %19, %cst_17 {dimension_numbers = #tpu.dot_dimension_numbers<[1], [0], [0], [1], [0, 0, 1, 1], [], []>} : vector<24x28xf32>, vector<28x72xf32>, vector<24x72xf32> -> vector<24x72xf32>
    %21 = arith.addf %12, %20 : vector<24x72xf32>
    %22 = vector.extract_strided_slice %1 {offsets = [2, 0], sizes = [24, 28], strides = [1, 1]} : vector<28x28xf32> to vector<24x28xf32>
    %c2 = arith.constant 2 : index
    %c0_18 = arith.constant 0 : index
    %c0_19 = arith.constant 0 : index
    %23 = vector.load %arg2[%c2, %c0_18, %c0_19] : memref<5x28x72xf32, #tpu.memory_space<vmem>>, vector<1x28x72xf32>
    %24 = vector.shape_cast %23 : vector<1x28x72xf32> to vector<28x72xf32>
    %cst_20 = arith.constant dense<0.000000e+00> : vector<24x72xf32>
    %25 = tpu.matmul %22, %24, %cst_20 {dimension_numbers = #tpu.dot_dimension_numbers<[1], [0], [0], [1], [0, 0, 1, 1], [], []>} : vector<24x28xf32>, vector<28x72xf32>, vector<24x72xf32> -> vector<24x72xf32>
    %26 = arith.addf %17, %25 : vector<24x72xf32>
    %c2_21 = arith.constant 2 : index
    %c0_22 = arith.constant 0 : index
    %c0_23 = arith.constant 0 : index
    %27 = vector.load %arg3[%c2_21, %c0_22, %c0_23] : memref<5x28x72xf32, #tpu.memory_space<vmem>>, vector<1x28x72xf32>
    %28 = vector.shape_cast %27 : vector<1x28x72xf32> to vector<28x72xf32>
    %cst_24 = arith.constant dense<0.000000e+00> : vector<24x72xf32>
    %29 = tpu.matmul %22, %28, %cst_24 {dimension_numbers = #tpu.dot_dimension_numbers<[1], [0], [0], [1], [0, 0, 1, 1], [], []>} : vector<24x28xf32>, vector<28x72xf32>, vector<24x72xf32> -> vector<24x72xf32>
    %30 = arith.addf %21, %29 : vector<24x72xf32>
    %31 = vector.extract_strided_slice %1 {offsets = [3, 0], sizes = [24, 28], strides = [1, 1]} : vector<28x28xf32> to vector<24x28xf32>
    %c3 = arith.constant 3 : index
    %c0_25 = arith.constant 0 : index
    %c0_26 = arith.constant 0 : index
    %32 = vector.load %arg2[%c3, %c0_25, %c0_26] : memref<5x28x72xf32, #tpu.memory_space<vmem>>, vector<1x28x72xf32>
    %33 = vector.shape_cast %32 : vector<1x28x72xf32> to vector<28x72xf32>
    %cst_27 = arith.constant dense<0.000000e+00> : vector<24x72xf32>
    %34 = tpu.matmul %31, %33, %cst_27 {dimension_numbers = #tpu.dot_dimension_numbers<[1], [0], [0], [1], [0, 0, 1, 1], [], []>} : vector<24x28xf32>, vector<28x72xf32>, vector<24x72xf32> -> vector<24x72xf32>
    %35 = arith.addf %26, %34 : vector<24x72xf32>
    %c3_28 = arith.constant 3 : index
    %c0_29 = arith.constant 0 : index
    %c0_30 = arith.constant 0 : index
    %36 = vector.load %arg3[%c3_28, %c0_29, %c0_30] : memref<5x28x72xf32, #tpu.memory_space<vmem>>, vector<1x28x72xf32>
    %37 = vector.shape_cast %36 : vector<1x28x72xf32> to vector<28x72xf32>
    %cst_31 = arith.constant dense<0.000000e+00> : vector<24x72xf32>
    %38 = tpu.matmul %31, %37, %cst_31 {dimension_numbers = #tpu.dot_dimension_numbers<[1], [0], [0], [1], [0, 0, 1, 1], [], []>} : vector<24x28xf32>, vector<28x72xf32>, vector<24x72xf32> -> vector<24x72xf32>
    %39 = arith.addf %30, %38 : vector<24x72xf32>
    %40 = vector.extract_strided_slice %1 {offsets = [4, 0], sizes = [24, 28], strides = [1, 1]} : vector<28x28xf32> to vector<24x28xf32>
    %c4 = arith.constant 4 : index
    %c0_32 = arith.constant 0 : index
    %c0_33 = arith.constant 0 : index
    %41 = vector.load %arg2[%c4, %c0_32, %c0_33] : memref<5x28x72xf32, #tpu.memory_space<vmem>>, vector<1x28x72xf32>
    %42 = vector.shape_cast %41 : vector<1x28x72xf32> to vector<28x72xf32>
    %cst_34 = arith.constant dense<0.000000e+00> : vector<24x72xf32>
    %43 = tpu.matmul %40, %42, %cst_34 {dimension_numbers = #tpu.dot_dimension_numbers<[1], [0], [0], [1], [0, 0, 1, 1], [], []>} : vector<24x28xf32>, vector<28x72xf32>, vector<24x72xf32> -> vector<24x72xf32>
    %44 = arith.addf %35, %43 : vector<24x72xf32>
    %c4_35 = arith.constant 4 : index
    %c0_36 = arith.constant 0 : index
    %c0_37 = arith.constant 0 : index
    %45 = vector.load %arg3[%c4_35, %c0_36, %c0_37] : memref<5x28x72xf32, #tpu.memory_space<vmem>>, vector<1x28x72xf32>
    %46 = vector.shape_cast %45 : vector<1x28x72xf32> to vector<28x72xf32>
    %cst_38 = arith.constant dense<0.000000e+00> : vector<24x72xf32>
    %47 = tpu.matmul %40, %46, %cst_38 {dimension_numbers = #tpu.dot_dimension_numbers<[1], [0], [0], [1], [0, 0, 1, 1], [], []>} : vector<24x28xf32>, vector<28x72xf32>, vector<24x72xf32> -> vector<24x72xf32>
    %48 = arith.addf %39, %47 : vector<24x72xf32>
    %49 = arith.maximumf %44, %48 : vector<24x72xf32>
    %50 = tpu.iota {dimensions = array<i32: 0>} : vector<12x24xi32>
    %51 = tpu.iota {dimensions = array<i32: 1>} : vector<12x24xi32>
    %c2_i32 = arith.constant 2 : i32
    %52 = vector.broadcast %c2_i32 : i32 to vector<12x24xi32>
    %53 = arith.muli %52, %50 : vector<12x24xi32>
    %c0_i32 = arith.constant 0 : i32
    %54 = vector.broadcast %c0_i32 : i32 to vector<12x24xi32>
    %55 = arith.addi %53, %54 : vector<12x24xi32>
    %56 = arith.cmpi eq, %51, %55 : vector<12x24xi32>
    %57 = arith.extui %56 : vector<12x24xi1> to vector<12x24xi32>
    %58 = arith.sitofp %57 : vector<12x24xi32> to vector<12x24xf32>
    %59 = tpu.iota {dimensions = array<i32: 0>} : vector<12x24xi32>
    %60 = tpu.iota {dimensions = array<i32: 1>} : vector<12x24xi32>
    %c2_i32_39 = arith.constant 2 : i32
    %61 = vector.broadcast %c2_i32_39 : i32 to vector<12x24xi32>
    %62 = arith.muli %61, %59 : vector<12x24xi32>
    %c1_i32 = arith.constant 1 : i32
    %63 = vector.broadcast %c1_i32 : i32 to vector<12x24xi32>
    %64 = arith.addi %62, %63 : vector<12x24xi32>
    %65 = arith.cmpi eq, %60, %64 : vector<12x24xi32>
    %66 = arith.extui %65 : vector<12x24xi1> to vector<12x24xi32>
    %67 = arith.sitofp %66 : vector<12x24xi32> to vector<12x24xf32>
    %cst_40 = arith.constant dense<0.000000e+00> : vector<12x72xf32>
    %68 = tpu.matmul %58, %49, %cst_40 {dimension_numbers = #tpu.dot_dimension_numbers<[1], [0], [0], [1], [0, 0, 1, 1], [], []>} : vector<12x24xf32>, vector<24x72xf32>, vector<12x72xf32> -> vector<12x72xf32>
    %cst_41 = arith.constant dense<0.000000e+00> : vector<12x72xf32>
    %69 = tpu.matmul %67, %49, %cst_41 {dimension_numbers = #tpu.dot_dimension_numbers<[1], [0], [0], [1], [0, 0, 1, 1], [], []>} : vector<12x24xf32>, vector<24x72xf32>, vector<12x72xf32> -> vector<12x72xf32>
    %70 = arith.maximumf %68, %69 : vector<12x72xf32>
    %c0_42 = arith.constant 0 : index
    %c0_43 = arith.constant 0 : index
    %71 = vector.load %arg4[%c0_42, %c0_43] : memref<1x72xf32, #tpu.memory_space<vmem>>, vector<1x72xf32>
    %72 = vector.broadcast %71 : vector<1x72xf32> to vector<12x72xf32>
    %73 = arith.addf %70, %72 : vector<12x72xf32>
    %cst_44 = arith.constant 0.000000e+00 : f32
    %74 = vector.broadcast %cst_44 : f32 to vector<12x72xf32>
    %75 = arith.maximumf %73, %74 : vector<12x72xf32>
    %cst_45 = arith.constant 0.000000e+00 : f32
    %76 = vector.broadcast %cst_45 : f32 to vector<8x64xf32>
    %cst_46 = arith.constant 0.000000e+00 : f32
    %77 = vector.broadcast %cst_46 : f32 to vector<8x64xf32>
    %78 = vector.extract_strided_slice %75 {offsets = [0, 0], sizes = [8, 72], strides = [1, 1]} : vector<12x72xf32> to vector<8x72xf32>
    %c0_47 = arith.constant 0 : index
    %c0_48 = arith.constant 0 : index
    %c0_49 = arith.constant 0 : index
    %79 = vector.load %arg5[%c0_47, %c0_48, %c0_49] : memref<5x72x64xf32, #tpu.memory_space<vmem>>, vector<1x72x64xf32>
    %80 = vector.shape_cast %79 : vector<1x72x64xf32> to vector<72x64xf32>
    %cst_50 = arith.constant dense<0.000000e+00> : vector<8x64xf32>
    %81 = tpu.matmul %78, %80, %cst_50 {dimension_numbers = #tpu.dot_dimension_numbers<[1], [0], [0], [1], [0, 0, 1, 1], [], []>} : vector<8x72xf32>, vector<72x64xf32>, vector<8x64xf32> -> vector<8x64xf32>
    %82 = arith.addf %76, %81 : vector<8x64xf32>
    %c0_51 = arith.constant 0 : index
    %c0_52 = arith.constant 0 : index
    %c0_53 = arith.constant 0 : index
    %83 = vector.load %arg6[%c0_51, %c0_52, %c0_53] : memref<5x72x64xf32, #tpu.memory_space<vmem>>, vector<1x72x64xf32>
    %84 = vector.shape_cast %83 : vector<1x72x64xf32> to vector<72x64xf32>
    %cst_54 = arith.constant dense<0.000000e+00> : vector<8x64xf32>
    %85 = tpu.matmul %78, %84, %cst_54 {dimension_numbers = #tpu.dot_dimension_numbers<[1], [0], [0], [1], [0, 0, 1, 1], [], []>} : vector<8x72xf32>, vector<72x64xf32>, vector<8x64xf32> -> vector<8x64xf32>
    %86 = arith.addf %77, %85 : vector<8x64xf32>
    %87 = vector.extract_strided_slice %75 {offsets = [1, 0], sizes = [8, 72], strides = [1, 1]} : vector<12x72xf32> to vector<8x72xf32>
    %c1_55 = arith.constant 1 : index
    %c0_56 = arith.constant 0 : index
    %c0_57 = arith.constant 0 : index
    %88 = vector.load %arg5[%c1_55, %c0_56, %c0_57] : memref<5x72x64xf32, #tpu.memory_space<vmem>>, vector<1x72x64xf32>
    %89 = vector.shape_cast %88 : vector<1x72x64xf32> to vector<72x64xf32>
    %cst_58 = arith.constant dense<0.000000e+00> : vector<8x64xf32>
    %90 = tpu.matmul %87, %89, %cst_58 {dimension_numbers = #tpu.dot_dimension_numbers<[1], [0], [0], [1], [0, 0, 1, 1], [], []>} : vector<8x72xf32>, vector<72x64xf32>, vector<8x64xf32> -> vector<8x64xf32>
    %91 = arith.addf %82, %90 : vector<8x64xf32>
    %c1_59 = arith.constant 1 : index
    %c0_60 = arith.constant 0 : index
    %c0_61 = arith.constant 0 : index
    %92 = vector.load %arg6[%c1_59, %c0_60, %c0_61] : memref<5x72x64xf32, #tpu.memory_space<vmem>>, vector<1x72x64xf32>
    %93 = vector.shape_cast %92 : vector<1x72x64xf32> to vector<72x64xf32>
    %cst_62 = arith.constant dense<0.000000e+00> : vector<8x64xf32>
    %94 = tpu.matmul %87, %93, %cst_62 {dimension_numbers = #tpu.dot_dimension_numbers<[1], [0], [0], [1], [0, 0, 1, 1], [], []>} : vector<8x72xf32>, vector<72x64xf32>, vector<8x64xf32> -> vector<8x64xf32>
    %95 = arith.addf %86, %94 : vector<8x64xf32>
    %96 = vector.extract_strided_slice %75 {offsets = [2, 0], sizes = [8, 72], strides = [1, 1]} : vector<12x72xf32> to vector<8x72xf32>
    %c2_63 = arith.constant 2 : index
    %c0_64 = arith.constant 0 : index
    %c0_65 = arith.constant 0 : index
    %97 = vector.load %arg5[%c2_63, %c0_64, %c0_65] : memref<5x72x64xf32, #tpu.memory_space<vmem>>, vector<1x72x64xf32>
    %98 = vector.shape_cast %97 : vector<1x72x64xf32> to vector<72x64xf32>
    %cst_66 = arith.constant dense<0.000000e+00> : vector<8x64xf32>
    %99 = tpu.matmul %96, %98, %cst_66 {dimension_numbers = #tpu.dot_dimension_numbers<[1], [0], [0], [1], [0, 0, 1, 1], [], []>} : vector<8x72xf32>, vector<72x64xf32>, vector<8x64xf32> -> vector<8x64xf32>
    %100 = arith.addf %91, %99 : vector<8x64xf32>
    %c2_67 = arith.constant 2 : index
    %c0_68 = arith.constant 0 : index
    %c0_69 = arith.constant 0 : index
    %101 = vector.load %arg6[%c2_67, %c0_68, %c0_69] : memref<5x72x64xf32, #tpu.memory_space<vmem>>, vector<1x72x64xf32>
    %102 = vector.shape_cast %101 : vector<1x72x64xf32> to vector<72x64xf32>
    %cst_70 = arith.constant dense<0.000000e+00> : vector<8x64xf32>
    %103 = tpu.matmul %96, %102, %cst_70 {dimension_numbers = #tpu.dot_dimension_numbers<[1], [0], [0], [1], [0, 0, 1, 1], [], []>} : vector<8x72xf32>, vector<72x64xf32>, vector<8x64xf32> -> vector<8x64xf32>
    %104 = arith.addf %95, %103 : vector<8x64xf32>
    %105 = vector.extract_strided_slice %75 {offsets = [3, 0], sizes = [8, 72], strides = [1, 1]} : vector<12x72xf32> to vector<8x72xf32>
    %c3_71 = arith.constant 3 : index
    %c0_72 = arith.constant 0 : index
    %c0_73 = arith.constant 0 : index
    %106 = vector.load %arg5[%c3_71, %c0_72, %c0_73] : memref<5x72x64xf32, #tpu.memory_space<vmem>>, vector<1x72x64xf32>
    %107 = vector.shape_cast %106 : vector<1x72x64xf32> to vector<72x64xf32>
    %cst_74 = arith.constant dense<0.000000e+00> : vector<8x64xf32>
    %108 = tpu.matmul %105, %107, %cst_74 {dimension_numbers = #tpu.dot_dimension_numbers<[1], [0], [0], [1], [0, 0, 1, 1], [], []>} : vector<8x72xf32>, vector<72x64xf32>, vector<8x64xf32> -> vector<8x64xf32>
    %109 = arith.addf %100, %108 : vector<8x64xf32>
    %c3_75 = arith.constant 3 : index
    %c0_76 = arith.constant 0 : index
    %c0_77 = arith.constant 0 : index
    %110 = vector.load %arg6[%c3_75, %c0_76, %c0_77] : memref<5x72x64xf32, #tpu.memory_space<vmem>>, vector<1x72x64xf32>
    %111 = vector.shape_cast %110 : vector<1x72x64xf32> to vector<72x64xf32>
    %cst_78 = arith.constant dense<0.000000e+00> : vector<8x64xf32>
    %112 = tpu.matmul %105, %111, %cst_78 {dimension_numbers = #tpu.dot_dimension_numbers<[1], [0], [0], [1], [0, 0, 1, 1], [], []>} : vector<8x72xf32>, vector<72x64xf32>, vector<8x64xf32> -> vector<8x64xf32>
    %113 = arith.addf %104, %112 : vector<8x64xf32>
    %114 = vector.extract_strided_slice %75 {offsets = [4, 0], sizes = [8, 72], strides = [1, 1]} : vector<12x72xf32> to vector<8x72xf32>
    %c4_79 = arith.constant 4 : index
    %c0_80 = arith.constant 0 : index
    %c0_81 = arith.constant 0 : index
    %115 = vector.load %arg5[%c4_79, %c0_80, %c0_81] : memref<5x72x64xf32, #tpu.memory_space<vmem>>, vector<1x72x64xf32>
    %116 = vector.shape_cast %115 : vector<1x72x64xf32> to vector<72x64xf32>
    %cst_82 = arith.constant dense<0.000000e+00> : vector<8x64xf32>
    %117 = tpu.matmul %114, %116, %cst_82 {dimension_numbers = #tpu.dot_dimension_numbers<[1], [0], [0], [1], [0, 0, 1, 1], [], []>} : vector<8x72xf32>, vector<72x64xf32>, vector<8x64xf32> -> vector<8x64xf32>
    %118 = arith.addf %109, %117 : vector<8x64xf32>
    %c4_83 = arith.constant 4 : index
    %c0_84 = arith.constant 0 : index
    %c0_85 = arith.constant 0 : index
    %119 = vector.load %arg6[%c4_83, %c0_84, %c0_85] : memref<5x72x64xf32, #tpu.memory_space<vmem>>, vector<1x72x64xf32>
    %120 = vector.shape_cast %119 : vector<1x72x64xf32> to vector<72x64xf32>
    %cst_86 = arith.constant dense<0.000000e+00> : vector<8x64xf32>
    %121 = tpu.matmul %114, %120, %cst_86 {dimension_numbers = #tpu.dot_dimension_numbers<[1], [0], [0], [1], [0, 0, 1, 1], [], []>} : vector<8x72xf32>, vector<72x64xf32>, vector<8x64xf32> -> vector<8x64xf32>
    %122 = arith.addf %113, %121 : vector<8x64xf32>
    %123 = arith.maximumf %118, %122 : vector<8x64xf32>
    %124 = tpu.iota {dimensions = array<i32: 0>} : vector<4x8xi32>
    %125 = tpu.iota {dimensions = array<i32: 1>} : vector<4x8xi32>
    %c2_i32_87 = arith.constant 2 : i32
    %126 = vector.broadcast %c2_i32_87 : i32 to vector<4x8xi32>
    %127 = arith.muli %126, %124 : vector<4x8xi32>
    %c0_i32_88 = arith.constant 0 : i32
    %128 = vector.broadcast %c0_i32_88 : i32 to vector<4x8xi32>
    %129 = arith.addi %127, %128 : vector<4x8xi32>
    %130 = arith.cmpi eq, %125, %129 : vector<4x8xi32>
    %131 = arith.extui %130 : vector<4x8xi1> to vector<4x8xi32>
    %132 = arith.sitofp %131 : vector<4x8xi32> to vector<4x8xf32>
    %133 = tpu.iota {dimensions = array<i32: 0>} : vector<4x8xi32>
    %134 = tpu.iota {dimensions = array<i32: 1>} : vector<4x8xi32>
    %c2_i32_89 = arith.constant 2 : i32
    %135 = vector.broadcast %c2_i32_89 : i32 to vector<4x8xi32>
    %136 = arith.muli %135, %133 : vector<4x8xi32>
    %c1_i32_90 = arith.constant 1 : i32
    %137 = vector.broadcast %c1_i32_90 : i32 to vector<4x8xi32>
    %138 = arith.addi %136, %137 : vector<4x8xi32>
    %139 = arith.cmpi eq, %134, %138 : vector<4x8xi32>
    %140 = arith.extui %139 : vector<4x8xi1> to vector<4x8xi32>
    %141 = arith.sitofp %140 : vector<4x8xi32> to vector<4x8xf32>
    %cst_91 = arith.constant dense<0.000000e+00> : vector<4x64xf32>
    %142 = tpu.matmul %132, %123, %cst_91 {dimension_numbers = #tpu.dot_dimension_numbers<[1], [0], [0], [1], [0, 0, 1, 1], [], []>} : vector<4x8xf32>, vector<8x64xf32>, vector<4x64xf32> -> vector<4x64xf32>
    %cst_92 = arith.constant dense<0.000000e+00> : vector<4x64xf32>
    %143 = tpu.matmul %141, %123, %cst_92 {dimension_numbers = #tpu.dot_dimension_numbers<[1], [0], [0], [1], [0, 0, 1, 1], [], []>} : vector<4x8xf32>, vector<8x64xf32>, vector<4x64xf32> -> vector<4x64xf32>
    %144 = arith.maximumf %142, %143 : vector<4x64xf32>
    %c0_93 = arith.constant 0 : index
    %c0_94 = arith.constant 0 : index
    %145 = vector.load %arg7[%c0_93, %c0_94] : memref<1x64xf32, #tpu.memory_space<vmem>>, vector<1x64xf32>
    %146 = vector.broadcast %145 : vector<1x64xf32> to vector<4x64xf32>
    %147 = arith.addf %144, %146 : vector<4x64xf32>
    %cst_95 = arith.constant 0.000000e+00 : f32
    %148 = vector.broadcast %cst_95 : f32 to vector<4x64xf32>
    %149 = arith.maximumf %147, %148 : vector<4x64xf32>
    %c0_96 = arith.constant 0 : index
    %c0_97 = arith.constant 0 : index
    %150 = vector.load %arg9[%c0_96, %c0_97] : memref<1x120xf32, #tpu.memory_space<vmem>>, vector<1x120xf32>
    %151 = vector.extract_strided_slice %149 {offsets = [0, 0], sizes = [1, 64], strides = [1, 1]} : vector<4x64xf32> to vector<1x64xf32>
    %c0_98 = arith.constant 0 : index
    %c0_99 = arith.constant 0 : index
    %c0_100 = arith.constant 0 : index
    %152 = vector.load %arg8[%c0_98, %c0_99, %c0_100] : memref<4x64x120xf32, #tpu.memory_space<vmem>>, vector<1x64x120xf32>
    %153 = vector.shape_cast %152 : vector<1x64x120xf32> to vector<64x120xf32>
    %cst_101 = arith.constant dense<0.000000e+00> : vector<1x120xf32>
    %154 = tpu.matmul %151, %153, %cst_101 {dimension_numbers = #tpu.dot_dimension_numbers<[1], [0], [0], [1], [0, 0, 1, 1], [], []>} : vector<1x64xf32>, vector<64x120xf32>, vector<1x120xf32> -> vector<1x120xf32>
    %155 = arith.addf %150, %154 : vector<1x120xf32>
    %156 = vector.extract_strided_slice %149 {offsets = [1, 0], sizes = [1, 64], strides = [1, 1]} : vector<4x64xf32> to vector<1x64xf32>
    %c1_102 = arith.constant 1 : index
    %c0_103 = arith.constant 0 : index
    %c0_104 = arith.constant 0 : index
    %157 = vector.load %arg8[%c1_102, %c0_103, %c0_104] : memref<4x64x120xf32, #tpu.memory_space<vmem>>, vector<1x64x120xf32>
    %158 = vector.shape_cast %157 : vector<1x64x120xf32> to vector<64x120xf32>
    %cst_105 = arith.constant dense<0.000000e+00> : vector<1x120xf32>
    %159 = tpu.matmul %156, %158, %cst_105 {dimension_numbers = #tpu.dot_dimension_numbers<[1], [0], [0], [1], [0, 0, 1, 1], [], []>} : vector<1x64xf32>, vector<64x120xf32>, vector<1x120xf32> -> vector<1x120xf32>
    %160 = arith.addf %155, %159 : vector<1x120xf32>
    %161 = vector.extract_strided_slice %149 {offsets = [2, 0], sizes = [1, 64], strides = [1, 1]} : vector<4x64xf32> to vector<1x64xf32>
    %c2_106 = arith.constant 2 : index
    %c0_107 = arith.constant 0 : index
    %c0_108 = arith.constant 0 : index
    %162 = vector.load %arg8[%c2_106, %c0_107, %c0_108] : memref<4x64x120xf32, #tpu.memory_space<vmem>>, vector<1x64x120xf32>
    %163 = vector.shape_cast %162 : vector<1x64x120xf32> to vector<64x120xf32>
    %cst_109 = arith.constant dense<0.000000e+00> : vector<1x120xf32>
    %164 = tpu.matmul %161, %163, %cst_109 {dimension_numbers = #tpu.dot_dimension_numbers<[1], [0], [0], [1], [0, 0, 1, 1], [], []>} : vector<1x64xf32>, vector<64x120xf32>, vector<1x120xf32> -> vector<1x120xf32>
    %165 = arith.addf %160, %164 : vector<1x120xf32>
    %166 = vector.extract_strided_slice %149 {offsets = [3, 0], sizes = [1, 64], strides = [1, 1]} : vector<4x64xf32> to vector<1x64xf32>
    %c3_110 = arith.constant 3 : index
    %c0_111 = arith.constant 0 : index
    %c0_112 = arith.constant 0 : index
    %167 = vector.load %arg8[%c3_110, %c0_111, %c0_112] : memref<4x64x120xf32, #tpu.memory_space<vmem>>, vector<1x64x120xf32>
    %168 = vector.shape_cast %167 : vector<1x64x120xf32> to vector<64x120xf32>
    %cst_113 = arith.constant dense<0.000000e+00> : vector<1x120xf32>
    %169 = tpu.matmul %166, %168, %cst_113 {dimension_numbers = #tpu.dot_dimension_numbers<[1], [0], [0], [1], [0, 0, 1, 1], [], []>} : vector<1x64xf32>, vector<64x120xf32>, vector<1x120xf32> -> vector<1x120xf32>
    %170 = arith.addf %165, %169 : vector<1x120xf32>
    %cst_114 = arith.constant 0.000000e+00 : f32
    %171 = vector.broadcast %cst_114 : f32 to vector<1x120xf32>
    %172 = arith.maximumf %170, %171 : vector<1x120xf32>
    %c0_115 = arith.constant 0 : index
    %c0_116 = arith.constant 0 : index
    %173 = vector.load %arg10[%c0_115, %c0_116] : memref<120x84xf32, #tpu.memory_space<vmem>>, vector<120x84xf32>
    %cst_117 = arith.constant dense<0.000000e+00> : vector<1x84xf32>
    %174 = tpu.matmul %172, %173, %cst_117 {dimension_numbers = #tpu.dot_dimension_numbers<[1], [0], [0], [1], [0, 0, 1, 1], [], []>} : vector<1x120xf32>, vector<120x84xf32>, vector<1x84xf32> -> vector<1x84xf32>
    %c0_118 = arith.constant 0 : index
    %c0_119 = arith.constant 0 : index
    %175 = vector.load %arg11[%c0_118, %c0_119] : memref<1x84xf32, #tpu.memory_space<vmem>>, vector<1x84xf32>
    %176 = arith.addf %174, %175 : vector<1x84xf32>
    %cst_120 = arith.constant 0.000000e+00 : f32
    %177 = vector.broadcast %cst_120 : f32 to vector<1x84xf32>
    %178 = arith.maximumf %176, %177 : vector<1x84xf32>
    %c0_121 = arith.constant 0 : index
    %c0_122 = arith.constant 0 : index
    %179 = vector.load %arg12[%c0_121, %c0_122] : memref<84x128xf32, #tpu.memory_space<vmem>>, vector<84x128xf32>
    %cst_123 = arith.constant dense<0.000000e+00> : vector<1x128xf32>
    %180 = tpu.matmul %178, %179, %cst_123 {dimension_numbers = #tpu.dot_dimension_numbers<[1], [0], [0], [1], [0, 0, 1, 1], [], []>} : vector<1x84xf32>, vector<84x128xf32>, vector<1x128xf32> -> vector<1x128xf32>
    %c0_124 = arith.constant 0 : index
    %c0_125 = arith.constant 0 : index
    %181 = vector.load %arg13[%c0_124, %c0_125] : memref<1x128xf32, #tpu.memory_space<vmem>>, vector<1x128xf32>
    %182 = arith.addf %180, %181 : vector<1x128xf32>
    %c0_126 = arith.constant 0 : index
    %c0_127 = arith.constant 0 : index
    %c0_128 = arith.constant 0 : index
    %183 = vector.load %arg14[%c0_126, %c0_127, %c0_128] : memref<1x1x128xf32, #tpu.memory_space<vmem>>, vector<1x1x128xf32>
    %184 = vector.shape_cast %183 : vector<1x1x128xf32> to vector<1x128xf32>
    %185 = vector.shape_cast %182 : vector<1x128xf32> to vector<1x1x128xf32>
    tpu.vector_store %arg14[%c0_126, %c0_127, %c0_128], %185 {strides = array<i32>} : memref<1x1x128xf32, #tpu.memory_space<vmem>>, vector<1x1x128xf32>,
    return
  }
  func.func @transform_0(%arg0: i32) -> (i32, i32, i32) {
    %c0_i32 = arith.constant 0 : i32
    %c0_i32_0 = arith.constant 0 : i32
    %c0_i32_1 = arith.constant 0 : i32
    return %arg0, %c0_i32, %c0_i32_0 : i32, i32, i32
  }
  func.func @transform_1(%arg0: i32) -> (i32, i32, i32) {
    %c0_i32 = arith.constant 0 : i32
    %c0_i32_0 = arith.constant 0 : i32
    %c0_i32_1 = arith.constant 0 : i32
    %c0_i32_2 = arith.constant 0 : i32
    return %c0_i32, %c0_i32_0, %c0_i32_1 : i32, i32, i32
  }
  func.func @transform_2(%arg0: i32) -> (i32, i32, i32) {
    %c0_i32 = arith.constant 0 : i32
    %c0_i32_0 = arith.constant 0 : i32
    %c0_i32_1 = arith.constant 0 : i32
    %c0_i32_2 = arith.constant 0 : i32
    return %c0_i32, %c0_i32_0, %c0_i32_1 : i32, i32, i32
  }
  func.func @transform_3(%arg0: i32) -> (i32, i32) {
    %c0_i32 = arith.constant 0 : i32
    %c0_i32_0 = arith.constant 0 : i32
    %c0_i32_1 = arith.constant 0 : i32
    return %c0_i32, %c0_i32_0 : i32, i32
  }
  func.func @transform_4(%arg0: i32) -> (i32, i32, i32) {
    %c0_i32 = arith.constant 0 : i32
    %c0_i32_0 = arith.constant 0 : i32
    %c0_i32_1 = arith.constant 0 : i32
    %c0_i32_2 = arith.constant 0 : i32
    return %c0_i32, %c0_i32_0, %c0_i32_1 : i32, i32, i32
  }
  func.func @transform_5(%arg0: i32) -> (i32, i32, i32) {
    %c0_i32 = arith.constant 0 : i32
    %c0_i32_0 = arith.constant 0 : i32
    %c0_i32_1 = arith.constant 0 : i32
    %c0_i32_2 = arith.constant 0 : i32
    return %c0_i32, %c0_i32_0, %c0_i32_1 : i32, i32, i32
  }
  func.func @transform_6(%arg0: i32) -> (i32, i32) {
    %c0_i32 = arith.constant 0 : i32
    %c0_i32_0 = arith.constant 0 : i32
    %c0_i32_1 = arith.constant 0 : i32
    return %c0_i32, %c0_i32_0 : i32, i32
  }
  func.func @transform_7(%arg0: i32) -> (i32, i32, i32) {
    %c0_i32 = arith.constant 0 : i32
    %c0_i32_0 = arith.constant 0 : i32
    %c0_i32_1 = arith.constant 0 : i32
    %c0_i32_2 = arith.constant 0 : i32
    return %c0_i32, %c0_i32_0, %c0_i32_1 : i32, i32, i32
  }
  func.func @transform_8(%arg0: i32) -> (i32, i32) {
    %c0_i32 = arith.constant 0 : i32
    %c0_i32_0 = arith.constant 0 : i32
    %c0_i32_1 = arith.constant 0 : i32
    return %c0_i32, %c0_i32_0 : i32, i32
  }
  func.func @transform_9(%arg0: i32) -> (i32, i32) {
    %c0_i32 = arith.constant 0 : i32
    %c0_i32_0 = arith.constant 0 : i32
    %c0_i32_1 = arith.constant 0 : i32
    return %c0_i32, %c0_i32_0 : i32, i32
  }
  func.func @transform_10(%arg0: i32) -> (i32, i32) {
    %c0_i32 = arith.constant 0 : i32
    %c0_i32_0 = arith.constant 0 : i32
    %c0_i32_1 = arith.constant 0 : i32
    return %c0_i32, %c0_i32_0 : i32, i32
  }
  func.func @transform_11(%arg0: i32) -> (i32, i32) {
    %c0_i32 = arith.constant 0 : i32
    %c0_i32_0 = arith.constant 0 : i32
    %c0_i32_1 = arith.constant 0 : i32
    return %c0_i32, %c0_i32_0 : i32, i32
  }
  func.func @transform_12(%arg0: i32) -> (i32, i32) {
    %c0_i32 = arith.constant 0 : i32
    %c0_i32_0 = arith.constant 0 : i32
    %c0_i32_1 = arith.constant 0 : i32
    return %c0_i32, %c0_i32_0 : i32, i32
  }
  func.func @transform_13(%arg0: i32) -> (i32, i32, i32) {
    %c0_i32 = arith.constant 0 : i32
    %c0_i32_0 = arith.constant 0 : i32
    %c0_i32_1 = arith.constant 0 : i32
    return %arg0, %c0_i32, %c0_i32_0 : i32, i32, i32
  }
}

</mosaic_0001>

<llo_original>
// kernel: tile.13
$region0: #{tile.13}
  #allocation0 [shape = 's32[1]{0}', space=sflag, size = 0x4, scoped, tag = 'scoped memory for tile.13']
  %s0 = inlined_call_operand.vmem [shape: f32[6], index: 0, kind: input, shape index: {}]
  %s1 = inlined_call_operand.vmem [shape: f32[12,6], index: 1, kind: output, shape index: {}]
  // Predicated region
  $region2: #{tile.13} parent=0 // pred_check
    _
  $region3: #{tile.13} parent=0 // pred_check_branch
    %3 = sbr.rel (0) target = $region5
  $region4: #{tile.13} parent=0 // pred_region
    _
  $region5: #{tile.13} parent=0 // pred_fallthru
    _
  %v4 = vld [vmem:[%s0] ss:$0 sm:$0xff]
  %5 = vst [vmem:[%s1] sm:$0xff] %v4
  %s6 = scalar_lea.vmem %s1, 8
  %7 = vst [vmem:[%s6] sm:$0xff] %v4

// kernel: tile.14
$region0: #{tile.14}
  %s0 = inlined_call_operand.vmem [shape: f32[12,6], index: 0, kind: input, shape index: {}]
  %s1 = inlined_call_operand.vmem [shape: f32[1,72], index: 1, kind: output, shape index: {}]
  $region1: #{tile.14} parent=0
    #allocation0 [shape = 'u8[4096]{0}', space=vmem, size = 0x1000, scoped, tag = 'scoped mem for output reshape']
    %v2 = vld [vmem:[%s0] sm:$0x1]
    %vm3 = vcmask 48128
    %4 = vst.msk [vmem:[#allocation0] sm:$0x1] %vm3, %v2
    %s5 = scalar_lea.vmem %s0, 11
    %v6 = vld [vmem:[%s5] sm:$0x1]
    %7 = vrot.lane.b32.xlu0 %v6, 66
    %v8 = vpop.permute.xlu0 %7
    %vm9 = vcmask 589328
    %10 = vst.msk [vmem:[#allocation0] sm:$0x1] %vm9, %v8
    %s11 = scalar_lea.vmem %s0, 10
    %v12 = vld [vmem:[%s11] sm:$0x1]
    %13 = vrot.lane.b32.xlu0 %v12, 60
    %v14 = vpop.permute.xlu0 %13
    %vm15 = vcmask 540128
    %16 = vst.msk [vmem:[#allocation0] sm:$0x1] %vm15, %v14
    %s17 = scalar_lea.vmem %s0, 9
    %v18 = vld [vmem:[%s17] sm:$0x1]
    %19 = vrot.lane.b32.xlu0 %v18, 54
    %v20 = vpop.permute.xlu0 %19
    %vm21 = vcmask 490928
    %22 = vst.msk [vmem:[#allocation0] sm:$0x1] %vm21, %v20
    %s23 = scalar_lea.vmem %s0, 8
    %v24 = vld [vmem:[%s23] sm:$0x1]
    %25 = vrot.lane.b32.xlu0 %v24, 48
    %v26 = vpop.permute.xlu0 %25
    %vm27 = vcmask 441728
    %28 = vst.msk [vmem:[#allocation0] sm:$0x1] %vm27, %v26
    %s29 = scalar_lea.vmem %s0, 7
    %v30 = vld [vmem:[%s29] sm:$0x1]
    %31 = vrot.lane.b32.xlu0 %v30, 42
    %v32 = vpop.permute.xlu0 %31
    %vm33 = vcmask 392528
    %34 = vst.msk [vmem:[#allocation0] sm:$0x1] %vm33, %v32
    %s35 = scalar_lea.vmem %s0, 6
    %v36 = vld [vmem:[%s35] sm:$0x1]
    %37 = vrot.lane.b32.xlu0 %v36, 36
    %v38 = vpop.permute.xlu0 %37
    %vm39 = vcmask 343328
    %40 = vst.msk [vmem:[#allocation0] sm:$0x1] %vm39, %v38
    %s41 = scalar_lea.vmem %s0, 5
    %v42 = vld [vmem:[%s41] sm:$0x1]
    %43 = vrot.lane.b32.xlu0 %v42, 30
    %v44 = vpop.permute.xlu0 %43
    %vm45 = vcmask 294128
    %46 = vst.msk [vmem:[#allocation0] sm:$0x1] %vm45, %v44
    %s47 = scalar_lea.vmem %s0, 4
    %v48 = vld [vmem:[%s47] sm:$0x1]
    %49 = vrot.lane.b32.xlu0 %v48, 24
    %v50 = vpop.permute.xlu0 %49
    %vm51 = vcmask 244928
    %52 = vst.msk [vmem:[#allocation0] sm:$0x1] %vm51, %v50
    %s53 = scalar_lea.vmem %s0, 3
    %v54 = vld [vmem:[%s53] sm:$0x1]
    %55 = vrot.lane.b32.xlu0 %v54, 18
    %v56 = vpop.permute.xlu0 %55
    %vm57 = vcmask 195728
    %58 = vst.msk [vmem:[#allocation0] sm:$0x1] %vm57, %v56
    %s59 = scalar_lea.vmem %s0, 2
    %v60 = vld [vmem:[%s59] sm:$0x1]
    %61 = vrot.lane.b32.xlu0 %v60, 12
    %v62 = vpop.permute.xlu0 %61
    %vm63 = vcmask 146528
    %64 = vst.msk [vmem:[#allocation0] sm:$0x1] %vm63, %v62
    %s65 = scalar_lea.vmem %s0, 1
    %v66 = vld [vmem:[%s65] sm:$0x1]
    %67 = vrot.lane.b32.xlu0 %v66, 6
    %v68 = vpop.permute.xlu0 %67
    %vm69 = vcmask 97328
    %70 = vst.msk [vmem:[#allocation0] sm:$0x1] %vm69, %v68
    %s72 = sshll.u32 1, 1
    %s73 = ssub.s32 %s72, 1
    %v75 = vld [vmem:[#allocation0] sm:%s73]
    %s76 = sshll.u32 1, 1
    %s77 = ssub.s32 %s76, 1
    %78 = vst [vmem:[%s1] sm:%s77] %v75

// kernel: tile.18
$region0: #{tile.18}
  #allocation0 [shape = 's32[1]{0}', space=sflag, size = 0x4, scoped, tag = 'scoped memory for tile.18']
  %s0 = inlined_call_operand.vmem [shape: f32[16], index: 0, kind: input, shape index: {}]
  %s1 = inlined_call_operand.vmem [shape: f32[4,16], index: 1, kind: output, shape index: {}]
  // Predicated region
  $region2: #{tile.18} parent=0 // pred_check
    _
  $region3: #{tile.18} parent=0 // pred_check_branch
    %3 = sbr.rel (0) target = $region5
  $region4: #{tile.18} parent=0 // pred_region
    _
  $region5: #{tile.18} parent=0 // pred_fallthru
    _
  %v4 = vld [vmem:[%s0] ss:$0 sm:$0xff]
  %5 = vst [vmem:[%s1] sm:$0xf] %v4

// kernel: tile.19
$region0: #{tile.19}
  %s0 = inlined_call_operand.vmem [shape: f32[4,16], index: 0, kind: input, shape index: {}]
  %s1 = inlined_call_operand.vmem [shape: f32[1,64], index: 1, kind: output, shape index: {}]
  $region1: #{tile.19} parent=0
    #allocation0 [shape = 'u8[4096]{0}', space=vmem, size = 0x1000, scoped, tag = 'scoped mem for output reshape']
    #allocation1 [shape = 'u8[4096]{0}', space=vmem, size = 0x1000, scoped, tag = 'scoped mem for input reshape']
    %s3 = sshll.u32 1, 4
    %s4 = ssub.s32 %s3, 1
    %v5 = vld [vmem:[%s0] sm:%s4]
    %6 = vst [vmem:[#allocation1] sm:%s4] %v5
    %v7 = vld [vmem:[#allocation1] sm:$0x1]
    %vm8 = vcmask 130048
    %9 = vst.msk [vmem:[#allocation0] sm:$0x1] %vm8, %v7
    %s10 = scalar_lea.vmem [#allocation1], 3
    %v11 = vld [vmem:[%s10] sm:$0x1]
    %12 = vrot.lane.b32.xlu0 %v11, 48
    %v13 = vpop.permute.xlu0 %12
    %vm14 = vcmask 523648
    %15 = vst.msk [vmem:[#allocation0] sm:$0x1] %vm14, %v13
    %s16 = scalar_lea.vmem [#allocation1], 2
    %v17 = vld [vmem:[%s16] sm:$0x1]
    %18 = vrot.lane.b32.xlu0 %v17, 32
    %v19 = vpop.permute.xlu0 %18
    %vm20 = vcmask 392448
    %21 = vst.msk [vmem:[#allocation0] sm:$0x1] %vm20, %v19
    %s22 = scalar_lea.vmem [#allocation1], 1
    %v23 = vld [vmem:[%s22] sm:$0x1]
    %24 = vrot.lane.b32.xlu0 %v23, 16
    %v25 = vpop.permute.xlu0 %24
    %vm26 = vcmask 261248
    %27 = vst.msk [vmem:[#allocation0] sm:$0x1] %vm26, %v25
    %s29 = sshll.u32 1, 1
    %s30 = ssub.s32 %s29, 1
    %v32 = vld [vmem:[#allocation0] sm:%s30]
    %s33 = sshll.u32 1, 1
    %s34 = ssub.s32 %s33, 1
    %35 = vst [vmem:[%s1] sm:%s34] %v32

// kernel: lenet_forward.1
$region0: #{lenet_forward.1}
  #allocation0 [shape = 'u32[]', space=smem, size = 0x4, offset = 0x4, fixed_abs, tag = 'smem constant byte address 0x4 - core index']
  #allocation1 [shape = 'u32[144,128]{1,0:T(1,128)}', space=vmem, size = 0x12000, scoped, tag = 'internal scratch']
  %s0 = inlined_call_operand.vmem [shape: f32[2,28,28], index: 0, kind: input, shape index: {}]
  %s1 = inlined_call_operand.vmem [shape: f32[5,28,72], index: 1, kind: input, shape index: {}]
  %s2 = inlined_call_operand.vmem [shape: f32[5,28,72], index: 2, kind: input, shape index: {}]
  %s3 = inlined_call_operand.vmem [shape: f32[1,72], index: 3, kind: input, shape index: {}]
  %s4 = inlined_call_operand.vmem [shape: f32[5,72,64], index: 4, kind: input, shape index: {}]
  %s5 = inlined_call_operand.vmem [shape: f32[5,72,64], index: 5, kind: input, shape index: {}]
  %s6 = inlined_call_operand.vmem [shape: f32[1,64], index: 6, kind: input, shape index: {}]
  %s7 = inlined_call_operand.vmem [shape: f32[4,64,120], index: 7, kind: input, shape index: {}]
  %s8 = inlined_call_operand.vmem [shape: f32[1,120], index: 8, kind: input, shape index: {}]
  %s9 = inlined_call_operand.vmem [shape: f32[120,84], index: 9, kind: input, shape index: {}]
  %s10 = inlined_call_operand.vmem [shape: f32[1,84], index: 10, kind: input, shape index: {}]
  %s11 = inlined_call_operand.vmem [shape: f32[84,128], index: 11, kind: input, shape index: {}]
  %s12 = inlined_call_operand.vmem [shape: f32[1,128], index: 12, kind: input, shape index: {}]
  %s13 = inlined_call_operand.hbm [shape: f32[2,1,128], index: 13, kind: output, shape index: {}]
  %s14 = sld [smem:[#allocation0]]
  $region85: #{lenet_forward.1} parent=0
    _
  %s16 = ssub.s32 1, %s14
  %s17 = scalar_select 0, %s16, %s14
  $region1: #{lenet_forward.1} parent=0
    #allocation2 [shape = 'u8[1024]{0}', space=vmem, size = 0x400, scoped, tag = 'output window, operand 0']
    #allocation3 [shape = 's32[2]{0}', space=sflag, size = 0x8, scoped, tag = 'scoped memory for lenet_forward.1']
    %18 = vsyncpa [#allocation3], 0
    %s19 = scalar_lea.sflag [#allocation3], 1
    %20 = vsyncpa %s19, 0
    loop: start=0, step=1, limit=4
    $region2: #{lenet_forward.1} parent=1 // loop_pre_header
      _
    $region3: #{lenet_forward.1} parent=1 // loop_header
      %s22 = sphi 0, %s26
      %p23 = scmp.ge.s32.totalorder %s22, 4
      %s32 = sphi 0, %s34
      %s35 = sphi 0, %s32
      %s36 = sphi 0, %s35
      %s52 = sphi 0, %s36
      %s56 = sphi 0, %s56
      %s58 = sphi 0, %s56
      %s59 = sphi 0, %s58
      %s73 = sphi 0, %s59
      %s77 = sphi 0, %s77
      %s79 = sphi 0, %s77
      %s80 = sphi 0, %s79
      %s94 = sphi 0, %s80
      %s98 = sphi 0, %s98
      %s100 = sphi 0, %s98
      %s101 = sphi 0, %s100
      %s115 = sphi 0, %s101
      %s119 = sphi 0, %s119
      %s121 = sphi 0, %s119
      %s122 = sphi 0, %s121
      %s136 = sphi 0, %s122
      %s140 = sphi 0, %s140
      %s142 = sphi 0, %s140
      %s143 = sphi 0, %s142
      %s157 = sphi 0, %s143
      %s161 = sphi 0, %s161
      %s163 = sphi 0, %s161
      %s164 = sphi 0, %s163
      %s178 = sphi 0, %s164
      %s182 = sphi 0, %s182
      %s184 = sphi 0, %s182
      %s185 = sphi 0, %s184
      %s199 = sphi 0, %s185
      %s203 = sphi 0, %s203
      %s205 = sphi 0, %s203
      %s206 = sphi 0, %s205
      %s220 = sphi 0, %s206
      %s224 = sphi 0, %s224
      %s226 = sphi 0, %s224
      %s227 = sphi 0, %s226
      %s241 = sphi 0, %s227
      %s245 = sphi 0, %s245
      %s247 = sphi 0, %s245
      %s248 = sphi 0, %s247
      %s262 = sphi 0, %s248
      %s266 = sphi 0, %s266
      %s268 = sphi 0, %s266
      %s269 = sphi 0, %s268
      %s283 = sphi 0, %s269
      %s287 = sphi 0, %s287
      %s289 = sphi 0, %s287
      %s290 = sphi 0, %s289
      %s304 = sphi 0, %s290
      %s310 = sphi 0, %s312
      %s313 = sphi 0, %s310
      %s314 = sphi 0, %s313
      %s330 = sphi 0, %s314
    $region4: #{lenet_forward.1} parent=1 // loop_header_branch
      %25 = sbr.rel (%p23) target = $region8
    $region5: #{lenet_forward.1} parent=1 // loop_body
      %s27 = ssub.s32 %s22, 1
      %s28 = ssub.s32 %s22, 2
      %s29 = sadd.s32 %s22, 1
      %s30 = ssub.s32 %s22, %s29
      %p31 = scmp.eq.s32.totalorder %s30, 0
      %s33 = sadd.s32 %s32, 1
      %s34 = scalar_select %p31, %s32, %s33
      %p37 = pneg %p31
      %p38 = scmp.eq.s32.totalorder %s22, 1
      %p39 = por %p37, %p38
      %p40 = scmp.ne.s32.totalorder %s32, %s35
      %p41 = scmp.eq.s32.totalorder %s22, 0
      %p42 = por %p40, %p41
      %p43 = scmp.ne.s32.totalorder %s32, %s35
      %p44 = scmp.eq.s32.totalorder %s27, 1
      %p45 = por %p43, %p44
      %p46 = scmp.ne.s32.totalorder %s35, %s36
      %p47 = scmp.eq.s32.totalorder %s27, 0
      %p48 = por %p46, %p47
      %p49 = scmp.ne.s32.totalorder %s35, %s36
      %p50 = scmp.eq.s32.totalorder %s28, 1
      %p51 = por %p49, %p50
      %p53 = scmp.ne.s32.totalorder %s36, %s52
      %p54 = scmp.eq.s32.totalorder %s28, 0
      %p55 = por %p53, %p54
      %s57 = sadd.s32 %s56, 1
      %p60 = scmp.eq.s32.totalorder %s22, 1
      %p61 = scmp.ne.s32.totalorder %s56, %s58
      %p62 = scmp.eq.s32.totalorder %s22, 0
      %p63 = por %p61, %p62
      %p64 = scmp.ne.s32.totalorder %s56, %s58
      %p65 = scmp.eq.s32.totalorder %s27, 1
      %p66 = por %p64, %p65
      %p67 = scmp.ne.s32.totalorder %s58, %s59
      %p68 = scmp.eq.s32.totalorder %s27, 0
      %p69 = por %p67, %p68
      %p70 = scmp.ne.s32.totalorder %s58, %s59
      %p71 = scmp.eq.s32.totalorder %s28, 1
      %p72 = por %p70, %p71
      %p74 = scmp.ne.s32.totalorder %s59, %s73
      %p75 = scmp.eq.s32.totalorder %s28, 0
      %p76 = por %p74, %p75
      %s78 = sadd.s32 %s77, 1
      %p81 = scmp.eq.s32.totalorder %s22, 1
      %p82 = scmp.ne.s32.totalorder %s77, %s79
      %p83 = scmp.eq.s32.totalorder %s22, 0
      %p84 = por %p82, %p83
      %p85 = scmp.ne.s32.totalorder %s77, %s79
      %p86 = scmp.eq.s32.totalorder %s27, 1
      %p87 = por %p85, %p86
      %p88 = scmp.ne.s32.totalorder %s79, %s80
      %p89 = scmp.eq.s32.totalorder %s27, 0
      %p90 = por %p88, %p89
      %p91 = scmp.ne.s32.totalorder %s79, %s80
      %p92 = scmp.eq.s32.totalorder %s28, 1
      %p93 = por %p91, %p92
      %p95 = scmp.ne.s32.totalorder %s80, %s94
      %p96 = scmp.eq.s32.totalorder %s28, 0
      %p97 = por %p95, %p96
      %s99 = sadd.s32 %s98, 1
      %p102 = scmp.eq.s32.totalorder %s22, 1
      %p103 = scmp.ne.s32.totalorder %s98, %s100
      %p104 = scmp.eq.s32.totalorder %s22, 0
      %p105 = por %p103, %p104
      %p106 = scmp.ne.s32.totalorder %s98, %s100
      %p107 = scmp.eq.s32.totalorder %s27, 1
      %p108 = por %p106, %p107
      %p109 = scmp.ne.s32.totalorder %s100, %s101
      %p110 = scmp.eq.s32.totalorder %s27, 0
      %p111 = por %p109, %p110
      %p112 = scmp.ne.s32.totalorder %s100, %s101
      %p113 = scmp.eq.s32.totalorder %s28, 1
      %p114 = por %p112, %p113
      %p116 = scmp.ne.s32.totalorder %s101, %s115
      %p117 = scmp.eq.s32.totalorder %s28, 0
      %p118 = por %p116, %p117
      %s120 = sadd.s32 %s119, 1
      %p123 = scmp.eq.s32.totalorder %s22, 1
      %p124 = scmp.ne.s32.totalorder %s119, %s121
      %p125 = scmp.eq.s32.totalorder %s22, 0
      %p126 = por %p124, %p125
      %p127 = scmp.ne.s32.totalorder %s119, %s121
      %p128 = scmp.eq.s32.totalorder %s27, 1
      %p129 = por %p127, %p128
      %p130 = scmp.ne.s32.totalorder %s121, %s122
      %p131 = scmp.eq.s32.totalorder %s27, 0
      %p132 = por %p130, %p131
      %p133 = scmp.ne.s32.totalorder %s121, %s122
      %p134 = scmp.eq.s32.totalorder %s28, 1
      %p135 = por %p133, %p134
      %p137 = scmp.ne.s32.totalorder %s122, %s136
      %p138 = scmp.eq.s32.totalorder %s28, 0
      %p139 = por %p137, %p138
      %s141 = sadd.s32 %s140, 1
      %p144 = scmp.eq.s32.totalorder %s22, 1
      %p145 = scmp.ne.s32.totalorder %s140, %s142
      %p146 = scmp.eq.s32.totalorder %s22, 0
      %p147 = por %p145, %p146
      %p148 = scmp.ne.s32.totalorder %s140, %s142
      %p149 = scmp.eq.s32.totalorder %s27, 1
      %p150 = por %p148, %p149
      %p151 = scmp.ne.s32.totalorder %s142, %s143
      %p152 = scmp.eq.s32.totalorder %s27, 0
      %p153 = por %p151, %p152
      %p154 = scmp.ne.s32.totalorder %s142, %s143
      %p155 = scmp.eq.s32.totalorder %s28, 1
      %p156 = por %p154, %p155
      %p158 = scmp.ne.s32.totalorder %s143, %s157
      %p159 = scmp.eq.s32.totalorder %s28, 0
      %p160 = por %p158, %p159
      %s162 = sadd.s32 %s161, 1
      %p165 = scmp.eq.s32.totalorder %s22, 1
      %p166 = scmp.ne.s32.totalorder %s161, %s163
      %p167 = scmp.eq.s32.totalorder %s22, 0
      %p168 = por %p166, %p167
      %p169 = scmp.ne.s32.totalorder %s161, %s163
      %p170 = scmp.eq.s32.totalorder %s27, 1
      %p171 = por %p169, %p170
      %p172 = scmp.ne.s32.totalorder %s163, %s164
      %p173 = scmp.eq.s32.totalorder %s27, 0
      %p174 = por %p172, %p173
      %p175 = scmp.ne.s32.totalorder %s163, %s164
      %p176 = scmp.eq.s32.totalorder %s28, 1
      %p177 = por %p175, %p176
      %p179 = scmp.ne.s32.totalorder %s164, %s178
      %p180 = scmp.eq.s32.totalorder %s28, 0
      %p181 = por %p179, %p180
      %s183 = sadd.s32 %s182, 1
      %p186 = scmp.eq.s32.totalorder %s22, 1
      %p187 = scmp.ne.s32.totalorder %s182, %s184
      %p188 = scmp.eq.s32.totalorder %s22, 0
      %p189 = por %p187, %p188
      %p190 = scmp.ne.s32.totalorder %s182, %s184
      %p191 = scmp.eq.s32.totalorder %s27, 1
      %p192 = por %p190, %p191
      %p193 = scmp.ne.s32.totalorder %s184, %s185
      %p194 = scmp.eq.s32.totalorder %s27, 0
      %p195 = por %p193, %p194
      %p196 = scmp.ne.s32.totalorder %s184, %s185
      %p197 = scmp.eq.s32.totalorder %s28, 1
      %p198 = por %p196, %p197
      %p200 = scmp.ne.s32.totalorder %s185, %s199
      %p201 = scmp.eq.s32.totalorder %s28, 0
      %p202 = por %p200, %p201
      %s204 = sadd.s32 %s203, 1
      %p207 = scmp.eq.s32.totalorder %s22, 1
      %p208 = scmp.ne.s32.totalorder %s203, %s205
      %p209 = scmp.eq.s32.totalorder %s22, 0
      %p210 = por %p208, %p209
      %p211 = scmp.ne.s32.totalorder %s203, %s205
      %p212 = scmp.eq.s32.totalorder %s27, 1
      %p213 = por %p211, %p212
      %p214 = scmp.ne.s32.totalorder %s205, %s206
      %p215 = scmp.eq.s32.totalorder %s27, 0
      %p216 = por %p214, %p215
      %p217 = scmp.ne.s32.totalorder %s205, %s206
      %p218 = scmp.eq.s32.totalorder %s28, 1
      %p219 = por %p217, %p218
      %p221 = scmp.ne.s32.totalorder %s206, %s220
      %p222 = scmp.eq.s32.totalorder %s28, 0
      %p223 = por %p221, %p222
      %s225 = sadd.s32 %s224, 1
      %p228 = scmp.eq.s32.totalorder %s22, 1
      %p229 = scmp.ne.s32.totalorder %s224, %s226
      %p230 = scmp.eq.s32.totalorder %s22, 0
      %p231 = por %p229, %p230
      %p232 = scmp.ne.s32.totalorder %s224, %s226
      %p233 = scmp.eq.s32.totalorder %s27, 1
      %p234 = por %p232, %p233
      %p235 = scmp.ne.s32.totalorder %s226, %s227
      %p236 = scmp.eq.s32.totalorder %s27, 0
      %p237 = por %p235, %p236
      %p238 = scmp.ne.s32.totalorder %s226, %s227
      %p239 = scmp.eq.s32.totalorder %s28, 1
      %p240 = por %p238, %p239
      %p242 = scmp.ne.s32.totalorder %s227, %s241
      %p243 = scmp.eq.s32.totalorder %s28, 0
      %p244 = por %p242, %p243
      %s246 = sadd.s32 %s245, 1
      %p249 = scmp.eq.s32.totalorder %s22, 1
      %p250 = scmp.ne.s32.totalorder %s245, %s247
      %p251 = scmp.eq.s32.totalorder %s22, 0
      %p252 = por %p250, %p251
      %p253 = scmp.ne.s32.totalorder %s245, %s247
      %p254 = scmp.eq.s32.totalorder %s27, 1
      %p255 = por %p253, %p254
      %p256 = scmp.ne.s32.totalorder %s247, %s248
      %p257 = scmp.eq.s32.totalorder %s27, 0
      %p258 = por %p256, %p257
      %p259 = scmp.ne.s32.totalorder %s247, %s248
      %p260 = scmp.eq.s32.totalorder %s28, 1
      %p261 = por %p259, %p260
      %p263 = scmp.ne.s32.totalorder %s248, %s262
      %p264 = scmp.eq.s32.totalorder %s28, 0
      %p265 = por %p263, %p264
      %s267 = sadd.s32 %s266, 1
      %p270 = scmp.eq.s32.totalorder %s22, 1
      %p271 = scmp.ne.s32.totalorder %s266, %s268
      %p272 = scmp.eq.s32.totalorder %s22, 0
      %p273 = por %p271, %p272
      %p274 = scmp.ne.s32.totalorder %s266, %s268
      %p275 = scmp.eq.s32.totalorder %s27, 1
      %p276 = por %p274, %p275
      %p277 = scmp.ne.s32.totalorder %s268, %s269
      %p278 = scmp.eq.s32.totalorder %s27, 0
      %p279 = por %p277, %p278
      %p280 = scmp.ne.s32.totalorder %s268, %s269
      %p281 = scmp.eq.s32.totalorder %s28, 1
      %p282 = por %p280, %p281
      %p284 = scmp.ne.s32.totalorder %s269, %s283
      %p285 = scmp.eq.s32.totalorder %s28, 0
      %p286 = por %p284, %p285
      %s288 = sadd.s32 %s287, 1
      %p291 = scmp.eq.s32.totalorder %s22, 1
      %p292 = scmp.ne.s32.totalorder %s287, %s289
      %p293 = scmp.eq.s32.totalorder %s22, 0
      %p294 = por %p292, %p293
      %p295 = scmp.ne.s32.totalorder %s287, %s289
      %p296 = scmp.eq.s32.totalorder %s27, 1
      %p297 = por %p295, %p296
      %p298 = scmp.ne.s32.totalorder %s289, %s290
      %p299 = scmp.eq.s32.totalorder %s27, 0
      %p300 = por %p298, %p299
      %p301 = scmp.ne.s32.totalorder %s289, %s290
      %p302 = scmp.eq.s32.totalorder %s28, 1
      %p303 = por %p301, %p302
      %p305 = scmp.ne.s32.totalorder %s290, %s304
      %p306 = scmp.eq.s32.totalorder %s28, 0
      %p307 = por %p305, %p306
      %s308 = ssub.s32 %s22, %s29
      %p309 = scmp.eq.s32.totalorder %s308, 0
      %s311 = sadd.s32 %s310, 1
      %s312 = scalar_select %p309, %s310, %s311
      %p315 = pneg %p309
      %p316 = scmp.eq.s32.totalorder %s22, 1
      %p317 = por %p315, %p316
      %p318 = scmp.ne.s32.totalorder %s310, %s313
      %p319 = scmp.eq.s32.totalorder %s22, 0
      %p320 = por %p318, %p319
      %p321 = scmp.ne.s32.totalorder %s310, %s313
      %p322 = scmp.eq.s32.totalorder %s27, 1
      %p323 = por %p321, %p322
      %p324 = scmp.ne.s32.totalorder %s313, %s314
      %p325 = scmp.eq.s32.totalorder %s27, 0
      %p326 = por %p324, %p325
      %p327 = scmp.ne.s32.totalorder %s313, %s314
      %p328 = scmp.eq.s32.totalorder %s28, 1
      %p329 = por %p327, %p328
      %p331 = scmp.ne.s32.totalorder %s314, %s330
      %p332 = scmp.eq.s32.totalorder %s28, 0
      %p333 = por %p331, %p332
      %p334 = scmp.le.s32.totalorder 1, %s22
      %p335 = scmp.lt.s32.totalorder %s22, 3
      %p336 = pnand %p334, %p335
      %p337 = pneg %p336
      // Predicated region
      $region9: #{lenet_forward.1} parent=5 // pred_check
        _
      $region10: #{lenet_forward.1} parent=5 // pred_check_branch
        %339 = sbr.rel (%p336) target = $region12
      $region11: #{lenet_forward.1} parent=5 // pred_region
        %s340 = ssub.s32 %s22, 1
        // Predicated region
        $region13: #{lenet_forward.1} parent=11 // pred_check
          %p341 = pneg %p69
        $region14: #{lenet_forward.1} parent=11 // pred_check_branch
          %343 = sbr.rel (%p341) target = $region16
        $region15: #{lenet_forward.1} parent=11 // pred_region
          _
        $region16: #{lenet_forward.1} parent=11 // pred_fallthru
          _
        // Predicated region
        $region17: #{lenet_forward.1} parent=11 // pred_check
          %p344 = pneg %p90
        $region18: #{lenet_forward.1} parent=11 // pred_check_branch
          %346 = sbr.rel (%p344) target = $region20
        $region19: #{lenet_forward.1} parent=11 // pred_region
          _
        $region20: #{lenet_forward.1} parent=11 // pred_fallthru
          _
        // Predicated region
        $region21: #{lenet_forward.1} parent=11 // pred_check
          %p347 = pneg %p111
        $region22: #{lenet_forward.1} parent=11 // pred_check_branch
          %349 = sbr.rel (%p347) target = $region24
        $region23: #{lenet_forward.1} parent=11 // pred_region
          _
        $region24: #{lenet_forward.1} parent=11 // pred_fallthru
          _
        // Predicated region
        $region25: #{lenet_forward.1} parent=11 // pred_check
          %p350 = pneg %p132
        $region26: #{lenet_forward.1} parent=11 // pred_check_branch
          %352 = sbr.rel (%p350) target = $region28
        $region27: #{lenet_forward.1} parent=11 // pred_region
          _
        $region28: #{lenet_forward.1} parent=11 // pred_fallthru
          _
        // Predicated region
        $region29: #{lenet_forward.1} parent=11 // pred_check
          %p353 = pneg %p153
        $region30: #{lenet_forward.1} parent=11 // pred_check_branch
          %355 = sbr.rel (%p353) target = $region32
        $region31: #{lenet_forward.1} parent=11 // pred_region
          _
        $region32: #{lenet_forward.1} parent=11 // pred_fallthru
          _
        // Predicated region
        $region33: #{lenet_forward.1} parent=11 // pred_check
          %p356 = pneg %p174
        $region34: #{lenet_forward.1} parent=11 // pred_check_branch
          %358 = sbr.rel (%p356) target = $region36
        $region35: #{lenet_forward.1} parent=11 // pred_region
          _
        $region36: #{lenet_forward.1} parent=11 // pred_fallthru
          _
        // Predicated region
        $region37: #{lenet_forward.1} parent=11 // pred_check
          %p359 = pneg %p195
        $region38: #{lenet_forward.1} parent=11 // pred_check_branch
          %361 = sbr.rel (%p359) target = $region40
        $region39: #{lenet_forward.1} parent=11 // pred_region
          _
        $region40: #{lenet_forward.1} parent=11 // pred_fallthru
          _
        // Predicated region
        $region41: #{lenet_forward.1} parent=11 // pred_check
          %p362 = pneg %p216
        $region42: #{lenet_forward.1} parent=11 // pred_check_branch
          %364 = sbr.rel (%p362) target = $region44
        $region43: #{lenet_forward.1} parent=11 // pred_region
          _
        $region44: #{lenet_forward.1} parent=11 // pred_fallthru
          _
        // Predicated region
        $region45: #{lenet_forward.1} parent=11 // pred_check
          %p365 = pneg %p237
        $region46: #{lenet_forward.1} parent=11 // pred_check_branch
          %367 = sbr.rel (%p365) target = $region48
        $region47: #{lenet_forward.1} parent=11 // pred_region
          _
        $region48: #{lenet_forward.1} parent=11 // pred_fallthru
          _
        // Predicated region
        $region49: #{lenet_forward.1} parent=11 // pred_check
          %p368 = pneg %p258
        $region50: #{lenet_forward.1} parent=11 // pred_check_branch
          %370 = sbr.rel (%p368) target = $region52
        $region51: #{lenet_forward.1} parent=11 // pred_region
          _
        $region52: #{lenet_forward.1} parent=11 // pred_fallthru
          _
        // Predicated region
        $region53: #{lenet_forward.1} parent=11 // pred_check
          %p371 = pneg %p279
        $region54: #{lenet_forward.1} parent=11 // pred_check_branch
          %373 = sbr.rel (%p371) target = $region56
        $region55: #{lenet_forward.1} parent=11 // pred_region
          _
        $region56: #{lenet_forward.1} parent=11 // pred_fallthru
          _
        // Predicated region
        $region57: #{lenet_forward.1} parent=11 // pred_check
          %p374 = pneg %p300
        $region58: #{lenet_forward.1} parent=11 // pred_check_branch
          %376 = sbr.rel (%p374) target = $region60
        $region59: #{lenet_forward.1} parent=11 // pred_region
          _
        $region60: #{lenet_forward.1} parent=11 // pred_fallthru
          _
      $region12: #{lenet_forward.1} parent=5 // pred_fallthru
        _
      %p377 = scmp.lt.s32.totalorder %s22, 2
      // Predicated region
      $region61: #{lenet_forward.1} parent=5 // pred_check
        %p378 = pneg %p377
      $region62: #{lenet_forward.1} parent=5 // pred_check_branch
        %380 = sbr.rel (%p378) target = $region64
      $region63: #{lenet_forward.1} parent=5 // pred_region
        // Predicated region
        $region65: #{lenet_forward.1} parent=63 // pred_check
          %p381 = pneg %p42
        $region66: #{lenet_forward.1} parent=63 // pred_check_branch
          %383 = sbr.rel (%p381) target = $region68
        $region67: #{lenet_forward.1} parent=63 // pred_region
          %p384 = scmp.lt.s32.totalorder %s22, 1
          %s385 = scalar_select %p384, %s22, 1
          %s386 = smul.addr %s385, 4
          %s387 = smul.addr %s386, 8
          %s388 = scalar_lea.vmem %s0, %s387
        $region68: #{lenet_forward.1} parent=63 // pred_fallthru
          _
      $region64: #{lenet_forward.1} parent=5 // pred_fallthru
        _
      %p389 = scmp.le.s32.totalorder 1, %s22
      %p390 = scmp.lt.s32.totalorder %s22, 3
      %p391 = pnand %p389, %p390
      %p392 = pneg %p391
      // Predicated region
      $region69: #{lenet_forward.1} parent=5 // pred_check
        _
      $region70: #{lenet_forward.1} parent=5 // pred_check_branch
        %394 = sbr.rel (%p391) target = $region72
      $region71: #{lenet_forward.1} parent=5 // pred_region
        %s395 = ssub.s32 %s22, 1
        %p396 = scmp.lt.s32.totalorder %s27, 1
        %s397 = scalar_select %p396, %s27, 1
        %s398 = smul.addr %s397, 4
        %s399 = smul.addr %s398, 8
        %s400 = scalar_lea.vmem %s0, %s399
        %p401 = pneg %p48
        %p402 = pneg %p45
        %p403 = pneg %p69
        %p404 = pneg %p66
        %p405 = pneg %p90
        %p406 = pneg %p87
        %p407 = pneg %p111
        %p408 = pneg %p108
        %p409 = pneg %p132
        %p410 = pneg %p129
        %p411 = pneg %p153
        %p412 = pneg %p150
        %p413 = pneg %p174
        %p414 = pneg %p171
        %p415 = pneg %p195
        %p416 = pneg %p192
        %p417 = pneg %p216
        %p418 = pneg %p213
        %p419 = pneg %p237
        %p420 = pneg %p234
        %p421 = pneg %p258
        %p422 = pneg %p255
        %p423 = pneg %p279
        %p424 = pneg %p276
        %p425 = pneg %p300
        %p426 = pneg %p297
        %p427 = pneg %p326
        %p428 = pneg %p323
        %s429 = sand.u32 %s313, 1
        %s430 = scalar_lea.sflag [#allocation3], %s429
        %s431 = sand.u32 %s313, 1
        %s432 = scalar_lea.vmem [#allocation2], %s431
        %p433 = scmp.lt.s32.totalorder %s27, 1
        %s434 = scalar_select %p433, %s27, 1
        %s435 = smul.addr %s434, 4
        %s436 = smul.addr %s435, 8
        %s437 = scalar_lea.vmem %s0, %s436
        %v438 = vld [vmem:[%s437] sm:$0xff]
        %v439 = vld [vmem:[%s437 + $0x8] sm:$0xff]
        %v440 = vld [vmem:[%s437 + $0x10] sm:$0xff]
        %v441 = vld [vmem:[%s437 + $0x18] sm:$0xf]
        %v442 = vld [vmem:[%s1] sm:$0xff]
        %v443 = vld [vmem:[%s1 + $0x8] sm:$0xff]
        %v444 = vld [vmem:[%s1 + $0x10] sm:$0xff]
        %v445 = vld [vmem:[%s1 + $0x18] sm:$0xf]
        %v446 = vld [vmem:[%s2] sm:$0xff]
        %v447 = vld [vmem:[%s2 + $0x8] sm:$0xff]
        %v448 = vld [vmem:[%s2 + $0x10] sm:$0xff]
        %v449 = vld [vmem:[%s2 + $0x18] sm:$0xf]
        %s450 = scalar_lea.vmem %s1, 32
        %v451 = vld [vmem:[%s450] sm:$0xff]
        %v452 = vld [vmem:[%s450 + $0x8] sm:$0xff]
        %v453 = vld [vmem:[%s450 + $0x10] sm:$0xff]
        %v454 = vld [vmem:[%s450 + $0x18] sm:$0xf]
        %vm459 = vcmask 1046528
        %v460 = vrot.slane %v438, 1
        %v461 = vrot.slane %v439, 1
        %v462 = vsel %vm459, %v460, %v461
        %v463 = vrot.slane %v440, 1
        %v464 = vsel %vm459, %v461, %v463
        %v465 = vrot.slane %v441, 1
        %v466 = vsel %vm459, %v463, %v465
        %vm467 = vcmask 228352
        %v468 = vsel %vm467, %v462, 0
        %v470 = vsel %vm467, %v464, 0
        %v472 = vsel %vm467, %v466, 0
        %vm474 = vcmask 1043456
        %v476 = vsel %vm474, %v454, 0
        %478 = vmatprep.subr.mxu0 0.0
        %479 = vmatpush1.msra.mxu0 0.0
        %480 = vmatprep.subr.mxu0 0.0
        %481 = vmatpush1.msra.mxu0 0.0
        %482 = vmatprep.subr.mxu0 0.0
        %483 = vmatpush1.msra.mxu0 0.0
        %484 = vmatprep.subr.mxu0 0.0
        %485 = vmatpush1.msra.mxu0 0.0
        %486 = vmatprep.subr.mxu0 0.0
        %487 = vmatpush1.msra.mxu0 0.0
        %488 = vmatprep.subr.mxu0 0.0
        %489 = vmatpush1.msra.mxu0 0.0
        %490 = vmatprep.subr.mxu0 0.0
        %491 = vmatpush1.msra.mxu0 0.0
        %492 = vmatprep.subr.mxu0 0.0
        %493 = vmatpush1.msra.mxu0 0.0
        %494 = vmatprep.subr.mxu0 0.0
        %495 = vmatpush1.msra.mxu0 0.0
        %496 = vmatprep.subr.mxu0 0.0
        %497 = vmatpush1.msra.mxu0 0.0
        %498 = vmatprep.subr.mxu0 0.0
        %499 = vmatpush1.msra.mxu0 0.0
        %500 = vmatprep.subr.mxu0 0.0
        %501 = vmatpush1.msra.mxu0 0.0
        %502 = vmatprep.subr.mxu0 0.0
        %503 = vmatpush1.msra.mxu0 %v476
        %504 = vmatprep.subr.mxu0 0.0
        %505 = vmatpush1.msra.mxu0 %v453
        %506 = vmatprep.subr.mxu0 0.0
        %507 = vmatpush1.msra.mxu0 %v452
        %508 = vmatprep.subr.mxu0 0.0
        %509 = vmatpush1.msra.mxu0 %v451
        %510 = vmatprep.subr.mxu0 0.0
        %511 = vmatpush2.msra.mxu0 0.0
        %512 = vmatprep.subr.mxu0 0.0
        %513 = vmatpush2.msra.mxu0 0.0
        %514 = vmatprep.subr.mxu0 0.0
        %515 = vmatpush2.msra.mxu0 0.0
        %516 = vmatprep.subr.mxu0 0.0
        %517 = vmatpush2.msra.mxu0 0.0
        %518 = vmatprep.subr.mxu0 0.0
        %519 = vmatpush2.msra.mxu0 0.0
        %520 = vmatprep.subr.mxu0 0.0
        %521 = vmatpush2.msra.mxu0 0.0
        %522 = vmatprep.subr.mxu0 0.0
        %523 = vmatpush2.msra.mxu0 0.0
        %524 = vmatprep.subr.mxu0 0.0
        %525 = vmatpush2.msra.mxu0 0.0
        %526 = vmatprep.subr.mxu0 0.0
        %527 = vmatpush2.msra.mxu0 0.0
        %528 = vmatprep.subr.mxu0 0.0
        %529 = vmatpush2.msra.mxu0 0.0
        %530 = vmatprep.subr.mxu0 0.0
        %531 = vmatpush2.msra.mxu0 0.0
        %532 = vmatprep.subr.mxu0 0.0
        %533 = vmatpush2.msra.mxu0 0.0
        %534 = vmatprep.subr.mxu0 0.0
        %535 = vmatpush2.msra.mxu0 0.0
        %536 = vmatprep.subr.mxu0 0.0
        %537 = vmatpush2.msra.mxu0 0.0
        %538 = vmatprep.subr.mxu0 0.0
        %539 = vmatpush2.msra.mxu0 0.0
        %540 = vmatprep.subr.mxu0 0.0
        %541 = vmatpush2.msra.mxu0 0.0
        %542 = vmatprep.mubr.f32.mxu0 0.0
        %543 = vmatmul.mubr.f32.gmra.mxu0 %v468
        %v544 = vpop.f32.mrf.mxu0
        %v545 = vadd.f32 0.0, %v544
        %v546 = vpop.f32.mrf.mxu0
        %547 = vmatprep.mubr.f32.mxu0 0.0
        %548 = vmatmul.mubr.f32.gmra.mxu0 %v470
        %v549 = vpop.f32.mrf.mxu0
        %v550 = vadd.f32 0.0, %v549
        %v551 = vpop.f32.mrf.mxu0
        %552 = vmatprep.mubr.f32.mxu0 0.0
        %553 = vmatmul.mubr.f32.gmra.mxu0 %v472
        %v554 = vpop.f32.mrf.mxu0
        %v555 = vadd.f32 0.0, %v554
        %v556 = vpop.f32.mrf.mxu0
        %557 = vdwg.mxu0
        %v558 = vsel %vm467, %v438, 0
        %v560 = vsel %vm467, %v439, 0
        %v562 = vsel %vm467, %v440, 0
        %v565 = vsel %vm474, %v445, 0
        %567 = vmatprep.subr.mxu0 0.0
        %568 = vmatpush1.msra.mxu0 0.0
        %569 = vmatprep.subr.mxu0 0.0
        %570 = vmatpush1.msra.mxu0 0.0
        %571 = vmatprep.subr.mxu0 0.0
        %572 = vmatpush1.msra.mxu0 0.0
        %573 = vmatprep.subr.mxu0 0.0
        %574 = vmatpush1.msra.mxu0 0.0
        %575 = vmatprep.subr.mxu0 0.0
        %576 = vmatpush1.msra.mxu0 0.0
        %577 = vmatprep.subr.mxu0 0.0
        %578 = vmatpush1.msra.mxu0 0.0
        %579 = vmatprep.subr.mxu0 0.0
        %580 = vmatpush1.msra.mxu0 0.0
        %581 = vmatprep.subr.mxu0 0.0
        %582 = vmatpush1.msra.mxu0 0.0
        %583 = vmatprep.subr.mxu0 0.0
        %584 = vmatpush1.msra.mxu0 0.0
        %585 = vmatprep.subr.mxu0 0.0
        %586 = vmatpush1.msra.mxu0 0.0
        %587 = vmatprep.subr.mxu0 0.0
        %588 = vmatpush1.msra.mxu0 0.0
        %589 = vmatprep.subr.mxu0 0.0
        %590 = vmatpush1.msra.mxu0 0.0
        %591 = vmatprep.subr.mxu0 0.0
        %592 = vmatpush1.msra.mxu0 %v565
        %593 = vmatprep.subr.mxu0 0.0
        %594 = vmatpush1.msra.mxu0 %v444
        %595 = vmatprep.subr.mxu0 0.0
        %596 = vmatpush1.msra.mxu0 %v443
        %597 = vmatprep.subr.mxu0 0.0
        %598 = vmatpush1.msra.mxu0 %v442
        %599 = vmatprep.subr.mxu0 0.0
        %600 = vmatpush2.msra.mxu0 0.0
        %601 = vmatprep.subr.mxu0 0.0
        %602 = vmatpush2.msra.mxu0 0.0
        %603 = vmatprep.subr.mxu0 0.0
        %604 = vmatpush2.msra.mxu0 0.0
        %605 = vmatprep.subr.mxu0 0.0
        %606 = vmatpush2.msra.mxu0 0.0
        %607 = vmatprep.subr.mxu0 0.0
        %608 = vmatpush2.msra.mxu0 0.0
        %609 = vmatprep.subr.mxu0 0.0
        %610 = vmatpush2.msra.mxu0 0.0
        %611 = vmatprep.subr.mxu0 0.0
        %612 = vmatpush2.msra.mxu0 0.0
        %613 = vmatprep.subr.mxu0 0.0
        %614 = vmatpush2.msra.mxu0 0.0
        %615 = vmatprep.subr.mxu0 0.0
        %616 = vmatpush2.msra.mxu0 0.0
        %617 = vmatprep.subr.mxu0 0.0
        %618 = vmatpush2.msra.mxu0 0.0
        %619 = vmatprep.subr.mxu0 0.0
        %620 = vmatpush2.msra.mxu0 0.0
        %621 = vmatprep.subr.mxu0 0.0
        %622 = vmatpush2.msra.mxu0 0.0
        %623 = vmatprep.subr.mxu0 0.0
        %624 = vmatpush2.msra.mxu0 0.0
        %625 = vmatprep.subr.mxu0 0.0
        %626 = vmatpush2.msra.mxu0 0.0
        %627 = vmatprep.subr.mxu0 0.0
        %628 = vmatpush2.msra.mxu0 0.0
        %629 = vmatprep.subr.mxu0 0.0
        %630 = vmatpush2.msra.mxu0 0.0
        %631 = vmatprep.mubr.f32.mxu0 0.0
        %632 = vmatmul.mubr.f32.gmra.mxu0 %v558
        %v633 = vpop.f32.mrf.mxu0
        %v634 = vadd.f32 %v545, %v633
        %v635 = vpop.f32.mrf.mxu0
        %636 = vmatprep.mubr.f32.mxu0 0.0
        %637 = vmatmul.mubr.f32.gmra.mxu0 %v560
        %v638 = vpop.f32.mrf.mxu0
        %v639 = vadd.f32 %v550, %v638
        %v640 = vpop.f32.mrf.mxu0
        %641 = vmatprep.mubr.f32.mxu0 0.0
        %642 = vmatmul.mubr.f32.gmra.mxu0 %v562
        %v643 = vpop.f32.mrf.mxu0
        %v644 = vadd.f32 %v555, %v643
        %v645 = vpop.f32.mrf.mxu0
        %646 = vdwg.mxu0
        %s647 = scalar_lea.vmem %s2, 32
        %v648 = vld [vmem:[%s647] sm:$0xff]
        %v649 = vld [vmem:[%s647 + $0x8] sm:$0xff]
        %v650 = vld [vmem:[%s647 + $0x10] sm:$0xff]
        %v651 = vld [vmem:[%s647 + $0x18] sm:$0xf]
        %v653 = vsel %vm474, %v651, 0
        %655 = vmatprep.subr.mxu0 0.0
        %656 = vmatpush1.msra.mxu0 0.0
        %657 = vmatprep.subr.mxu0 0.0
        %658 = vmatpush1.msra.mxu0 0.0
        %659 = vmatprep.subr.mxu0 0.0
        %660 = vmatpush1.msra.mxu0 0.0
        %661 = vmatprep.subr.mxu0 0.0
        %662 = vmatpush1.msra.mxu0 0.0
        %663 = vmatprep.subr.mxu0 0.0
        %664 = vmatpush1.msra.mxu0 0.0
        %665 = vmatprep.subr.mxu0 0.0
        %666 = vmatpush1.msra.mxu0 0.0
        %667 = vmatprep.subr.mxu0 0.0
        %668 = vmatpush1.msra.mxu0 0.0
        %669 = vmatprep.subr.mxu0 0.0
        %670 = vmatpush1.msra.mxu0 0.0
        %671 = vmatprep.subr.mxu0 0.0
        %672 = vmatpush1.msra.mxu0 0.0
        %673 = vmatprep.subr.mxu0 0.0
        %674 = vmatpush1.msra.mxu0 0.0
        %675 = vmatprep.subr.mxu0 0.0
        %676 = vmatpush1.msra.mxu0 0.0
        %677 = vmatprep.subr.mxu0 0.0
        %678 = vmatpush1.msra.mxu0 0.0
        %679 = vmatprep.subr.mxu0 0.0
        %680 = vmatpush1.msra.mxu0 %v653
        %681 = vmatprep.subr.mxu0 0.0
        %682 = vmatpush1.msra.mxu0 %v650
        %683 = vmatprep.subr.mxu0 0.0
        %684 = vmatpush1.msra.mxu0 %v649
        %685 = vmatprep.subr.mxu0 0.0
        %686 = vmatpush1.msra.mxu0 %v648
        %687 = vmatprep.subr.mxu0 0.0
        %688 = vmatpush2.msra.mxu0 0.0
        %689 = vmatprep.subr.mxu0 0.0
        %690 = vmatpush2.msra.mxu0 0.0
        %691 = vmatprep.subr.mxu0 0.0
        %692 = vmatpush2.msra.mxu0 0.0
        %693 = vmatprep.subr.mxu0 0.0
        %694 = vmatpush2.msra.mxu0 0.0
        %695 = vmatprep.subr.mxu0 0.0
        %696 = vmatpush2.msra.mxu0 0.0
        %697 = vmatprep.subr.mxu0 0.0
        %698 = vmatpush2.msra.mxu0 0.0
        %699 = vmatprep.subr.mxu0 0.0
        %700 = vmatpush2.msra.mxu0 0.0
        %701 = vmatprep.subr.mxu0 0.0
        %702 = vmatpush2.msra.mxu0 0.0
        %703 = vmatprep.subr.mxu0 0.0
        %704 = vmatpush2.msra.mxu0 0.0
        %705 = vmatprep.subr.mxu0 0.0
        %706 = vmatpush2.msra.mxu0 0.0
        %707 = vmatprep.subr.mxu0 0.0
        %708 = vmatpush2.msra.mxu0 0.0
        %709 = vmatprep.subr.mxu0 0.0
        %710 = vmatpush2.msra.mxu0 0.0
        %711 = vmatprep.subr.mxu0 0.0
        %712 = vmatpush2.msra.mxu0 0.0
        %713 = vmatprep.subr.mxu0 0.0
        %714 = vmatpush2.msra.mxu0 0.0
        %715 = vmatprep.subr.mxu0 0.0
        %716 = vmatpush2.msra.mxu0 0.0
        %717 = vmatprep.subr.mxu0 0.0
        %718 = vmatpush2.msra.mxu0 0.0
        %719 = vmatprep.mubr.f32.mxu0 0.0
        %720 = vmatmul.mubr.f32.gmra.mxu0 %v468
        %v721 = vpop.f32.mrf.mxu0
        %v722 = vadd.f32 0.0, %v721
        %v723 = vpop.f32.mrf.mxu0
        %724 = vmatprep.mubr.f32.mxu0 0.0
        %725 = vmatmul.mubr.f32.gmra.mxu0 %v470
        %v726 = vpop.f32.mrf.mxu0
        %v727 = vadd.f32 0.0, %v726
        %v728 = vpop.f32.mrf.mxu0
        %729 = vmatprep.mubr.f32.mxu0 0.0
        %730 = vmatmul.mubr.f32.gmra.mxu0 %v472
        %v731 = vpop.f32.mrf.mxu0
        %v732 = vadd.f32 0.0, %v731
        %v733 = vpop.f32.mrf.mxu0
        %734 = vdwg.mxu0
        %v736 = vsel %vm474, %v449, 0
        %738 = vmatprep.subr.mxu0 0.0
        %739 = vmatpush1.msra.mxu0 0.0
        %740 = vmatprep.subr.mxu0 0.0
        %741 = vmatpush1.msra.mxu0 0.0
        %742 = vmatprep.subr.mxu0 0.0
        %743 = vmatpush1.msra.mxu0 0.0
        %744 = vmatprep.subr.mxu0 0.0
        %745 = vmatpush1.msra.mxu0 0.0
        %746 = vmatprep.subr.mxu0 0.0
        %747 = vmatpush1.msra.mxu0 0.0
        %748 = vmatprep.subr.mxu0 0.0
        %749 = vmatpush1.msra.mxu0 0.0
        %750 = vmatprep.subr.mxu0 0.0
        %751 = vmatpush1.msra.mxu0 0.0
        %752 = vmatprep.subr.mxu0 0.0
        %753 = vmatpush1.msra.mxu0 0.0
        %754 = vmatprep.subr.mxu0 0.0
        %755 = vmatpush1.msra.mxu0 0.0
        %756 = vmatprep.subr.mxu0 0.0
        %757 = vmatpush1.msra.mxu0 0.0
        %758 = vmatprep.subr.mxu0 0.0
        %759 = vmatpush1.msra.mxu0 0.0
        %760 = vmatprep.subr.mxu0 0.0
        %761 = vmatpush1.msra.mxu0 0.0
        %762 = vmatprep.subr.mxu0 0.0
        %763 = vmatpush1.msra.mxu0 %v736
        %764 = vmatprep.subr.mxu0 0.0
        %765 = vmatpush1.msra.mxu0 %v448
        %766 = vmatprep.subr.mxu0 0.0
        %767 = vmatpush1.msra.mxu0 %v447
        %768 = vmatprep.subr.mxu0 0.0
        %769 = vmatpush1.msra.mxu0 %v446
        %770 = vmatprep.subr.mxu0 0.0
        %771 = vmatpush2.msra.mxu0 0.0
        %772 = vmatprep.subr.mxu0 0.0
        %773 = vmatpush2.msra.mxu0 0.0
        %774 = vmatprep.subr.mxu0 0.0
        %775 = vmatpush2.msra.mxu0 0.0
        %776 = vmatprep.subr.mxu0 0.0
        %777 = vmatpush2.msra.mxu0 0.0
        %778 = vmatprep.subr.mxu0 0.0
        %779 = vmatpush2.msra.mxu0 0.0
        %780 = vmatprep.subr.mxu0 0.0
        %781 = vmatpush2.msra.mxu0 0.0
        %782 = vmatprep.subr.mxu0 0.0
        %783 = vmatpush2.msra.mxu0 0.0
        %784 = vmatprep.subr.mxu0 0.0
        %785 = vmatpush2.msra.mxu0 0.0
        %786 = vmatprep.subr.mxu0 0.0
        %787 = vmatpush2.msra.mxu0 0.0
        %788 = vmatprep.subr.mxu0 0.0
        %789 = vmatpush2.msra.mxu0 0.0
        %790 = vmatprep.subr.mxu0 0.0
        %791 = vmatpush2.msra.mxu0 0.0
        %792 = vmatprep.subr.mxu0 0.0
        %793 = vmatpush2.msra.mxu0 0.0
        %794 = vmatprep.subr.mxu0 0.0
        %795 = vmatpush2.msra.mxu0 0.0
        %796 = vmatprep.subr.mxu0 0.0
        %797 = vmatpush2.msra.mxu0 0.0
        %798 = vmatprep.subr.mxu0 0.0
        %799 = vmatpush2.msra.mxu0 0.0
        %800 = vmatprep.subr.mxu0 0.0
        %801 = vmatpush2.msra.mxu0 0.0
        %802 = vmatprep.mubr.f32.mxu0 0.0
        %803 = vmatmul.mubr.f32.gmra.mxu0 %v558
        %v804 = vpop.f32.mrf.mxu0
        %v805 = vadd.f32 %v722, %v804
        %v806 = vpop.f32.mrf.mxu0
        %807 = vmatprep.mubr.f32.mxu0 0.0
        %808 = vmatmul.mubr.f32.gmra.mxu0 %v560
        %v809 = vpop.f32.mrf.mxu0
        %v810 = vadd.f32 %v727, %v809
        %v811 = vpop.f32.mrf.mxu0
        %812 = vmatprep.mubr.f32.mxu0 0.0
        %813 = vmatmul.mubr.f32.gmra.mxu0 %v562
        %v814 = vpop.f32.mrf.mxu0
        %v815 = vadd.f32 %v732, %v814
        %v816 = vpop.f32.mrf.mxu0
        %817 = vdwg.mxu0
        %s818 = scalar_lea.vmem %s1, 64
        %v819 = vld [vmem:[%s818] sm:$0xff]
        %v820 = vld [vmem:[%s818 + $0x8] sm:$0xff]
        %v821 = vld [vmem:[%s818 + $0x10] sm:$0xff]
        %v822 = vld [vmem:[%s818 + $0x18] sm:$0xf]
        %vm823 = vcmask 1045504
        %v824 = vrot.slane %v438, 2
        %v825 = vrot.slane %v439, 2
        %v826 = vsel %vm823, %v824, %v825
        %v827 = vrot.slane %v440, 2
        %v828 = vsel %vm823, %v825, %v827
        %v829 = vrot.slane %v441, 2
        %v830 = vsel %vm823, %v827, %v829
        %v831 = vsel %vm467, %v826, 0
        %v833 = vsel %vm467, %v828, 0
        %v835 = vsel %vm467, %v830, 0
        %v838 = vsel %vm474, %v822, 0
        %840 = vmatprep.subr.mxu0 0.0
        %841 = vmatpush1.msra.mxu0 0.0
        %842 = vmatprep.subr.mxu0 0.0
        %843 = vmatpush1.msra.mxu0 0.0
        %844 = vmatprep.subr.mxu0 0.0
        %845 = vmatpush1.msra.mxu0 0.0
        %846 = vmatprep.subr.mxu0 0.0
        %847 = vmatpush1.msra.mxu0 0.0
        %848 = vmatprep.subr.mxu0 0.0
        %849 = vmatpush1.msra.mxu0 0.0
        %850 = vmatprep.subr.mxu0 0.0
        %851 = vmatpush1.msra.mxu0 0.0
        %852 = vmatprep.subr.mxu0 0.0
        %853 = vmatpush1.msra.mxu0 0.0
        %854 = vmatprep.subr.mxu0 0.0
        %855 = vmatpush1.msra.mxu0 0.0
        %856 = vmatprep.subr.mxu0 0.0
        %857 = vmatpush1.msra.mxu0 0.0
        %858 = vmatprep.subr.mxu0 0.0
        %859 = vmatpush1.msra.mxu0 0.0
        %860 = vmatprep.subr.mxu0 0.0
        %861 = vmatpush1.msra.mxu0 0.0
        %862 = vmatprep.subr.mxu0 0.0
        %863 = vmatpush1.msra.mxu0 0.0
        %864 = vmatprep.subr.mxu0 0.0
        %865 = vmatpush1.msra.mxu0 %v838
        %866 = vmatprep.subr.mxu0 0.0
        %867 = vmatpush1.msra.mxu0 %v821
        %868 = vmatprep.subr.mxu0 0.0
        %869 = vmatpush1.msra.mxu0 %v820
        %870 = vmatprep.subr.mxu0 0.0
        %871 = vmatpush1.msra.mxu0 %v819
        %872 = vmatprep.subr.mxu0 0.0
        %873 = vmatpush2.msra.mxu0 0.0
        %874 = vmatprep.subr.mxu0 0.0
        %875 = vmatpush2.msra.mxu0 0.0
        %876 = vmatprep.subr.mxu0 0.0
        %877 = vmatpush2.msra.mxu0 0.0
        %878 = vmatprep.subr.mxu0 0.0
        %879 = vmatpush2.msra.mxu0 0.0
        %880 = vmatprep.subr.mxu0 0.0
        %881 = vmatpush2.msra.mxu0 0.0
        %882 = vmatprep.subr.mxu0 0.0
        %883 = vmatpush2.msra.mxu0 0.0
        %884 = vmatprep.subr.mxu0 0.0
        %885 = vmatpush2.msra.mxu0 0.0
        %886 = vmatprep.subr.mxu0 0.0
        %887 = vmatpush2.msra.mxu0 0.0
        %888 = vmatprep.subr.mxu0 0.0
        %889 = vmatpush2.msra.mxu0 0.0
        %890 = vmatprep.subr.mxu0 0.0
        %891 = vmatpush2.msra.mxu0 0.0
        %892 = vmatprep.subr.mxu0 0.0
        %893 = vmatpush2.msra.mxu0 0.0
        %894 = vmatprep.subr.mxu0 0.0
        %895 = vmatpush2.msra.mxu0 0.0
        %896 = vmatprep.subr.mxu0 0.0
        %897 = vmatpush2.msra.mxu0 0.0
        %898 = vmatprep.subr.mxu0 0.0
        %899 = vmatpush2.msra.mxu0 0.0
        %900 = vmatprep.subr.mxu0 0.0
        %901 = vmatpush2.msra.mxu0 0.0
        %902 = vmatprep.subr.mxu0 0.0
        %903 = vmatpush2.msra.mxu0 0.0
        %904 = vmatprep.mubr.f32.mxu0 0.0
        %905 = vmatmul.mubr.f32.gmra.mxu0 %v831
        %v906 = vpop.f32.mrf.mxu0
        %v907 = vadd.f32 0.0, %v906
        %v908 = vpop.f32.mrf.mxu0
        %909 = vmatprep.mubr.f32.mxu0 0.0
        %910 = vmatmul.mubr.f32.gmra.mxu0 %v833
        %v911 = vpop.f32.mrf.mxu0
        %v912 = vadd.f32 0.0, %v911
        %v913 = vpop.f32.mrf.mxu0
        %914 = vmatprep.mubr.f32.mxu0 0.0
        %915 = vmatmul.mubr.f32.gmra.mxu0 %v835
        %v916 = vpop.f32.mrf.mxu0
        %v917 = vadd.f32 0.0, %v916
        %v918 = vpop.f32.mrf.mxu0
        %919 = vdwg.mxu0
        %v920 = vadd.f32 %v634, %v907
        %v921 = vadd.f32 %v639, %v912
        %v922 = vadd.f32 %v644, %v917
        %s923 = scalar_lea.vmem %s2, 64
        %v924 = vld [vmem:[%s923] sm:$0xff]
        %v925 = vld [vmem:[%s923 + $0x8] sm:$0xff]
        %v926 = vld [vmem:[%s923 + $0x10] sm:$0xff]
        %v927 = vld [vmem:[%s923 + $0x18] sm:$0xf]
        %v929 = vsel %vm474, %v927, 0
        %931 = vmatprep.subr.mxu0 0.0
        %932 = vmatpush1.msra.mxu0 0.0
        %933 = vmatprep.subr.mxu0 0.0
        %934 = vmatpush1.msra.mxu0 0.0
        %935 = vmatprep.subr.mxu0 0.0
        %936 = vmatpush1.msra.mxu0 0.0
        %937 = vmatprep.subr.mxu0 0.0
        %938 = vmatpush1.msra.mxu0 0.0
        %939 = vmatprep.subr.mxu0 0.0
        %940 = vmatpush1.msra.mxu0 0.0
        %941 = vmatprep.subr.mxu0 0.0
        %942 = vmatpush1.msra.mxu0 0.0
        %943 = vmatprep.subr.mxu0 0.0
        %944 = vmatpush1.msra.mxu0 0.0
        %945 = vmatprep.subr.mxu0 0.0
        %946 = vmatpush1.msra.mxu0 0.0
        %947 = vmatprep.subr.mxu0 0.0
        %948 = vmatpush1.msra.mxu0 0.0
        %949 = vmatprep.subr.mxu0 0.0
        %950 = vmatpush1.msra.mxu0 0.0
        %951 = vmatprep.subr.mxu0 0.0
        %952 = vmatpush1.msra.mxu0 0.0
        %953 = vmatprep.subr.mxu0 0.0
        %954 = vmatpush1.msra.mxu0 0.0
        %955 = vmatprep.subr.mxu0 0.0
        %956 = vmatpush1.msra.mxu0 %v929
        %957 = vmatprep.subr.mxu0 0.0
        %958 = vmatpush1.msra.mxu0 %v926
        %959 = vmatprep.subr.mxu0 0.0
        %960 = vmatpush1.msra.mxu0 %v925
        %961 = vmatprep.subr.mxu0 0.0
        %962 = vmatpush1.msra.mxu0 %v924
        %963 = vmatprep.subr.mxu0 0.0
        %964 = vmatpush2.msra.mxu0 0.0
        %965 = vmatprep.subr.mxu0 0.0
        %966 = vmatpush2.msra.mxu0 0.0
        %967 = vmatprep.subr.mxu0 0.0
        %968 = vmatpush2.msra.mxu0 0.0
        %969 = vmatprep.subr.mxu0 0.0
        %970 = vmatpush2.msra.mxu0 0.0
        %971 = vmatprep.subr.mxu0 0.0
        %972 = vmatpush2.msra.mxu0 0.0
        %973 = vmatprep.subr.mxu0 0.0
        %974 = vmatpush2.msra.mxu0 0.0
        %975 = vmatprep.subr.mxu0 0.0
        %976 = vmatpush2.msra.mxu0 0.0
        %977 = vmatprep.subr.mxu0 0.0
        %978 = vmatpush2.msra.mxu0 0.0
        %979 = vmatprep.subr.mxu0 0.0
        %980 = vmatpush2.msra.mxu0 0.0
        %981 = vmatprep.subr.mxu0 0.0
        %982 = vmatpush2.msra.mxu0 0.0
        %983 = vmatprep.subr.mxu0 0.0
        %984 = vmatpush2.msra.mxu0 0.0
        %985 = vmatprep.subr.mxu0 0.0
        %986 = vmatpush2.msra.mxu0 0.0
        %987 = vmatprep.subr.mxu0 0.0
        %988 = vmatpush2.msra.mxu0 0.0
        %989 = vmatprep.subr.mxu0 0.0
        %990 = vmatpush2.msra.mxu0 0.0
        %991 = vmatprep.subr.mxu0 0.0
        %992 = vmatpush2.msra.mxu0 0.0
        %993 = vmatprep.subr.mxu0 0.0
        %994 = vmatpush2.msra.mxu0 0.0
        %995 = vmatprep.mubr.f32.mxu0 0.0
        %996 = vmatmul.mubr.f32.gmra.mxu0 %v831
        %v997 = vpop.f32.mrf.mxu0
        %v998 = vadd.f32 0.0, %v997
        %v999 = vpop.f32.mrf.mxu0
        %1000 = vmatprep.mubr.f32.mxu0 0.0
        %1001 = vmatmul.mubr.f32.gmra.mxu0 %v833
        %v1002 = vpop.f32.mrf.mxu0
        %v1003 = vadd.f32 0.0, %v1002
        %v1004 = vpop.f32.mrf.mxu0
        %1005 = vmatprep.mubr.f32.mxu0 0.0
        %1006 = vmatmul.mubr.f32.gmra.mxu0 %v835
        %v1007 = vpop.f32.mrf.mxu0
        %v1008 = vadd.f32 0.0, %v1007
        %v1009 = vpop.f32.mrf.mxu0
        %1010 = vdwg.mxu0
        %v1011 = vadd.f32 %v805, %v998
        %v1012 = vadd.f32 %v810, %v1003
        %v1013 = vadd.f32 %v815, %v1008
        %s1014 = scalar_lea.vmem %s1, 96
        %v1015 = vld [vmem:[%s1014] sm:$0xff]
        %v1016 = vld [vmem:[%s1014 + $0x8] sm:$0xff]
        %v1017 = vld [vmem:[%s1014 + $0x10] sm:$0xff]
        %v1018 = vld [vmem:[%s1014 + $0x18] sm:$0xf]
        %vm1019 = vcmask 1044480
        %v1020 = vrot.slane %v438, 3
        %v1021 = vrot.slane %v439, 3
        %v1022 = vsel %vm1019, %v1020, %v1021
        %v1023 = vrot.slane %v440, 3
        %v1024 = vsel %vm1019, %v1021, %v1023
        %v1025 = vrot.slane %v441, 3
        %v1026 = vsel %vm1019, %v1023, %v1025
        %v1027 = vsel %vm467, %v1022, 0
        %v1029 = vsel %vm467, %v1024, 0
        %v1031 = vsel %vm467, %v1026, 0
        %v1034 = vsel %vm474, %v1018, 0
        %1036 = vmatprep.subr.mxu0 0.0
        %1037 = vmatpush1.msra.mxu0 0.0
        %1038 = vmatprep.subr.mxu0 0.0
        %1039 = vmatpush1.msra.mxu0 0.0
        %1040 = vmatprep.subr.mxu0 0.0
        %1041 = vmatpush1.msra.mxu0 0.0
        %1042 = vmatprep.subr.mxu0 0.0
        %1043 = vmatpush1.msra.mxu0 0.0
        %1044 = vmatprep.subr.mxu0 0.0
        %1045 = vmatpush1.msra.mxu0 0.0
        %1046 = vmatprep.subr.mxu0 0.0
        %1047 = vmatpush1.msra.mxu0 0.0
        %1048 = vmatprep.subr.mxu0 0.0
        %1049 = vmatpush1.msra.mxu0 0.0
        %1050 = vmatprep.subr.mxu0 0.0
        %1051 = vmatpush1.msra.mxu0 0.0
        %1052 = vmatprep.subr.mxu0 0.0
        %1053 = vmatpush1.msra.mxu0 0.0
        %1054 = vmatprep.subr.mxu0 0.0
        %1055 = vmatpush1.msra.mxu0 0.0
        %1056 = vmatprep.subr.mxu0 0.0
        %1057 = vmatpush1.msra.mxu0 0.0
        %1058 = vmatprep.subr.mxu0 0.0
        %1059 = vmatpush1.msra.mxu0 0.0
        %1060 = vmatprep.subr.mxu0 0.0
        %1061 = vmatpush1.msra.mxu0 %v1034
        %1062 = vmatprep.subr.mxu0 0.0
        %1063 = vmatpush1.msra.mxu0 %v1017
        %1064 = vmatprep.subr.mxu0 0.0
        %1065 = vmatpush1.msra.mxu0 %v1016
        %1066 = vmatprep.subr.mxu0 0.0
        %1067 = vmatpush1.msra.mxu0 %v1015
        %1068 = vmatprep.subr.mxu0 0.0
        %1069 = vmatpush2.msra.mxu0 0.0
        %1070 = vmatprep.subr.mxu0 0.0
        %1071 = vmatpush2.msra.mxu0 0.0
        %1072 = vmatprep.subr.mxu0 0.0
        %1073 = vmatpush2.msra.mxu0 0.0
        %1074 = vmatprep.subr.mxu0 0.0
        %1075 = vmatpush2.msra.mxu0 0.0
        %1076 = vmatprep.subr.mxu0 0.0
        %1077 = vmatpush2.msra.mxu0 0.0
        %1078 = vmatprep.subr.mxu0 0.0
        %1079 = vmatpush2.msra.mxu0 0.0
        %1080 = vmatprep.subr.mxu0 0.0
        %1081 = vmatpush2.msra.mxu0 0.0
        %1082 = vmatprep.subr.mxu0 0.0
        %1083 = vmatpush2.msra.mxu0 0.0
        %1084 = vmatprep.subr.mxu0 0.0
        %1085 = vmatpush2.msra.mxu0 0.0
        %1086 = vmatprep.subr.mxu0 0.0
        %1087 = vmatpush2.msra.mxu0 0.0
        %1088 = vmatprep.subr.mxu0 0.0
        %1089 = vmatpush2.msra.mxu0 0.0
        %1090 = vmatprep.subr.mxu0 0.0
        %1091 = vmatpush2.msra.mxu0 0.0
        %1092 = vmatprep.subr.mxu0 0.0
        %1093 = vmatpush2.msra.mxu0 0.0
        %1094 = vmatprep.subr.mxu0 0.0
        %1095 = vmatpush2.msra.mxu0 0.0
        %1096 = vmatprep.subr.mxu0 0.0
        %1097 = vmatpush2.msra.mxu0 0.0
        %1098 = vmatprep.subr.mxu0 0.0
        %1099 = vmatpush2.msra.mxu0 0.0
        %1100 = vmatprep.mubr.f32.mxu0 0.0
        %1101 = vmatmul.mubr.f32.gmra.mxu0 %v1027
        %v1102 = vpop.f32.mrf.mxu0
        %v1103 = vadd.f32 0.0, %v1102
        %v1104 = vpop.f32.mrf.mxu0
        %1105 = vmatprep.mubr.f32.mxu0 0.0
        %1106 = vmatmul.mubr.f32.gmra.mxu0 %v1029
        %v1107 = vpop.f32.mrf.mxu0
        %v1108 = vadd.f32 0.0, %v1107
        %v1109 = vpop.f32.mrf.mxu0
        %1110 = vmatprep.mubr.f32.mxu0 0.0
        %1111 = vmatmul.mubr.f32.gmra.mxu0 %v1031
        %v1112 = vpop.f32.mrf.mxu0
        %v1113 = vadd.f32 0.0, %v1112
        %v1114 = vpop.f32.mrf.mxu0
        %1115 = vdwg.mxu0
        %v1116 = vadd.f32 %v920, %v1103
        %v1117 = vadd.f32 %v921, %v1108
        %v1118 = vadd.f32 %v922, %v1113
        %s1119 = scalar_lea.vmem %s2, 96
        %v1120 = vld [vmem:[%s1119] sm:$0xff]
        %v1121 = vld [vmem:[%s1119 + $0x8] sm:$0xff]
        %v1122 = vld [vmem:[%s1119 + $0x10] sm:$0xff]
        %v1123 = vld [vmem:[%s1119 + $0x18] sm:$0xf]
        %v1125 = vsel %vm474, %v1123, 0
        %1127 = vmatprep.subr.mxu0 0.0
        %1128 = vmatpush1.msra.mxu0 0.0
        %1129 = vmatprep.subr.mxu0 0.0
        %1130 = vmatpush1.msra.mxu0 0.0
        %1131 = vmatprep.subr.mxu0 0.0
        %1132 = vmatpush1.msra.mxu0 0.0
        %1133 = vmatprep.subr.mxu0 0.0
        %1134 = vmatpush1.msra.mxu0 0.0
        %1135 = vmatprep.subr.mxu0 0.0
        %1136 = vmatpush1.msra.mxu0 0.0
        %1137 = vmatprep.subr.mxu0 0.0
        %1138 = vmatpush1.msra.mxu0 0.0
        %1139 = vmatprep.subr.mxu0 0.0
        %1140 = vmatpush1.msra.mxu0 0.0
        %1141 = vmatprep.subr.mxu0 0.0
        %1142 = vmatpush1.msra.mxu0 0.0
        %1143 = vmatprep.subr.mxu0 0.0
        %1144 = vmatpush1.msra.mxu0 0.0
        %1145 = vmatprep.subr.mxu0 0.0
        %1146 = vmatpush1.msra.mxu0 0.0
        %1147 = vmatprep.subr.mxu0 0.0
        %1148 = vmatpush1.msra.mxu0 0.0
        %1149 = vmatprep.subr.mxu0 0.0
        %1150 = vmatpush1.msra.mxu0 0.0
        %1151 = vmatprep.subr.mxu0 0.0
        %1152 = vmatpush1.msra.mxu0 %v1125
        %1153 = vmatprep.subr.mxu0 0.0
        %1154 = vmatpush1.msra.mxu0 %v1122
        %1155 = vmatprep.subr.mxu0 0.0
        %1156 = vmatpush1.msra.mxu0 %v1121
        %1157 = vmatprep.subr.mxu0 0.0
        %1158 = vmatpush1.msra.mxu0 %v1120
        %1159 = vmatprep.subr.mxu0 0.0
        %1160 = vmatpush2.msra.mxu0 0.0
        %1161 = vmatprep.subr.mxu0 0.0
        %1162 = vmatpush2.msra.mxu0 0.0
        %1163 = vmatprep.subr.mxu0 0.0
        %1164 = vmatpush2.msra.mxu0 0.0
        %1165 = vmatprep.subr.mxu0 0.0
        %1166 = vmatpush2.msra.mxu0 0.0
        %1167 = vmatprep.subr.mxu0 0.0
        %1168 = vmatpush2.msra.mxu0 0.0
        %1169 = vmatprep.subr.mxu0 0.0
        %1170 = vmatpush2.msra.mxu0 0.0
        %1171 = vmatprep.subr.mxu0 0.0
        %1172 = vmatpush2.msra.mxu0 0.0
        %1173 = vmatprep.subr.mxu0 0.0
        %1174 = vmatpush2.msra.mxu0 0.0
        %1175 = vmatprep.subr.mxu0 0.0
        %1176 = vmatpush2.msra.mxu0 0.0
        %1177 = vmatprep.subr.mxu0 0.0
        %1178 = vmatpush2.msra.mxu0 0.0
        %1179 = vmatprep.subr.mxu0 0.0
        %1180 = vmatpush2.msra.mxu0 0.0
        %1181 = vmatprep.subr.mxu0 0.0
        %1182 = vmatpush2.msra.mxu0 0.0
        %1183 = vmatprep.subr.mxu0 0.0
        %1184 = vmatpush2.msra.mxu0 0.0
        %1185 = vmatprep.subr.mxu0 0.0
        %1186 = vmatpush2.msra.mxu0 0.0
        %1187 = vmatprep.subr.mxu0 0.0
        %1188 = vmatpush2.msra.mxu0 0.0
        %1189 = vmatprep.subr.mxu0 0.0
        %1190 = vmatpush2.msra.mxu0 0.0
        %1191 = vmatprep.mubr.f32.mxu0 0.0
        %1192 = vmatmul.mubr.f32.gmra.mxu0 %v1027
        %v1193 = vpop.f32.mrf.mxu0
        %v1194 = vadd.f32 0.0, %v1193
        %v1195 = vpop.f32.mrf.mxu0
        %1196 = vmatprep.mubr.f32.mxu0 0.0
        %1197 = vmatmul.mubr.f32.gmra.mxu0 %v1029
        %v1198 = vpop.f32.mrf.mxu0
        %v1199 = vadd.f32 0.0, %v1198
        %v1200 = vpop.f32.mrf.mxu0
        %1201 = vmatprep.mubr.f32.mxu0 0.0
        %1202 = vmatmul.mubr.f32.gmra.mxu0 %v1031
        %v1203 = vpop.f32.mrf.mxu0
        %v1204 = vadd.f32 0.0, %v1203
        %v1205 = vpop.f32.mrf.mxu0
        %1206 = vdwg.mxu0
        %v1207 = vadd.f32 %v1011, %v1194
        %v1208 = vadd.f32 %v1012, %v1199
        %v1209 = vadd.f32 %v1013, %v1204
        %s1210 = scalar_lea.vmem %s1, 128
        %v1211 = vld [vmem:[%s1210] sm:$0xff]
        %v1212 = vld [vmem:[%s1210 + $0x8] sm:$0xff]
        %v1213 = vld [vmem:[%s1210 + $0x10] sm:$0xff]
        %v1214 = vld [vmem:[%s1210 + $0x18] sm:$0xf]
        %v1215 = vrot.slane %v438, 4
        %v1216 = vrot.slane %v439, 4
        %v1217 = vsel %vm474, %v1215, %v1216
        %v1218 = vrot.slane %v440, 4
        %v1219 = vsel %vm474, %v1216, %v1218
        %v1220 = vrot.slane %v441, 4
        %v1221 = vsel %vm474, %v1218, %v1220
        %v1222 = vsel %vm467, %v1217, 0
        %v1224 = vsel %vm467, %v1219, 0
        %v1226 = vsel %vm467, %v1221, 0
        %v1229 = vsel %vm474, %v1214, 0
        %1231 = vmatprep.subr.mxu0 0.0
        %1232 = vmatpush1.msra.mxu0 0.0
        %1233 = vmatprep.subr.mxu0 0.0
        %1234 = vmatpush1.msra.mxu0 0.0
        %1235 = vmatprep.subr.mxu0 0.0
        %1236 = vmatpush1.msra.mxu0 0.0
        %1237 = vmatprep.subr.mxu0 0.0
        %1238 = vmatpush1.msra.mxu0 0.0
        %1239 = vmatprep.subr.mxu0 0.0
        %1240 = vmatpush1.msra.mxu0 0.0
        %1241 = vmatprep.subr.mxu0 0.0
        %1242 = vmatpush1.msra.mxu0 0.0
        %1243 = vmatprep.subr.mxu0 0.0
        %1244 = vmatpush1.msra.mxu0 0.0
        %1245 = vmatprep.subr.mxu0 0.0
        %1246 = vmatpush1.msra.mxu0 0.0
        %1247 = vmatprep.subr.mxu0 0.0
        %1248 = vmatpush1.msra.mxu0 0.0
        %1249 = vmatprep.subr.mxu0 0.0
        %1250 = vmatpush1.msra.mxu0 0.0
        %1251 = vmatprep.subr.mxu0 0.0
        %1252 = vmatpush1.msra.mxu0 0.0
        %1253 = vmatprep.subr.mxu0 0.0
        %1254 = vmatpush1.msra.mxu0 0.0
        %1255 = vmatprep.subr.mxu0 0.0
        %1256 = vmatpush1.msra.mxu0 %v1229
        %1257 = vmatprep.subr.mxu0 0.0
        %1258 = vmatpush1.msra.mxu0 %v1213
        %1259 = vmatprep.subr.mxu0 0.0
        %1260 = vmatpush1.msra.mxu0 %v1212
        %1261 = vmatprep.subr.mxu0 0.0
        %1262 = vmatpush1.msra.mxu0 %v1211
        %1263 = vmatprep.subr.mxu0 0.0
        %1264 = vmatpush2.msra.mxu0 0.0
        %1265 = vmatprep.subr.mxu0 0.0
        %1266 = vmatpush2.msra.mxu0 0.0
        %1267 = vmatprep.subr.mxu0 0.0
        %1268 = vmatpush2.msra.mxu0 0.0
        %1269 = vmatprep.subr.mxu0 0.0
        %1270 = vmatpush2.msra.mxu0 0.0
        %1271 = vmatprep.subr.mxu0 0.0
        %1272 = vmatpush2.msra.mxu0 0.0
        %1273 = vmatprep.subr.mxu0 0.0
        %1274 = vmatpush2.msra.mxu0 0.0
        %1275 = vmatprep.subr.mxu0 0.0
        %1276 = vmatpush2.msra.mxu0 0.0
        %1277 = vmatprep.subr.mxu0 0.0
        %1278 = vmatpush2.msra.mxu0 0.0
        %1279 = vmatprep.subr.mxu0 0.0
        %1280 = vmatpush2.msra.mxu0 0.0
        %1281 = vmatprep.subr.mxu0 0.0
        %1282 = vmatpush2.msra.mxu0 0.0
        %1283 = vmatprep.subr.mxu0 0.0
        %1284 = vmatpush2.msra.mxu0 0.0
        %1285 = vmatprep.subr.mxu0 0.0
        %1286 = vmatpush2.msra.mxu0 0.0
        %1287 = vmatprep.subr.mxu0 0.0
        %1288 = vmatpush2.msra.mxu0 0.0
        %1289 = vmatprep.subr.mxu0 0.0
        %1290 = vmatpush2.msra.mxu0 0.0
        %1291 = vmatprep.subr.mxu0 0.0
        %1292 = vmatpush2.msra.mxu0 0.0
        %1293 = vmatprep.subr.mxu0 0.0
        %1294 = vmatpush2.msra.mxu0 0.0
        %1295 = vmatprep.mubr.f32.mxu0 0.0
        %1296 = vmatmul.mubr.f32.gmra.mxu0 %v1222
        %v1297 = vpop.f32.mrf.mxu0
        %v1298 = vadd.f32 0.0, %v1297
        %v1299 = vpop.f32.mrf.mxu0
        %1300 = vmatprep.mubr.f32.mxu0 0.0
        %1301 = vmatmul.mubr.f32.gmra.mxu0 %v1224
        %v1302 = vpop.f32.mrf.mxu0
        %v1303 = vadd.f32 0.0, %v1302
        %v1304 = vpop.f32.mrf.mxu0
        %1305 = vmatprep.mubr.f32.mxu0 0.0
        %1306 = vmatmul.mubr.f32.gmra.mxu0 %v1226
        %v1307 = vpop.f32.mrf.mxu0
        %v1308 = vadd.f32 0.0, %v1307
        %v1309 = vpop.f32.mrf.mxu0
        %1310 = vdwg.mxu0
        %v1311 = vadd.f32 %v1116, %v1298
        %v1312 = vadd.f32 %v1117, %v1303
        %v1313 = vadd.f32 %v1118, %v1308
        %s1314 = scalar_lea.vmem %s2, 128
        %v1315 = vld [vmem:[%s1314] sm:$0xff]
        %v1316 = vld [vmem:[%s1314 + $0x8] sm:$0xff]
        %v1317 = vld [vmem:[%s1314 + $0x10] sm:$0xff]
        %v1318 = vld [vmem:[%s1314 + $0x18] sm:$0xf]
        %v1320 = vsel %vm474, %v1318, 0
        %1322 = vmatprep.subr.mxu0 0.0
        %1323 = vmatpush1.msra.mxu0 0.0
        %1324 = vmatprep.subr.mxu0 0.0
        %1325 = vmatpush1.msra.mxu0 0.0
        %1326 = vmatprep.subr.mxu0 0.0
        %1327 = vmatpush1.msra.mxu0 0.0
        %1328 = vmatprep.subr.mxu0 0.0
        %1329 = vmatpush1.msra.mxu0 0.0
        %1330 = vmatprep.subr.mxu0 0.0
        %1331 = vmatpush1.msra.mxu0 0.0
        %1332 = vmatprep.subr.mxu0 0.0
        %1333 = vmatpush1.msra.mxu0 0.0
        %1334 = vmatprep.subr.mxu0 0.0
        %1335 = vmatpush1.msra.mxu0 0.0
        %1336 = vmatprep.subr.mxu0 0.0
        %1337 = vmatpush1.msra.mxu0 0.0
        %1338 = vmatprep.subr.mxu0 0.0
        %1339 = vmatpush1.msra.mxu0 0.0
        %1340 = vmatprep.subr.mxu0 0.0
        %1341 = vmatpush1.msra.mxu0 0.0
        %1342 = vmatprep.subr.mxu0 0.0
        %1343 = vmatpush1.msra.mxu0 0.0
        %1344 = vmatprep.subr.mxu0 0.0
        %1345 = vmatpush1.msra.mxu0 0.0
        %1346 = vmatprep.subr.mxu0 0.0
        %1347 = vmatpush1.msra.mxu0 %v1320
        %1348 = vmatprep.subr.mxu0 0.0
        %1349 = vmatpush1.msra.mxu0 %v1317
        %1350 = vmatprep.subr.mxu0 0.0
        %1351 = vmatpush1.msra.mxu0 %v1316
        %1352 = vmatprep.subr.mxu0 0.0
        %1353 = vmatpush1.msra.mxu0 %v1315
        %1354 = vmatprep.subr.mxu0 0.0
        %1355 = vmatpush2.msra.mxu0 0.0
        %1356 = vmatprep.subr.mxu0 0.0
        %1357 = vmatpush2.msra.mxu0 0.0
        %1358 = vmatprep.subr.mxu0 0.0
        %1359 = vmatpush2.msra.mxu0 0.0
        %1360 = vmatprep.subr.mxu0 0.0
        %1361 = vmatpush2.msra.mxu0 0.0
        %1362 = vmatprep.subr.mxu0 0.0
        %1363 = vmatpush2.msra.mxu0 0.0
        %1364 = vmatprep.subr.mxu0 0.0
        %1365 = vmatpush2.msra.mxu0 0.0
        %1366 = vmatprep.subr.mxu0 0.0
        %1367 = vmatpush2.msra.mxu0 0.0
        %1368 = vmatprep.subr.mxu0 0.0
        %1369 = vmatpush2.msra.mxu0 0.0
        %1370 = vmatprep.subr.mxu0 0.0
        %1371 = vmatpush2.msra.mxu0 0.0
        %1372 = vmatprep.subr.mxu0 0.0
        %1373 = vmatpush2.msra.mxu0 0.0
        %1374 = vmatprep.subr.mxu0 0.0
        %1375 = vmatpush2.msra.mxu0 0.0
        %1376 = vmatprep.subr.mxu0 0.0
        %1377 = vmatpush2.msra.mxu0 0.0
        %1378 = vmatprep.subr.mxu0 0.0
        %1379 = vmatpush2.msra.mxu0 0.0
        %1380 = vmatprep.subr.mxu0 0.0
        %1381 = vmatpush2.msra.mxu0 0.0
        %1382 = vmatprep.subr.mxu0 0.0
        %1383 = vmatpush2.msra.mxu0 0.0
        %1384 = vmatprep.subr.mxu0 0.0
        %1385 = vmatpush2.msra.mxu0 0.0
        %1386 = vmatprep.mubr.f32.mxu0 0.0
        %1387 = vmatmul.mubr.f32.gmra.mxu0 %v1222
        %v1388 = vpop.f32.mrf.mxu0
        %v1389 = vadd.f32 0.0, %v1388
        %v1390 = vpop.f32.mrf.mxu0
        %1391 = vmatprep.mubr.f32.mxu0 0.0
        %1392 = vmatmul.mubr.f32.gmra.mxu0 %v1224
        %v1393 = vpop.f32.mrf.mxu0
        %v1394 = vadd.f32 0.0, %v1393
        %v1395 = vpop.f32.mrf.mxu0
        %1396 = vmatprep.mubr.f32.mxu0 0.0
        %1397 = vmatmul.mubr.f32.gmra.mxu0 %v1226
        %v1398 = vpop.f32.mrf.mxu0
        %v1399 = vadd.f32 0.0, %v1398
        %v1400 = vpop.f32.mrf.mxu0
        %1401 = vdwg.mxu0
        %v1402 = vadd.f32 %v1207, %v1389
        %v1403 = vadd.f32 %v1208, %v1394
        %v1404 = vadd.f32 %v1209, %v1399
        %v1405 = vmax.f32 %v1311, %v1402
        %v1406 = vmax.f32 %v1312, %v1403
        %v1407 = vmax.f32 %v1313, %v1404
        %v1408 = vlaneseq
        %v1409 = vshrl.u32 %v1408, 7
        %v1410 = vadd.s32 %v1409, 8
        %v1411 = vlaneseq
        %v1412 = vand.u32 %v1411, 127
        %v1413 = vmul.u32 %v1409, 2
        %v1414 = vmul.u32 %v1410, 2
        %vm1415 = vcmp.eq.s32.totalorder %v1412, %v1413
        %vm1416 = vcmp.eq.s32.totalorder %v1412, %v1414
        %v1417 = vsel %vm1415, 1, 0
        %v1418 = vsel %vm1416, 1, 0
        %v1419 = vcvt.s32.f32 %v1417
        %v1420 = vcvt.s32.f32 %v1418
        %v1421 = vadd.s32 %v1413, 1
        %v1422 = vadd.s32 %v1414, 1
        %vm1423 = vcmp.eq.s32.totalorder %v1412, %v1421
        %vm1424 = vcmp.eq.s32.totalorder %v1412, %v1422
        %v1425 = vsel %vm1423, 1, 0
        %v1426 = vsel %vm1424, 1, 0
        %v1427 = vcvt.s32.f32 %v1425
        %v1428 = vcvt.s32.f32 %v1426
        %vm1429 = vcmask 195584
        %v1431 = vsel %vm1429, %v1419, 0
        %v1434 = vsel %vm1429, %v1420, 0
        %1436 = vmatprep.subr.mxu0 0.0
        %1437 = vmatpush1.msra.mxu0 0.0
        %1438 = vmatprep.subr.mxu0 0.0
        %1439 = vmatpush1.msra.mxu0 0.0
        %1440 = vmatprep.subr.mxu0 0.0
        %1441 = vmatpush1.msra.mxu0 0.0
        %1442 = vmatprep.subr.mxu0 0.0
        %1443 = vmatpush1.msra.mxu0 0.0
        %1444 = vmatprep.subr.mxu0 0.0
        %1445 = vmatpush1.msra.mxu0 0.0
        %1446 = vmatprep.subr.mxu0 0.0
        %1447 = vmatpush1.msra.mxu0 0.0
        %1448 = vmatprep.subr.mxu0 0.0
        %1449 = vmatpush1.msra.mxu0 0.0
        %1450 = vmatprep.subr.mxu0 0.0
        %1451 = vmatpush1.msra.mxu0 0.0
        %1452 = vmatprep.subr.mxu0 0.0
        %1453 = vmatpush1.msra.mxu0 0.0
        %1454 = vmatprep.subr.mxu0 0.0
        %1455 = vmatpush1.msra.mxu0 0.0
        %1456 = vmatprep.subr.mxu0 0.0
        %1457 = vmatpush1.msra.mxu0 0.0
        %1458 = vmatprep.subr.mxu0 0.0
        %1459 = vmatpush1.msra.mxu0 0.0
        %1460 = vmatprep.subr.mxu0 0.0
        %1461 = vmatpush1.msra.mxu0 0.0
        %1462 = vmatprep.subr.mxu0 0.0
        %1463 = vmatpush1.msra.mxu0 %v1407
        %1464 = vmatprep.subr.mxu0 0.0
        %1465 = vmatpush1.msra.mxu0 %v1406
        %1466 = vmatprep.subr.mxu0 0.0
        %1467 = vmatpush1.msra.mxu0 %v1405
        %1468 = vmatprep.subr.mxu0 0.0
        %1469 = vmatpush2.msra.mxu0 0.0
        %1470 = vmatprep.subr.mxu0 0.0
        %1471 = vmatpush2.msra.mxu0 0.0
        %1472 = vmatprep.subr.mxu0 0.0
        %1473 = vmatpush2.msra.mxu0 0.0
        %1474 = vmatprep.subr.mxu0 0.0
        %1475 = vmatpush2.msra.mxu0 0.0
        %1476 = vmatprep.subr.mxu0 0.0
        %1477 = vmatpush2.msra.mxu0 0.0
        %1478 = vmatprep.subr.mxu0 0.0
        %1479 = vmatpush2.msra.mxu0 0.0
        %1480 = vmatprep.subr.mxu0 0.0
        %1481 = vmatpush2.msra.mxu0 0.0
        %1482 = vmatprep.subr.mxu0 0.0
        %1483 = vmatpush2.msra.mxu0 0.0
        %1484 = vmatprep.subr.mxu0 0.0
        %1485 = vmatpush2.msra.mxu0 0.0
        %1486 = vmatprep.subr.mxu0 0.0
        %1487 = vmatpush2.msra.mxu0 0.0
        %1488 = vmatprep.subr.mxu0 0.0
        %1489 = vmatpush2.msra.mxu0 0.0
        %1490 = vmatprep.subr.mxu0 0.0
        %1491 = vmatpush2.msra.mxu0 0.0
        %1492 = vmatprep.subr.mxu0 0.0
        %1493 = vmatpush2.msra.mxu0 0.0
        %1494 = vmatprep.subr.mxu0 0.0
        %1495 = vmatpush2.msra.mxu0 0.0
        %1496 = vmatprep.subr.mxu0 0.0
        %1497 = vmatpush2.msra.mxu0 0.0
        %1498 = vmatprep.subr.mxu0 0.0
        %1499 = vmatpush2.msra.mxu0 0.0
        %1500 = vmatprep.mubr.f32.mxu0 0.0
        %1501 = vmatmul.mubr.f32.gmra.mxu0 %v1431
        %v1502 = vpop.f32.mrf.mxu0
        %v1503 = vadd.f32 0.0, %v1502
        %v1504 = vpop.f32.mrf.mxu0
        %1505 = vmatprep.mubr.f32.mxu0 0.0
        %1506 = vmatmul.mubr.f32.gmra.mxu0 %v1434
        %v1507 = vpop.f32.mrf.mxu0
        %v1508 = vadd.f32 0.0, %v1507
        %v1509 = vpop.f32.mrf.mxu0
        %1510 = vdwg.mxu0
        %v1512 = vsel %vm1429, %v1427, 0
        %v1515 = vsel %vm1429, %v1428, 0
        %1517 = vmatprep.subr.mxu0 0.0
        %1518 = vmatpush1.msra.mxu0 0.0
        %1519 = vmatprep.subr.mxu0 0.0
        %1520 = vmatpush1.msra.mxu0 0.0
        %1521 = vmatprep.subr.mxu0 0.0
        %1522 = vmatpush1.msra.mxu0 0.0
        %1523 = vmatprep.subr.mxu0 0.0
        %1524 = vmatpush1.msra.mxu0 0.0
        %1525 = vmatprep.subr.mxu0 0.0
        %1526 = vmatpush1.msra.mxu0 0.0
        %1527 = vmatprep.subr.mxu0 0.0
        %1528 = vmatpush1.msra.mxu0 0.0
        %1529 = vmatprep.subr.mxu0 0.0
        %1530 = vmatpush1.msra.mxu0 0.0
        %1531 = vmatprep.subr.mxu0 0.0
        %1532 = vmatpush1.msra.mxu0 0.0
        %1533 = vmatprep.subr.mxu0 0.0
        %1534 = vmatpush1.msra.mxu0 0.0
        %1535 = vmatprep.subr.mxu0 0.0
        %1536 = vmatpush1.msra.mxu0 0.0
        %1537 = vmatprep.subr.mxu0 0.0
        %1538 = vmatpush1.msra.mxu0 0.0
        %1539 = vmatprep.subr.mxu0 0.0
        %1540 = vmatpush1.msra.mxu0 0.0
        %1541 = vmatprep.subr.mxu0 0.0
        %1542 = vmatpush1.msra.mxu0 0.0
        %1543 = vmatprep.subr.mxu0 0.0
        %1544 = vmatpush1.msra.mxu0 %v1407
        %1545 = vmatprep.subr.mxu0 0.0
        %1546 = vmatpush1.msra.mxu0 %v1406
        %1547 = vmatprep.subr.mxu0 0.0
        %1548 = vmatpush1.msra.mxu0 %v1405
        %1549 = vmatprep.subr.mxu0 0.0
        %1550 = vmatpush2.msra.mxu0 0.0
        %1551 = vmatprep.subr.mxu0 0.0
        %1552 = vmatpush2.msra.mxu0 0.0
        %1553 = vmatprep.subr.mxu0 0.0
        %1554 = vmatpush2.msra.mxu0 0.0
        %1555 = vmatprep.subr.mxu0 0.0
        %1556 = vmatpush2.msra.mxu0 0.0
        %1557 = vmatprep.subr.mxu0 0.0
        %1558 = vmatpush2.msra.mxu0 0.0
        %1559 = vmatprep.subr.mxu0 0.0
        %1560 = vmatpush2.msra.mxu0 0.0
        %1561 = vmatprep.subr.mxu0 0.0
        %1562 = vmatpush2.msra.mxu0 0.0
        %1563 = vmatprep.subr.mxu0 0.0
        %1564 = vmatpush2.msra.mxu0 0.0
        %1565 = vmatprep.subr.mxu0 0.0
        %1566 = vmatpush2.msra.mxu0 0.0
        %1567 = vmatprep.subr.mxu0 0.0
        %1568 = vmatpush2.msra.mxu0 0.0
        %1569 = vmatprep.subr.mxu0 0.0
        %1570 = vmatpush2.msra.mxu0 0.0
        %1571 = vmatprep.subr.mxu0 0.0
        %1572 = vmatpush2.msra.mxu0 0.0
        %1573 = vmatprep.subr.mxu0 0.0
        %1574 = vmatpush2.msra.mxu0 0.0
        %1575 = vmatprep.subr.mxu0 0.0
        %1576 = vmatpush2.msra.mxu0 0.0
        %1577 = vmatprep.subr.mxu0 0.0
        %1578 = vmatpush2.msra.mxu0 0.0
        %1579 = vmatprep.subr.mxu0 0.0
        %1580 = vmatpush2.msra.mxu0 0.0
        %1581 = vmatprep.mubr.f32.mxu0 0.0
        %1582 = vmatmul.mubr.f32.gmra.mxu0 %v1512
        %v1583 = vpop.f32.mrf.mxu0
        %v1584 = vadd.f32 0.0, %v1583
        %v1585 = vpop.f32.mrf.mxu0
        %1586 = vmatprep.mubr.f32.mxu0 0.0
        %1587 = vmatmul.mubr.f32.gmra.mxu0 %v1515
        %v1588 = vpop.f32.mrf.mxu0
        %v1589 = vadd.f32 0.0, %v1588
        %v1590 = vpop.f32.mrf.mxu0
        %1591 = vdwg.mxu0
        %v1592 = vmax.f32 %v1503, %v1584
        %v1593 = vmax.f32 %v1508, %v1589
        %v1594 = vld [vmem:[%s3] sm:$0x1]
        %v1596 = vlaneseq
        %v1597 = vshrl.u32 %v1596, 7
        %v1598 = vsub.s32 0, %v1597
        %v1599 = vrot.slane %v1594, %v1598
        %v1601 = vadd.f32 %v1592, %v1599
        %v1602 = vadd.f32 %v1593, %v1599
        %v1603 = vmax.f32 %v1601, 0.0
        %v1604 = vmax.f32 %v1602, 0.0
        %v1605 = vld [vmem:[%s4] sm:$0xff]
        %v1606 = vld [vmem:[%s4 + $0x8] sm:$0xff]
        %v1607 = vld [vmem:[%s4 + $0x10] sm:$0xff]
        %v1608 = vld [vmem:[%s4 + $0x18] sm:$0xff]
        %v1609 = vld [vmem:[%s4 + $0x20] sm:$0xff]
        %v1610 = vld [vmem:[%s4 + $0x28] sm:$0xff]
        %v1611 = vld [vmem:[%s4 + $0x30] sm:$0xff]
        %v1612 = vld [vmem:[%s4 + $0x38] sm:$0xff]
        %v1613 = vld [vmem:[%s4 + $0x40] sm:$0xff]
        %v1614 = vld [vmem:[%s5] sm:$0xff]
        %v1615 = vld [vmem:[%s5 + $0x8] sm:$0xff]
        %v1616 = vld [vmem:[%s5 + $0x10] sm:$0xff]
        %v1617 = vld [vmem:[%s5 + $0x18] sm:$0xff]
        %v1618 = vld [vmem:[%s5 + $0x20] sm:$0xff]
        %v1619 = vld [vmem:[%s5 + $0x28] sm:$0xff]
        %v1620 = vld [vmem:[%s5 + $0x30] sm:$0xff]
        %v1621 = vld [vmem:[%s5 + $0x38] sm:$0xff]
        %v1622 = vld [vmem:[%s5 + $0x40] sm:$0xff]
        %s1623 = scalar_lea.vmem %s4, 72
        %v1624 = vld [vmem:[%s1623] sm:$0xff]
        %v1625 = vld [vmem:[%s1623 + $0x8] sm:$0xff]
        %v1626 = vld [vmem:[%s1623 + $0x10] sm:$0xff]
        %v1627 = vld [vmem:[%s1623 + $0x18] sm:$0xff]
        %v1628 = vld [vmem:[%s1623 + $0x20] sm:$0xff]
        %v1629 = vld [vmem:[%s1623 + $0x28] sm:$0xff]
        %v1630 = vld [vmem:[%s1623 + $0x30] sm:$0xff]
        %v1631 = vld [vmem:[%s1623 + $0x38] sm:$0xff]
        %v1632 = vld [vmem:[%s1623 + $0x40] sm:$0xff]
        %v1635 = vrot.slane %v1603, 1
        %v1636 = vrot.slane %v1604, 1
        %v1637 = vsel %vm459, %v1635, %v1636
        %vm1638 = vcmask 588800
        %v1639 = vsel %vm1638, %v1637, 0
        %1641 = vmatprep.subr.mxu0 0.0
        %1642 = vmatpush1.msra.mxu0 0.0
        %1643 = vmatprep.subr.mxu0 0.0
        %1644 = vmatpush1.msra.mxu0 0.0
        %1645 = vmatprep.subr.mxu0 0.0
        %1646 = vmatpush1.msra.mxu0 0.0
        %1647 = vmatprep.subr.mxu0 0.0
        %1648 = vmatpush1.msra.mxu0 0.0
        %1649 = vmatprep.subr.mxu0 0.0
        %1650 = vmatpush1.msra.mxu0 0.0
        %1651 = vmatprep.subr.mxu0 0.0
        %1652 = vmatpush1.msra.mxu0 0.0
        %1653 = vmatprep.subr.mxu0 0.0
        %1654 = vmatpush1.msra.mxu0 0.0
        %1655 = vmatprep.subr.mxu0 0.0
        %1656 = vmatpush1.msra.mxu0 %v1632
        %1657 = vmatprep.subr.mxu0 0.0
        %1658 = vmatpush1.msra.mxu0 %v1631
        %1659 = vmatprep.subr.mxu0 0.0
        %1660 = vmatpush1.msra.mxu0 %v1630
        %1661 = vmatprep.subr.mxu0 0.0
        %1662 = vmatpush1.msra.mxu0 %v1629
        %1663 = vmatprep.subr.mxu0 0.0
        %1664 = vmatpush1.msra.mxu0 %v1628
        %1665 = vmatprep.subr.mxu0 0.0
        %1666 = vmatpush1.msra.mxu0 %v1627
        %1667 = vmatprep.subr.mxu0 0.0
        %1668 = vmatpush1.msra.mxu0 %v1626
        %1669 = vmatprep.subr.mxu0 0.0
        %1670 = vmatpush1.msra.mxu0 %v1625
        %1671 = vmatprep.subr.mxu0 0.0
        %1672 = vmatpush1.msra.mxu0 %v1624
        %1673 = vmatprep.subr.mxu0 0.0
        %1674 = vmatpush2.msra.mxu0 0.0
        %1675 = vmatprep.subr.mxu0 0.0
        %1676 = vmatpush2.msra.mxu0 0.0
        %1677 = vmatprep.subr.mxu0 0.0
        %1678 = vmatpush2.msra.mxu0 0.0
        %1679 = vmatprep.subr.mxu0 0.0
        %1680 = vmatpush2.msra.mxu0 0.0
        %1681 = vmatprep.subr.mxu0 0.0
        %1682 = vmatpush2.msra.mxu0 0.0
        %1683 = vmatprep.subr.mxu0 0.0
        %1684 = vmatpush2.msra.mxu0 0.0
        %1685 = vmatprep.subr.mxu0 0.0
        %1686 = vmatpush2.msra.mxu0 0.0
        %1687 = vmatprep.subr.mxu0 0.0
        %1688 = vmatpush2.msra.mxu0 0.0
        %1689 = vmatprep.subr.mxu0 0.0
        %1690 = vmatpush2.msra.mxu0 0.0
        %1691 = vmatprep.subr.mxu0 0.0
        %1692 = vmatpush2.msra.mxu0 0.0
        %1693 = vmatprep.subr.mxu0 0.0
        %1694 = vmatpush2.msra.mxu0 0.0
        %1695 = vmatprep.subr.mxu0 0.0
        %1696 = vmatpush2.msra.mxu0 0.0
        %1697 = vmatprep.subr.mxu0 0.0
        %1698 = vmatpush2.msra.mxu0 0.0
        %1699 = vmatprep.subr.mxu0 0.0
        %1700 = vmatpush2.msra.mxu0 0.0
        %1701 = vmatprep.subr.mxu0 0.0
        %1702 = vmatpush2.msra.mxu0 0.0
        %1703 = vmatprep.subr.mxu0 0.0
        %1704 = vmatpush2.msra.mxu0 0.0
        %1705 = vmatprep.mubr.f32.mxu0 0.0
        %1706 = vmatmul.mubr.f32.gmra.mxu0 %v1639
        %v1707 = vpop.f32.mrf.mxu0
        %v1708 = vadd.f32 0.0, %v1707
        %v1709 = vpop.f32.mrf.mxu0
        %1710 = vdwg.mxu0
        %v1711 = vsel %vm1638, %v1603, 0
        %1713 = vmatprep.subr.mxu0 0.0
        %1714 = vmatpush1.msra.mxu0 0.0
        %1715 = vmatprep.subr.mxu0 0.0
        %1716 = vmatpush1.msra.mxu0 0.0
        %1717 = vmatprep.subr.mxu0 0.0
        %1718 = vmatpush1.msra.mxu0 0.0
        %1719 = vmatprep.subr.mxu0 0.0
        %1720 = vmatpush1.msra.mxu0 0.0
        %1721 = vmatprep.subr.mxu0 0.0
        %1722 = vmatpush1.msra.mxu0 0.0
        %1723 = vmatprep.subr.mxu0 0.0
        %1724 = vmatpush1.msra.mxu0 0.0
        %1725 = vmatprep.subr.mxu0 0.0
        %1726 = vmatpush1.msra.mxu0 0.0
        %1727 = vmatprep.subr.mxu0 0.0
        %1728 = vmatpush1.msra.mxu0 %v1613
        %1729 = vmatprep.subr.mxu0 0.0
        %1730 = vmatpush1.msra.mxu0 %v1612
        %1731 = vmatprep.subr.mxu0 0.0
        %1732 = vmatpush1.msra.mxu0 %v1611
        %1733 = vmatprep.subr.mxu0 0.0
        %1734 = vmatpush1.msra.mxu0 %v1610
        %1735 = vmatprep.subr.mxu0 0.0
        %1736 = vmatpush1.msra.mxu0 %v1609
        %1737 = vmatprep.subr.mxu0 0.0
        %1738 = vmatpush1.msra.mxu0 %v1608
        %1739 = vmatprep.subr.mxu0 0.0
        %1740 = vmatpush1.msra.mxu0 %v1607
        %1741 = vmatprep.subr.mxu0 0.0
        %1742 = vmatpush1.msra.mxu0 %v1606
        %1743 = vmatprep.subr.mxu0 0.0
        %1744 = vmatpush1.msra.mxu0 %v1605
        %1745 = vmatprep.subr.mxu0 0.0
        %1746 = vmatpush2.msra.mxu0 0.0
        %1747 = vmatprep.subr.mxu0 0.0
        %1748 = vmatpush2.msra.mxu0 0.0
        %1749 = vmatprep.subr.mxu0 0.0
        %1750 = vmatpush2.msra.mxu0 0.0
        %1751 = vmatprep.subr.mxu0 0.0
        %1752 = vmatpush2.msra.mxu0 0.0
        %1753 = vmatprep.subr.mxu0 0.0
        %1754 = vmatpush2.msra.mxu0 0.0
        %1755 = vmatprep.subr.mxu0 0.0
        %1756 = vmatpush2.msra.mxu0 0.0
        %1757 = vmatprep.subr.mxu0 0.0
        %1758 = vmatpush2.msra.mxu0 0.0
        %1759 = vmatprep.subr.mxu0 0.0
        %1760 = vmatpush2.msra.mxu0 0.0
        %1761 = vmatprep.subr.mxu0 0.0
        %1762 = vmatpush2.msra.mxu0 0.0
        %1763 = vmatprep.subr.mxu0 0.0
        %1764 = vmatpush2.msra.mxu0 0.0
        %1765 = vmatprep.subr.mxu0 0.0
        %1766 = vmatpush2.msra.mxu0 0.0
        %1767 = vmatprep.subr.mxu0 0.0
        %1768 = vmatpush2.msra.mxu0 0.0
        %1769 = vmatprep.subr.mxu0 0.0
        %1770 = vmatpush2.msra.mxu0 0.0
        %1771 = vmatprep.subr.mxu0 0.0
        %1772 = vmatpush2.msra.mxu0 0.0
        %1773 = vmatprep.subr.mxu0 0.0
        %1774 = vmatpush2.msra.mxu0 0.0
        %1775 = vmatprep.subr.mxu0 0.0
        %1776 = vmatpush2.msra.mxu0 0.0
        %1777 = vmatprep.mubr.f32.mxu0 0.0
        %1778 = vmatmul.mubr.f32.gmra.mxu0 %v1711
        %v1779 = vpop.f32.mrf.mxu0
        %v1780 = vadd.f32 %v1708, %v1779
        %v1781 = vpop.f32.mrf.mxu0
        %1782 = vdwg.mxu0
        %s1783 = scalar_lea.vmem %s5, 72
        %v1784 = vld [vmem:[%s1783] sm:$0xff]
        %v1785 = vld [vmem:[%s1783 + $0x8] sm:$0xff]
        %v1786 = vld [vmem:[%s1783 + $0x10] sm:$0xff]
        %v1787 = vld [vmem:[%s1783 + $0x18] sm:$0xff]
        %v1788 = vld [vmem:[%s1783 + $0x20] sm:$0xff]
        %v1789 = vld [vmem:[%s1783 + $0x28] sm:$0xff]
        %v1790 = vld [vmem:[%s1783 + $0x30] sm:$0xff]
        %v1791 = vld [vmem:[%s1783 + $0x38] sm:$0xff]
        %v1792 = vld [vmem:[%s1783 + $0x40] sm:$0xff]
        %1793 = vmatprep.subr.mxu0 0.0
        %1794 = vmatpush1.msra.mxu0 0.0
        %1795 = vmatprep.subr.mxu0 0.0
        %1796 = vmatpush1.msra.mxu0 0.0
        %1797 = vmatprep.subr.mxu0 0.0
        %1798 = vmatpush1.msra.mxu0 0.0
        %1799 = vmatprep.subr.mxu0 0.0
        %1800 = vmatpush1.msra.mxu0 0.0
        %1801 = vmatprep.subr.mxu0 0.0
        %1802 = vmatpush1.msra.mxu0 0.0
        %1803 = vmatprep.subr.mxu0 0.0
        %1804 = vmatpush1.msra.mxu0 0.0
        %1805 = vmatprep.subr.mxu0 0.0
        %1806 = vmatpush1.msra.mxu0 0.0
        %1807 = vmatprep.subr.mxu0 0.0
        %1808 = vmatpush1.msra.mxu0 %v1792
        %1809 = vmatprep.subr.mxu0 0.0
        %1810 = vmatpush1.msra.mxu0 %v1791
        %1811 = vmatprep.subr.mxu0 0.0
        %1812 = vmatpush1.msra.mxu0 %v1790
        %1813 = vmatprep.subr.mxu0 0.0
        %1814 = vmatpush1.msra.mxu0 %v1789
        %1815 = vmatprep.subr.mxu0 0.0
        %1816 = vmatpush1.msra.mxu0 %v1788
        %1817 = vmatprep.subr.mxu0 0.0
        %1818 = vmatpush1.msra.mxu0 %v1787
        %1819 = vmatprep.subr.mxu0 0.0
        %1820 = vmatpush1.msra.mxu0 %v1786
        %1821 = vmatprep.subr.mxu0 0.0
        %1822 = vmatpush1.msra.mxu0 %v1785
        %1823 = vmatprep.subr.mxu0 0.0
        %1824 = vmatpush1.msra.mxu0 %v1784
        %1825 = vmatprep.subr.mxu0 0.0
        %1826 = vmatpush2.msra.mxu0 0.0
        %1827 = vmatprep.subr.mxu0 0.0
        %1828 = vmatpush2.msra.mxu0 0.0
        %1829 = vmatprep.subr.mxu0 0.0
        %1830 = vmatpush2.msra.mxu0 0.0
        %1831 = vmatprep.subr.mxu0 0.0
        %1832 = vmatpush2.msra.mxu0 0.0
        %1833 = vmatprep.subr.mxu0 0.0
        %1834 = vmatpush2.msra.mxu0 0.0
        %1835 = vmatprep.subr.mxu0 0.0
        %1836 = vmatpush2.msra.mxu0 0.0
        %1837 = vmatprep.subr.mxu0 0.0
        %1838 = vmatpush2.msra.mxu0 0.0
        %1839 = vmatprep.subr.mxu0 0.0
        %1840 = vmatpush2.msra.mxu0 0.0
        %1841 = vmatprep.subr.mxu0 0.0
        %1842 = vmatpush2.msra.mxu0 0.0
        %1843 = vmatprep.subr.mxu0 0.0
        %1844 = vmatpush2.msra.mxu0 0.0
        %1845 = vmatprep.subr.mxu0 0.0
        %1846 = vmatpush2.msra.mxu0 0.0
        %1847 = vmatprep.subr.mxu0 0.0
        %1848 = vmatpush2.msra.mxu0 0.0
        %1849 = vmatprep.subr.mxu0 0.0
        %1850 = vmatpush2.msra.mxu0 0.0
        %1851 = vmatprep.subr.mxu0 0.0
        %1852 = vmatpush2.msra.mxu0 0.0
        %1853 = vmatprep.subr.mxu0 0.0
        %1854 = vmatpush2.msra.mxu0 0.0
        %1855 = vmatprep.subr.mxu0 0.0
        %1856 = vmatpush2.msra.mxu0 0.0
        %1857 = vmatprep.mubr.f32.mxu0 0.0
        %1858 = vmatmul.mubr.f32.gmra.mxu0 %v1639
        %v1859 = vpop.f32.mrf.mxu0
        %v1860 = vadd.f32 0.0, %v1859
        %v1861 = vpop.f32.mrf.mxu0
        %1862 = vdwg.mxu0
        %1863 = vmatprep.subr.mxu0 0.0
        %1864 = vmatpush1.msra.mxu0 0.0
        %1865 = vmatprep.subr.mxu0 0.0
        %1866 = vmatpush1.msra.mxu0 0.0
        %1867 = vmatprep.subr.mxu0 0.0
        %1868 = vmatpush1.msra.mxu0 0.0
        %1869 = vmatprep.subr.mxu0 0.0
        %1870 = vmatpush1.msra.mxu0 0.0
        %1871 = vmatprep.subr.mxu0 0.0
        %1872 = vmatpush1.msra.mxu0 0.0
        %1873 = vmatprep.subr.mxu0 0.0
        %1874 = vmatpush1.msra.mxu0 0.0
        %1875 = vmatprep.subr.mxu0 0.0
        %1876 = vmatpush1.msra.mxu0 0.0
        %1877 = vmatprep.subr.mxu0 0.0
        %1878 = vmatpush1.msra.mxu0 %v1622
        %1879 = vmatprep.subr.mxu0 0.0
        %1880 = vmatpush1.msra.mxu0 %v1621
        %1881 = vmatprep.subr.mxu0 0.0
        %1882 = vmatpush1.msra.mxu0 %v1620
        %1883 = vmatprep.subr.mxu0 0.0
        %1884 = vmatpush1.msra.mxu0 %v1619
        %1885 = vmatprep.subr.mxu0 0.0
        %1886 = vmatpush1.msra.mxu0 %v1618
        %1887 = vmatprep.subr.mxu0 0.0
        %1888 = vmatpush1.msra.mxu0 %v1617
        %1889 = vmatprep.subr.mxu0 0.0
        %1890 = vmatpush1.msra.mxu0 %v1616
        %1891 = vmatprep.subr.mxu0 0.0
        %1892 = vmatpush1.msra.mxu0 %v1615
        %1893 = vmatprep.subr.mxu0 0.0
        %1894 = vmatpush1.msra.mxu0 %v1614
        %1895 = vmatprep.subr.mxu0 0.0
        %1896 = vmatpush2.msra.mxu0 0.0
        %1897 = vmatprep.subr.mxu0 0.0
        %1898 = vmatpush2.msra.mxu0 0.0
        %1899 = vmatprep.subr.mxu0 0.0
        %1900 = vmatpush2.msra.mxu0 0.0
        %1901 = vmatprep.subr.mxu0 0.0
        %1902 = vmatpush2.msra.mxu0 0.0
        %1903 = vmatprep.subr.mxu0 0.0
        %1904 = vmatpush2.msra.mxu0 0.0
        %1905 = vmatprep.subr.mxu0 0.0
        %1906 = vmatpush2.msra.mxu0 0.0
        %1907 = vmatprep.subr.mxu0 0.0
        %1908 = vmatpush2.msra.mxu0 0.0
        %1909 = vmatprep.subr.mxu0 0.0
        %1910 = vmatpush2.msra.mxu0 0.0
        %1911 = vmatprep.subr.mxu0 0.0
        %1912 = vmatpush2.msra.mxu0 0.0
        %1913 = vmatprep.subr.mxu0 0.0
        %1914 = vmatpush2.msra.mxu0 0.0
        %1915 = vmatprep.subr.mxu0 0.0
        %1916 = vmatpush2.msra.mxu0 0.0
        %1917 = vmatprep.subr.mxu0 0.0
        %1918 = vmatpush2.msra.mxu0 0.0
        %1919 = vmatprep.subr.mxu0 0.0
        %1920 = vmatpush2.msra.mxu0 0.0
        %1921 = vmatprep.subr.mxu0 0.0
        %1922 = vmatpush2.msra.mxu0 0.0
        %1923 = vmatprep.subr.mxu0 0.0
        %1924 = vmatpush2.msra.mxu0 0.0
        %1925 = vmatprep.subr.mxu0 0.0
        %1926 = vmatpush2.msra.mxu0 0.0
        %1927 = vmatprep.mubr.f32.mxu0 0.0
        %1928 = vmatmul.mubr.f32.gmra.mxu0 %v1711
        %v1929 = vpop.f32.mrf.mxu0
        %v1930 = vadd.f32 %v1860, %v1929
        %v1931 = vpop.f32.mrf.mxu0
        %1932 = vdwg.mxu0
        %s1933 = scalar_lea.vmem %s4, 144
        %v1934 = vld [vmem:[%s1933] sm:$0xff]
        %v1935 = vld [vmem:[%s1933 + $0x8] sm:$0xff]
        %v1936 = vld [vmem:[%s1933 + $0x10] sm:$0xff]
        %v1937 = vld [vmem:[%s1933 + $0x18] sm:$0xff]
        %v1938 = vld [vmem:[%s1933 + $0x20] sm:$0xff]
        %v1939 = vld [vmem:[%s1933 + $0x28] sm:$0xff]
        %v1940 = vld [vmem:[%s1933 + $0x30] sm:$0xff]
        %v1941 = vld [vmem:[%s1933 + $0x38] sm:$0xff]
        %v1942 = vld [vmem:[%s1933 + $0x40] sm:$0xff]
        %v1943 = vrot.slane %v1603, 2
        %v1944 = vrot.slane %v1604, 2
        %v1945 = vsel %vm823, %v1943, %v1944
        %v1946 = vsel %vm1638, %v1945, 0
        %1948 = vmatprep.subr.mxu0 0.0
        %1949 = vmatpush1.msra.mxu0 0.0
        %1950 = vmatprep.subr.mxu0 0.0
        %1951 = vmatpush1.msra.mxu0 0.0
        %1952 = vmatprep.subr.mxu0 0.0
        %1953 = vmatpush1.msra.mxu0 0.0
        %1954 = vmatprep.subr.mxu0 0.0
        %1955 = vmatpush1.msra.mxu0 0.0
        %1956 = vmatprep.subr.mxu0 0.0
        %1957 = vmatpush1.msra.mxu0 0.0
        %1958 = vmatprep.subr.mxu0 0.0
        %1959 = vmatpush1.msra.mxu0 0.0
        %1960 = vmatprep.subr.mxu0 0.0
        %1961 = vmatpush1.msra.mxu0 0.0
        %1962 = vmatprep.subr.mxu0 0.0
        %1963 = vmatpush1.msra.mxu0 %v1942
        %1964 = vmatprep.subr.mxu0 0.0
        %1965 = vmatpush1.msra.mxu0 %v1941
        %1966 = vmatprep.subr.mxu0 0.0
        %1967 = vmatpush1.msra.mxu0 %v1940
        %1968 = vmatprep.subr.mxu0 0.0
        %1969 = vmatpush1.msra.mxu0 %v1939
        %1970 = vmatprep.subr.mxu0 0.0
        %1971 = vmatpush1.msra.mxu0 %v1938
        %1972 = vmatprep.subr.mxu0 0.0
        %1973 = vmatpush1.msra.mxu0 %v1937
        %1974 = vmatprep.subr.mxu0 0.0
        %1975 = vmatpush1.msra.mxu0 %v1936
        %1976 = vmatprep.subr.mxu0 0.0
        %1977 = vmatpush1.msra.mxu0 %v1935
        %1978 = vmatprep.subr.mxu0 0.0
        %1979 = vmatpush1.msra.mxu0 %v1934
        %1980 = vmatprep.subr.mxu0 0.0
        %1981 = vmatpush2.msra.mxu0 0.0
        %1982 = vmatprep.subr.mxu0 0.0
        %1983 = vmatpush2.msra.mxu0 0.0
        %1984 = vmatprep.subr.mxu0 0.0
        %1985 = vmatpush2.msra.mxu0 0.0
        %1986 = vmatprep.subr.mxu0 0.0
        %1987 = vmatpush2.msra.mxu0 0.0
        %1988 = vmatprep.subr.mxu0 0.0
        %1989 = vmatpush2.msra.mxu0 0.0
        %1990 = vmatprep.subr.mxu0 0.0
        %1991 = vmatpush2.msra.mxu0 0.0
        %1992 = vmatprep.subr.mxu0 0.0
        %1993 = vmatpush2.msra.mxu0 0.0
        %1994 = vmatprep.subr.mxu0 0.0
        %1995 = vmatpush2.msra.mxu0 0.0
        %1996 = vmatprep.subr.mxu0 0.0
        %1997 = vmatpush2.msra.mxu0 0.0
        %1998 = vmatprep.subr.mxu0 0.0
        %1999 = vmatpush2.msra.mxu0 0.0
        %2000 = vmatprep.subr.mxu0 0.0
        %2001 = vmatpush2.msra.mxu0 0.0
        %2002 = vmatprep.subr.mxu0 0.0
        %2003 = vmatpush2.msra.mxu0 0.0
        %2004 = vmatprep.subr.mxu0 0.0
        %2005 = vmatpush2.msra.mxu0 0.0
        %2006 = vmatprep.subr.mxu0 0.0
        %2007 = vmatpush2.msra.mxu0 0.0
        %2008 = vmatprep.subr.mxu0 0.0
        %2009 = vmatpush2.msra.mxu0 0.0
        %2010 = vmatprep.subr.mxu0 0.0
        %2011 = vmatpush2.msra.mxu0 0.0
        %2012 = vmatprep.mubr.f32.mxu0 0.0
        %2013 = vmatmul.mubr.f32.gmra.mxu0 %v1946
        %v2014 = vpop.f32.mrf.mxu0
        %v2015 = vadd.f32 0.0, %v2014
        %v2016 = vpop.f32.mrf.mxu0
        %2017 = vdwg.mxu0
        %v2018 = vadd.f32 %v1780, %v2015
        %s2019 = scalar_lea.vmem %s5, 144
        %v2020 = vld [vmem:[%s2019] sm:$0xff]
        %v2021 = vld [vmem:[%s2019 + $0x8] sm:$0xff]
        %v2022 = vld [vmem:[%s2019 + $0x10] sm:$0xff]
        %v2023 = vld [vmem:[%s2019 + $0x18] sm:$0xff]
        %v2024 = vld [vmem:[%s2019 + $0x20] sm:$0xff]
        %v2025 = vld [vmem:[%s2019 + $0x28] sm:$0xff]
        %v2026 = vld [vmem:[%s2019 + $0x30] sm:$0xff]
        %v2027 = vld [vmem:[%s2019 + $0x38] sm:$0xff]
        %v2028 = vld [vmem:[%s2019 + $0x40] sm:$0xff]
        %2029 = vmatprep.subr.mxu0 0.0
        %2030 = vmatpush1.msra.mxu0 0.0
        %2031 = vmatprep.subr.mxu0 0.0
        %2032 = vmatpush1.msra.mxu0 0.0
        %2033 = vmatprep.subr.mxu0 0.0
        %2034 = vmatpush1.msra.mxu0 0.0
        %2035 = vmatprep.subr.mxu0 0.0
        %2036 = vmatpush1.msra.mxu0 0.0
        %2037 = vmatprep.subr.mxu0 0.0
        %2038 = vmatpush1.msra.mxu0 0.0
        %2039 = vmatprep.subr.mxu0 0.0
        %2040 = vmatpush1.msra.mxu0 0.0
        %2041 = vmatprep.subr.mxu0 0.0
        %2042 = vmatpush1.msra.mxu0 0.0
        %2043 = vmatprep.subr.mxu0 0.0
        %2044 = vmatpush1.msra.mxu0 %v2028
        %2045 = vmatprep.subr.mxu0 0.0
        %2046 = vmatpush1.msra.mxu0 %v2027
        %2047 = vmatprep.subr.mxu0 0.0
        %2048 = vmatpush1.msra.mxu0 %v2026
        %2049 = vmatprep.subr.mxu0 0.0
        %2050 = vmatpush1.msra.mxu0 %v2025
        %2051 = vmatprep.subr.mxu0 0.0
        %2052 = vmatpush1.msra.mxu0 %v2024
        %2053 = vmatprep.subr.mxu0 0.0
        %2054 = vmatpush1.msra.mxu0 %v2023
        %2055 = vmatprep.subr.mxu0 0.0
        %2056 = vmatpush1.msra.mxu0 %v2022
        %2057 = vmatprep.subr.mxu0 0.0
        %2058 = vmatpush1.msra.mxu0 %v2021
        %2059 = vmatprep.subr.mxu0 0.0
        %2060 = vmatpush1.msra.mxu0 %v2020
        %2061 = vmatprep.subr.mxu0 0.0
        %2062 = vmatpush2.msra.mxu0 0.0
        %2063 = vmatprep.subr.mxu0 0.0
        %2064 = vmatpush2.msra.mxu0 0.0
        %2065 = vmatprep.subr.mxu0 0.0
        %2066 = vmatpush2.msra.mxu0 0.0
        %2067 = vmatprep.subr.mxu0 0.0
        %2068 = vmatpush2.msra.mxu0 0.0
        %2069 = vmatprep.subr.mxu0 0.0
        %2070 = vmatpush2.msra.mxu0 0.0
        %2071 = vmatprep.subr.mxu0 0.0
        %2072 = vmatpush2.msra.mxu0 0.0
        %2073 = vmatprep.subr.mxu0 0.0
        %2074 = vmatpush2.msra.mxu0 0.0
        %2075 = vmatprep.subr.mxu0 0.0
        %2076 = vmatpush2.msra.mxu0 0.0
        %2077 = vmatprep.subr.mxu0 0.0
        %2078 = vmatpush2.msra.mxu0 0.0
        %2079 = vmatprep.subr.mxu0 0.0
        %2080 = vmatpush2.msra.mxu0 0.0
        %2081 = vmatprep.subr.mxu0 0.0
        %2082 = vmatpush2.msra.mxu0 0.0
        %2083 = vmatprep.subr.mxu0 0.0
        %2084 = vmatpush2.msra.mxu0 0.0
        %2085 = vmatprep.subr.mxu0 0.0
        %2086 = vmatpush2.msra.mxu0 0.0
        %2087 = vmatprep.subr.mxu0 0.0
        %2088 = vmatpush2.msra.mxu0 0.0
        %2089 = vmatprep.subr.mxu0 0.0
        %2090 = vmatpush2.msra.mxu0 0.0
        %2091 = vmatprep.subr.mxu0 0.0
        %2092 = vmatpush2.msra.mxu0 0.0
        %2093 = vmatprep.mubr.f32.mxu0 0.0
        %2094 = vmatmul.mubr.f32.gmra.mxu0 %v1946
        %v2095 = vpop.f32.mrf.mxu0
        %v2096 = vadd.f32 0.0, %v2095
        %v2097 = vpop.f32.mrf.mxu0
        %2098 = vdwg.mxu0
        %v2099 = vadd.f32 %v1930, %v2096
        %s2100 = scalar_lea.vmem %s4, 216
        %v2101 = vld [vmem:[%s2100] sm:$0xff]
        %v2102 = vld [vmem:[%s2100 + $0x8] sm:$0xff]
        %v2103 = vld [vmem:[%s2100 + $0x10] sm:$0xff]
        %v2104 = vld [vmem:[%s2100 + $0x18] sm:$0xff]
        %v2105 = vld [vmem:[%s2100 + $0x20] sm:$0xff]
        %v2106 = vld [vmem:[%s2100 + $0x28] sm:$0xff]
        %v2107 = vld [vmem:[%s2100 + $0x30] sm:$0xff]
        %v2108 = vld [vmem:[%s2100 + $0x38] sm:$0xff]
        %v2109 = vld [vmem:[%s2100 + $0x40] sm:$0xff]
        %v2110 = vrot.slane %v1603, 3
        %v2111 = vrot.slane %v1604, 3
        %v2112 = vsel %vm1019, %v2110, %v2111
        %v2113 = vsel %vm1638, %v2112, 0
        %2115 = vmatprep.subr.mxu0 0.0
        %2116 = vmatpush1.msra.mxu0 0.0
        %2117 = vmatprep.subr.mxu0 0.0
        %2118 = vmatpush1.msra.mxu0 0.0
        %2119 = vmatprep.subr.mxu0 0.0
        %2120 = vmatpush1.msra.mxu0 0.0
        %2121 = vmatprep.subr.mxu0 0.0
        %2122 = vmatpush1.msra.mxu0 0.0
        %2123 = vmatprep.subr.mxu0 0.0
        %2124 = vmatpush1.msra.mxu0 0.0
        %2125 = vmatprep.subr.mxu0 0.0
        %2126 = vmatpush1.msra.mxu0 0.0
        %2127 = vmatprep.subr.mxu0 0.0
        %2128 = vmatpush1.msra.mxu0 0.0
        %2129 = vmatprep.subr.mxu0 0.0
        %2130 = vmatpush1.msra.mxu0 %v2109
        %2131 = vmatprep.subr.mxu0 0.0
        %2132 = vmatpush1.msra.mxu0 %v2108
        %2133 = vmatprep.subr.mxu0 0.0
        %2134 = vmatpush1.msra.mxu0 %v2107
        %2135 = vmatprep.subr.mxu0 0.0
        %2136 = vmatpush1.msra.mxu0 %v2106
        %2137 = vmatprep.subr.mxu0 0.0
        %2138 = vmatpush1.msra.mxu0 %v2105
        %2139 = vmatprep.subr.mxu0 0.0
        %2140 = vmatpush1.msra.mxu0 %v2104
        %2141 = vmatprep.subr.mxu0 0.0
        %2142 = vmatpush1.msra.mxu0 %v2103
        %2143 = vmatprep.subr.mxu0 0.0
        %2144 = vmatpush1.msra.mxu0 %v2102
        %2145 = vmatprep.subr.mxu0 0.0
        %2146 = vmatpush1.msra.mxu0 %v2101
        %2147 = vmatprep.subr.mxu0 0.0
        %2148 = vmatpush2.msra.mxu0 0.0
        %2149 = vmatprep.subr.mxu0 0.0
        %2150 = vmatpush2.msra.mxu0 0.0
        %2151 = vmatprep.subr.mxu0 0.0
        %2152 = vmatpush2.msra.mxu0 0.0
        %2153 = vmatprep.subr.mxu0 0.0
        %2154 = vmatpush2.msra.mxu0 0.0
        %2155 = vmatprep.subr.mxu0 0.0
        %2156 = vmatpush2.msra.mxu0 0.0
        %2157 = vmatprep.subr.mxu0 0.0
        %2158 = vmatpush2.msra.mxu0 0.0
        %2159 = vmatprep.subr.mxu0 0.0
        %2160 = vmatpush2.msra.mxu0 0.0
        %2161 = vmatprep.subr.mxu0 0.0
        %2162 = vmatpush2.msra.mxu0 0.0
        %2163 = vmatprep.subr.mxu0 0.0
        %2164 = vmatpush2.msra.mxu0 0.0
        %2165 = vmatprep.subr.mxu0 0.0
        %2166 = vmatpush2.msra.mxu0 0.0
        %2167 = vmatprep.subr.mxu0 0.0
        %2168 = vmatpush2.msra.mxu0 0.0
        %2169 = vmatprep.subr.mxu0 0.0
        %2170 = vmatpush2.msra.mxu0 0.0
        %2171 = vmatprep.subr.mxu0 0.0
        %2172 = vmatpush2.msra.mxu0 0.0
        %2173 = vmatprep.subr.mxu0 0.0
        %2174 = vmatpush2.msra.mxu0 0.0
        %2175 = vmatprep.subr.mxu0 0.0
        %2176 = vmatpush2.msra.mxu0 0.0
        %2177 = vmatprep.subr.mxu0 0.0
        %2178 = vmatpush2.msra.mxu0 0.0
        %2179 = vmatprep.mubr.f32.mxu0 0.0
        %2180 = vmatmul.mubr.f32.gmra.mxu0 %v2113
        %v2181 = vpop.f32.mrf.mxu0
        %v2182 = vadd.f32 0.0, %v2181
        %v2183 = vpop.f32.mrf.mxu0
        %2184 = vdwg.mxu0
        %v2185 = vadd.f32 %v2018, %v2182
        %s2186 = scalar_lea.vmem %s5, 216
        %v2187 = vld [vmem:[%s2186] sm:$0xff]
        %v2188 = vld [vmem:[%s2186 + $0x8] sm:$0xff]
        %v2189 = vld [vmem:[%s2186 + $0x10] sm:$0xff]
        %v2190 = vld [vmem:[%s2186 + $0x18] sm:$0xff]
        %v2191 = vld [vmem:[%s2186 + $0x20] sm:$0xff]
        %v2192 = vld [vmem:[%s2186 + $0x28] sm:$0xff]
        %v2193 = vld [vmem:[%s2186 + $0x30] sm:$0xff]
        %v2194 = vld [vmem:[%s2186 + $0x38] sm:$0xff]
        %v2195 = vld [vmem:[%s2186 + $0x40] sm:$0xff]
        %2196 = vmatprep.subr.mxu0 0.0
        %2197 = vmatpush1.msra.mxu0 0.0
        %2198 = vmatprep.subr.mxu0 0.0
        %2199 = vmatpush1.msra.mxu0 0.0
        %2200 = vmatprep.subr.mxu0 0.0
        %2201 = vmatpush1.msra.mxu0 0.0
        %2202 = vmatprep.subr.mxu0 0.0
        %2203 = vmatpush1.msra.mxu0 0.0
        %2204 = vmatprep.subr.mxu0 0.0
        %2205 = vmatpush1.msra.mxu0 0.0
        %2206 = vmatprep.subr.mxu0 0.0
        %2207 = vmatpush1.msra.mxu0 0.0
        %2208 = vmatprep.subr.mxu0 0.0
        %2209 = vmatpush1.msra.mxu0 0.0
        %2210 = vmatprep.subr.mxu0 0.0
        %2211 = vmatpush1.msra.mxu0 %v2195
        %2212 = vmatprep.subr.mxu0 0.0
        %2213 = vmatpush1.msra.mxu0 %v2194
        %2214 = vmatprep.subr.mxu0 0.0
        %2215 = vmatpush1.msra.mxu0 %v2193
        %2216 = vmatprep.subr.mxu0 0.0
        %2217 = vmatpush1.msra.mxu0 %v2192
        %2218 = vmatprep.subr.mxu0 0.0
        %2219 = vmatpush1.msra.mxu0 %v2191
        %2220 = vmatprep.subr.mxu0 0.0
        %2221 = vmatpush1.msra.mxu0 %v2190
        %2222 = vmatprep.subr.mxu0 0.0
        %2223 = vmatpush1.msra.mxu0 %v2189
        %2224 = vmatprep.subr.mxu0 0.0
        %2225 = vmatpush1.msra.mxu0 %v2188
        %2226 = vmatprep.subr.mxu0 0.0
        %2227 = vmatpush1.msra.mxu0 %v2187
        %2228 = vmatprep.subr.mxu0 0.0
        %2229 = vmatpush2.msra.mxu0 0.0
        %2230 = vmatprep.subr.mxu0 0.0
        %2231 = vmatpush2.msra.mxu0 0.0
        %2232 = vmatprep.subr.mxu0 0.0
        %2233 = vmatpush2.msra.mxu0 0.0
        %2234 = vmatprep.subr.mxu0 0.0
        %2235 = vmatpush2.msra.mxu0 0.0
        %2236 = vmatprep.subr.mxu0 0.0
        %2237 = vmatpush2.msra.mxu0 0.0
        %2238 = vmatprep.subr.mxu0 0.0
        %2239 = vmatpush2.msra.mxu0 0.0
        %2240 = vmatprep.subr.mxu0 0.0
        %2241 = vmatpush2.msra.mxu0 0.0
        %2242 = vmatprep.subr.mxu0 0.0
        %2243 = vmatpush2.msra.mxu0 0.0
        %2244 = vmatprep.subr.mxu0 0.0
        %2245 = vmatpush2.msra.mxu0 0.0
        %2246 = vmatprep.subr.mxu0 0.0
        %2247 = vmatpush2.msra.mxu0 0.0
        %2248 = vmatprep.subr.mxu0 0.0
        %2249 = vmatpush2.msra.mxu0 0.0
        %2250 = vmatprep.subr.mxu0 0.0
        %2251 = vmatpush2.msra.mxu0 0.0
        %2252 = vmatprep.subr.mxu0 0.0
        %2253 = vmatpush2.msra.mxu0 0.0
        %2254 = vmatprep.subr.mxu0 0.0
        %2255 = vmatpush2.msra.mxu0 0.0
        %2256 = vmatprep.subr.mxu0 0.0
        %2257 = vmatpush2.msra.mxu0 0.0
        %2258 = vmatprep.subr.mxu0 0.0
        %2259 = vmatpush2.msra.mxu0 0.0
        %2260 = vmatprep.mubr.f32.mxu0 0.0
        %2261 = vmatmul.mubr.f32.gmra.mxu0 %v2113
        %v2262 = vpop.f32.mrf.mxu0
        %v2263 = vadd.f32 0.0, %v2262
        %v2264 = vpop.f32.mrf.mxu0
        %2265 = vdwg.mxu0
        %v2266 = vadd.f32 %v2099, %v2263
        %s2267 = scalar_lea.vmem %s4, 288
        %v2268 = vld [vmem:[%s2267] sm:$0xff]
        %v2269 = vld [vmem:[%s2267 + $0x8] sm:$0xff]
        %v2270 = vld [vmem:[%s2267 + $0x10] sm:$0xff]
        %v2271 = vld [vmem:[%s2267 + $0x18] sm:$0xff]
        %v2272 = vld [vmem:[%s2267 + $0x20] sm:$0xff]
        %v2273 = vld [vmem:[%s2267 + $0x28] sm:$0xff]
        %v2274 = vld [vmem:[%s2267 + $0x30] sm:$0xff]
        %v2275 = vld [vmem:[%s2267 + $0x38] sm:$0xff]
        %v2276 = vld [vmem:[%s2267 + $0x40] sm:$0xff]
        %v2277 = vrot.slane %v1603, 4
        %v2278 = vrot.slane %v1604, 4
        %v2279 = vsel %vm474, %v2277, %v2278
        %v2280 = vsel %vm1638, %v2279, 0
        %2282 = vmatprep.subr.mxu0 0.0
        %2283 = vmatpush1.msra.mxu0 0.0
        %2284 = vmatprep.subr.mxu0 0.0
        %2285 = vmatpush1.msra.mxu0 0.0
        %2286 = vmatprep.subr.mxu0 0.0
        %2287 = vmatpush1.msra.mxu0 0.0
        %2288 = vmatprep.subr.mxu0 0.0
        %2289 = vmatpush1.msra.mxu0 0.0
        %2290 = vmatprep.subr.mxu0 0.0
        %2291 = vmatpush1.msra.mxu0 0.0
        %2292 = vmatprep.subr.mxu0 0.0
        %2293 = vmatpush1.msra.mxu0 0.0
        %2294 = vmatprep.subr.mxu0 0.0
        %2295 = vmatpush1.msra.mxu0 0.0
        %2296 = vmatprep.subr.mxu0 0.0
        %2297 = vmatpush1.msra.mxu0 %v2276
        %2298 = vmatprep.subr.mxu0 0.0
        %2299 = vmatpush1.msra.mxu0 %v2275
        %2300 = vmatprep.subr.mxu0 0.0
        %2301 = vmatpush1.msra.mxu0 %v2274
        %2302 = vmatprep.subr.mxu0 0.0
        %2303 = vmatpush1.msra.mxu0 %v2273
        %2304 = vmatprep.subr.mxu0 0.0
        %2305 = vmatpush1.msra.mxu0 %v2272
        %2306 = vmatprep.subr.mxu0 0.0
        %2307 = vmatpush1.msra.mxu0 %v2271
        %2308 = vmatprep.subr.mxu0 0.0
        %2309 = vmatpush1.msra.mxu0 %v2270
        %2310 = vmatprep.subr.mxu0 0.0
        %2311 = vmatpush1.msra.mxu0 %v2269
        %2312 = vmatprep.subr.mxu0 0.0
        %2313 = vmatpush1.msra.mxu0 %v2268
        %2314 = vmatprep.subr.mxu0 0.0
        %2315 = vmatpush2.msra.mxu0 0.0
        %2316 = vmatprep.subr.mxu0 0.0
        %2317 = vmatpush2.msra.mxu0 0.0
        %2318 = vmatprep.subr.mxu0 0.0
        %2319 = vmatpush2.msra.mxu0 0.0
        %2320 = vmatprep.subr.mxu0 0.0
        %2321 = vmatpush2.msra.mxu0 0.0
        %2322 = vmatprep.subr.mxu0 0.0
        %2323 = vmatpush2.msra.mxu0 0.0
        %2324 = vmatprep.subr.mxu0 0.0
        %2325 = vmatpush2.msra.mxu0 0.0
        %2326 = vmatprep.subr.mxu0 0.0
        %2327 = vmatpush2.msra.mxu0 0.0
        %2328 = vmatprep.subr.mxu0 0.0
        %2329 = vmatpush2.msra.mxu0 0.0
        %2330 = vmatprep.subr.mxu0 0.0
        %2331 = vmatpush2.msra.mxu0 0.0
        %2332 = vmatprep.subr.mxu0 0.0
        %2333 = vmatpush2.msra.mxu0 0.0
        %2334 = vmatprep.subr.mxu0 0.0
        %2335 = vmatpush2.msra.mxu0 0.0
        %2336 = vmatprep.subr.mxu0 0.0
        %2337 = vmatpush2.msra.mxu0 0.0
        %2338 = vmatprep.subr.mxu0 0.0
        %2339 = vmatpush2.msra.mxu0 0.0
        %2340 = vmatprep.subr.mxu0 0.0
        %2341 = vmatpush2.msra.mxu0 0.0
        %2342 = vmatprep.subr.mxu0 0.0
        %2343 = vmatpush2.msra.mxu0 0.0
        %2344 = vmatprep.subr.mxu0 0.0
        %2345 = vmatpush2.msra.mxu0 0.0
        %2346 = vmatprep.mubr.f32.mxu0 0.0
        %2347 = vmatmul.mubr.f32.gmra.mxu0 %v2280
        %v2348 = vpop.f32.mrf.mxu0
        %v2349 = vadd.f32 0.0, %v2348
        %v2350 = vpop.f32.mrf.mxu0
        %2351 = vdwg.mxu0
        %v2352 = vadd.f32 %v2185, %v2349
        %s2353 = scalar_lea.vmem %s5, 288
        %v2354 = vld [vmem:[%s2353] sm:$0xff]
        %v2355 = vld [vmem:[%s2353 + $0x8] sm:$0xff]
        %v2356 = vld [vmem:[%s2353 + $0x10] sm:$0xff]
        %v2357 = vld [vmem:[%s2353 + $0x18] sm:$0xff]
        %v2358 = vld [vmem:[%s2353 + $0x20] sm:$0xff]
        %v2359 = vld [vmem:[%s2353 + $0x28] sm:$0xff]
        %v2360 = vld [vmem:[%s2353 + $0x30] sm:$0xff]
        %v2361 = vld [vmem:[%s2353 + $0x38] sm:$0xff]
        %v2362 = vld [vmem:[%s2353 + $0x40] sm:$0xff]
        %2363 = vmatprep.subr.mxu0 0.0
        %2364 = vmatpush1.msra.mxu0 0.0
        %2365 = vmatprep.subr.mxu0 0.0
        %2366 = vmatpush1.msra.mxu0 0.0
        %2367 = vmatprep.subr.mxu0 0.0
        %2368 = vmatpush1.msra.mxu0 0.0
        %2369 = vmatprep.subr.mxu0 0.0
        %2370 = vmatpush1.msra.mxu0 0.0
        %2371 = vmatprep.subr.mxu0 0.0
        %2372 = vmatpush1.msra.mxu0 0.0
        %2373 = vmatprep.subr.mxu0 0.0
        %2374 = vmatpush1.msra.mxu0 0.0
        %2375 = vmatprep.subr.mxu0 0.0
        %2376 = vmatpush1.msra.mxu0 0.0
        %2377 = vmatprep.subr.mxu0 0.0
        %2378 = vmatpush1.msra.mxu0 %v2362
        %2379 = vmatprep.subr.mxu0 0.0
        %2380 = vmatpush1.msra.mxu0 %v2361
        %2381 = vmatprep.subr.mxu0 0.0
        %2382 = vmatpush1.msra.mxu0 %v2360
        %2383 = vmatprep.subr.mxu0 0.0
        %2384 = vmatpush1.msra.mxu0 %v2359
        %2385 = vmatprep.subr.mxu0 0.0
        %2386 = vmatpush1.msra.mxu0 %v2358
        %2387 = vmatprep.subr.mxu0 0.0
        %2388 = vmatpush1.msra.mxu0 %v2357
        %2389 = vmatprep.subr.mxu0 0.0
        %2390 = vmatpush1.msra.mxu0 %v2356
        %2391 = vmatprep.subr.mxu0 0.0
        %2392 = vmatpush1.msra.mxu0 %v2355
        %2393 = vmatprep.subr.mxu0 0.0
        %2394 = vmatpush1.msra.mxu0 %v2354
        %2395 = vmatprep.subr.mxu0 0.0
        %2396 = vmatpush2.msra.mxu0 0.0
        %2397 = vmatprep.subr.mxu0 0.0
        %2398 = vmatpush2.msra.mxu0 0.0
        %2399 = vmatprep.subr.mxu0 0.0
        %2400 = vmatpush2.msra.mxu0 0.0
        %2401 = vmatprep.subr.mxu0 0.0
        %2402 = vmatpush2.msra.mxu0 0.0
        %2403 = vmatprep.subr.mxu0 0.0
        %2404 = vmatpush2.msra.mxu0 0.0
        %2405 = vmatprep.subr.mxu0 0.0
        %2406 = vmatpush2.msra.mxu0 0.0
        %2407 = vmatprep.subr.mxu0 0.0
        %2408 = vmatpush2.msra.mxu0 0.0
        %2409 = vmatprep.subr.mxu0 0.0
        %2410 = vmatpush2.msra.mxu0 0.0
        %2411 = vmatprep.subr.mxu0 0.0
        %2412 = vmatpush2.msra.mxu0 0.0
        %2413 = vmatprep.subr.mxu0 0.0
        %2414 = vmatpush2.msra.mxu0 0.0
        %2415 = vmatprep.subr.mxu0 0.0
        %2416 = vmatpush2.msra.mxu0 0.0
        %2417 = vmatprep.subr.mxu0 0.0
        %2418 = vmatpush2.msra.mxu0 0.0
        %2419 = vmatprep.subr.mxu0 0.0
        %2420 = vmatpush2.msra.mxu0 0.0
        %2421 = vmatprep.subr.mxu0 0.0
        %2422 = vmatpush2.msra.mxu0 0.0
        %2423 = vmatprep.subr.mxu0 0.0
        %2424 = vmatpush2.msra.mxu0 0.0
        %2425 = vmatprep.subr.mxu0 0.0
        %2426 = vmatpush2.msra.mxu0 0.0
        %2427 = vmatprep.mubr.f32.mxu0 0.0
        %2428 = vmatmul.mubr.f32.gmra.mxu0 %v2280
        %v2429 = vpop.f32.mrf.mxu0
        %v2430 = vadd.f32 0.0, %v2429
        %v2431 = vpop.f32.mrf.mxu0
        %2432 = vdwg.mxu0
        %v2433 = vadd.f32 %v2266, %v2430
        %v2434 = vmax.f32 %v2352, %v2433
        %vm2435 = vcmask 64512
        %v2436 = vsel %vm2435, %v1419, 0
        %2438 = vmatprep.subr.mxu0 0.0
        %2439 = vmatpush1.msra.mxu0 0.0
        %2440 = vmatprep.subr.mxu0 0.0
        %2441 = vmatpush1.msra.mxu0 0.0
        %2442 = vmatprep.subr.mxu0 0.0
        %2443 = vmatpush1.msra.mxu0 0.0
        %2444 = vmatprep.subr.mxu0 0.0
        %2445 = vmatpush1.msra.mxu0 0.0
        %2446 = vmatprep.subr.mxu0 0.0
        %2447 = vmatpush1.msra.mxu0 0.0
        %2448 = vmatprep.subr.mxu0 0.0
        %2449 = vmatpush1.msra.mxu0 0.0
        %2450 = vmatprep.subr.mxu0 0.0
        %2451 = vmatpush1.msra.mxu0 0.0
        %2452 = vmatprep.subr.mxu0 0.0
        %2453 = vmatpush1.msra.mxu0 0.0
        %2454 = vmatprep.subr.mxu0 0.0
        %2455 = vmatpush1.msra.mxu0 0.0
        %2456 = vmatprep.subr.mxu0 0.0
        %2457 = vmatpush1.msra.mxu0 0.0
        %2458 = vmatprep.subr.mxu0 0.0
        %2459 = vmatpush1.msra.mxu0 0.0
        %2460 = vmatprep.subr.mxu0 0.0
        %2461 = vmatpush1.msra.mxu0 0.0
        %2462 = vmatprep.subr.mxu0 0.0
        %2463 = vmatpush1.msra.mxu0 0.0
        %2464 = vmatprep.subr.mxu0 0.0
        %2465 = vmatpush1.msra.mxu0 0.0
        %2466 = vmatprep.subr.mxu0 0.0
        %2467 = vmatpush1.msra.mxu0 0.0
        %2468 = vmatprep.subr.mxu0 0.0
        %2469 = vmatpush1.msra.mxu0 %v2434
        %2470 = vmatprep.subr.mxu0 0.0
        %2471 = vmatpush2.msra.mxu0 0.0
        %2472 = vmatprep.subr.mxu0 0.0
        %2473 = vmatpush2.msra.mxu0 0.0
        %2474 = vmatprep.subr.mxu0 0.0
        %2475 = vmatpush2.msra.mxu0 0.0
        %2476 = vmatprep.subr.mxu0 0.0
        %2477 = vmatpush2.msra.mxu0 0.0
        %2478 = vmatprep.subr.mxu0 0.0
        %2479 = vmatpush2.msra.mxu0 0.0
        %2480 = vmatprep.subr.mxu0 0.0
        %2481 = vmatpush2.msra.mxu0 0.0
        %2482 = vmatprep.subr.mxu0 0.0
        %2483 = vmatpush2.msra.mxu0 0.0
        %2484 = vmatprep.subr.mxu0 0.0
        %2485 = vmatpush2.msra.mxu0 0.0
        %2486 = vmatprep.subr.mxu0 0.0
        %2487 = vmatpush2.msra.mxu0 0.0
        %2488 = vmatprep.subr.mxu0 0.0
        %2489 = vmatpush2.msra.mxu0 0.0
        %2490 = vmatprep.subr.mxu0 0.0
        %2491 = vmatpush2.msra.mxu0 0.0
        %2492 = vmatprep.subr.mxu0 0.0
        %2493 = vmatpush2.msra.mxu0 0.0
        %2494 = vmatprep.subr.mxu0 0.0
        %2495 = vmatpush2.msra.mxu0 0.0
        %2496 = vmatprep.subr.mxu0 0.0
        %2497 = vmatpush2.msra.mxu0 0.0
        %2498 = vmatprep.subr.mxu0 0.0
        %2499 = vmatpush2.msra.mxu0 0.0
        %2500 = vmatprep.subr.mxu0 0.0
        %2501 = vmatpush2.msra.mxu0 0.0
        %2502 = vmatprep.mubr.f32.mxu0 0.0
        %2503 = vmatmul.mubr.f32.gmra.mxu0 %v2436
        %v2504 = vpop.f32.mrf.mxu0
        %v2505 = vadd.f32 0.0, %v2504
        %v2506 = vpop.f32.mrf.mxu0
        %2507 = vdwg.mxu0
        %v2508 = vsel %vm2435, %v1427, 0
        %2510 = vmatprep.subr.mxu0 0.0
        %2511 = vmatpush1.msra.mxu0 0.0
        %2512 = vmatprep.subr.mxu0 0.0
        %2513 = vmatpush1.msra.mxu0 0.0
        %2514 = vmatprep.subr.mxu0 0.0
        %2515 = vmatpush1.msra.mxu0 0.0
        %2516 = vmatprep.subr.mxu0 0.0
        %2517 = vmatpush1.msra.mxu0 0.0
        %2518 = vmatprep.subr.mxu0 0.0
        %2519 = vmatpush1.msra.mxu0 0.0
        %2520 = vmatprep.subr.mxu0 0.0
        %2521 = vmatpush1.msra.mxu0 0.0
        %2522 = vmatprep.subr.mxu0 0.0
        %2523 = vmatpush1.msra.mxu0 0.0
        %2524 = vmatprep.subr.mxu0 0.0
        %2525 = vmatpush1.msra.mxu0 0.0
        %2526 = vmatprep.subr.mxu0 0.0
        %2527 = vmatpush1.msra.mxu0 0.0
        %2528 = vmatprep.subr.mxu0 0.0
        %2529 = vmatpush1.msra.mxu0 0.0
        %2530 = vmatprep.subr.mxu0 0.0
        %2531 = vmatpush1.msra.mxu0 0.0
        %2532 = vmatprep.subr.mxu0 0.0
        %2533 = vmatpush1.msra.mxu0 0.0
        %2534 = vmatprep.subr.mxu0 0.0
        %2535 = vmatpush1.msra.mxu0 0.0
        %2536 = vmatprep.subr.mxu0 0.0
        %2537 = vmatpush1.msra.mxu0 0.0
        %2538 = vmatprep.subr.mxu0 0.0
        %2539 = vmatpush1.msra.mxu0 0.0
        %2540 = vmatprep.subr.mxu0 0.0
        %2541 = vmatpush1.msra.mxu0 %v2434
        %2542 = vmatprep.subr.mxu0 0.0
        %2543 = vmatpush2.msra.mxu0 0.0
        %2544 = vmatprep.subr.mxu0 0.0
        %2545 = vmatpush2.msra.mxu0 0.0
        %2546 = vmatprep.subr.mxu0 0.0
        %2547 = vmatpush2.msra.mxu0 0.0
        %2548 = vmatprep.subr.mxu0 0.0
        %2549 = vmatpush2.msra.mxu0 0.0
        %2550 = vmatprep.subr.mxu0 0.0
        %2551 = vmatpush2.msra.mxu0 0.0
        %2552 = vmatprep.subr.mxu0 0.0
        %2553 = vmatpush2.msra.mxu0 0.0
        %2554 = vmatprep.subr.mxu0 0.0
        %2555 = vmatpush2.msra.mxu0 0.0
        %2556 = vmatprep.subr.mxu0 0.0
        %2557 = vmatpush2.msra.mxu0 0.0
        %2558 = vmatprep.subr.mxu0 0.0
        %2559 = vmatpush2.msra.mxu0 0.0
        %2560 = vmatprep.subr.mxu0 0.0
        %2561 = vmatpush2.msra.mxu0 0.0
        %2562 = vmatprep.subr.mxu0 0.0
        %2563 = vmatpush2.msra.mxu0 0.0
        %2564 = vmatprep.subr.mxu0 0.0
        %2565 = vmatpush2.msra.mxu0 0.0
        %2566 = vmatprep.subr.mxu0 0.0
        %2567 = vmatpush2.msra.mxu0 0.0
        %2568 = vmatprep.subr.mxu0 0.0
        %2569 = vmatpush2.msra.mxu0 0.0
        %2570 = vmatprep.subr.mxu0 0.0
        %2571 = vmatpush2.msra.mxu0 0.0
        %2572 = vmatprep.subr.mxu0 0.0
        %2573 = vmatpush2.msra.mxu0 0.0
        %2574 = vmatprep.mubr.f32.mxu0 0.0
        %2575 = vmatmul.mubr.f32.gmra.mxu0 %v2508
        %v2576 = vpop.f32.mrf.mxu0
        %v2577 = vadd.f32 0.0, %v2576
        %v2578 = vpop.f32.mrf.mxu0
        %2579 = vdwg.mxu0
        %v2580 = vmax.f32 %v2505, %v2577
        %v2581 = vld [vmem:[%s6] sm:$0x1]
        %v2583 = vlaneseq
        %v2584 = vshrl.u32 %v2583, 7
        %v2585 = vsub.s32 0, %v2584
        %v2586 = vrot.slane %v2581, %v2585
        %v2588 = vadd.f32 %v2580, %v2586
        %v2589 = vmax.f32 %v2588, 0.0
        %v2590 = vld [vmem:[%s8] sm:$0x1]
        %v2591 = vld [vmem:[%s7] sm:$0xff]
        %v2592 = vld [vmem:[%s7 + $0x8] sm:$0xff]
        %v2593 = vld [vmem:[%s7 + $0x10] sm:$0xff]
        %v2594 = vld [vmem:[%s7 + $0x18] sm:$0xff]
        %v2595 = vld [vmem:[%s7 + $0x20] sm:$0xff]
        %v2596 = vld [vmem:[%s7 + $0x28] sm:$0xff]
        %v2597 = vld [vmem:[%s7 + $0x30] sm:$0xff]
        %v2598 = vld [vmem:[%s7 + $0x38] sm:$0xff]
        %vm2599 = vcmask 523264
        %v2601 = vsel %vm2599, %v2589, 0
        %2603 = vmatprep.subr.mxu0 0.0
        %2604 = vmatpush1.msra.mxu0 0.0
        %2605 = vmatprep.subr.mxu0 0.0
        %2606 = vmatpush1.msra.mxu0 0.0
        %2607 = vmatprep.subr.mxu0 0.0
        %2608 = vmatpush1.msra.mxu0 0.0
        %2609 = vmatprep.subr.mxu0 0.0
        %2610 = vmatpush1.msra.mxu0 0.0
        %2611 = vmatprep.subr.mxu0 0.0
        %2612 = vmatpush1.msra.mxu0 0.0
        %2613 = vmatprep.subr.mxu0 0.0
        %2614 = vmatpush1.msra.mxu0 0.0
        %2615 = vmatprep.subr.mxu0 0.0
        %2616 = vmatpush1.msra.mxu0 0.0
        %2617 = vmatprep.subr.mxu0 0.0
        %2618 = vmatpush1.msra.mxu0 0.0
        %2619 = vmatprep.subr.mxu0 0.0
        %2620 = vmatpush1.msra.mxu0 %v2598
        %2621 = vmatprep.subr.mxu0 0.0
        %2622 = vmatpush1.msra.mxu0 %v2597
        %2623 = vmatprep.subr.mxu0 0.0
        %2624 = vmatpush1.msra.mxu0 %v2596
        %2625 = vmatprep.subr.mxu0 0.0
        %2626 = vmatpush1.msra.mxu0 %v2595
        %2627 = vmatprep.subr.mxu0 0.0
        %2628 = vmatpush1.msra.mxu0 %v2594
        %2629 = vmatprep.subr.mxu0 0.0
        %2630 = vmatpush1.msra.mxu0 %v2593
        %2631 = vmatprep.subr.mxu0 0.0
        %2632 = vmatpush1.msra.mxu0 %v2592
        %2633 = vmatprep.subr.mxu0 0.0
        %2634 = vmatpush1.msra.mxu0 %v2591
        %2635 = vmatprep.subr.mxu0 0.0
        %2636 = vmatpush2.msra.mxu0 0.0
        %2637 = vmatprep.subr.mxu0 0.0
        %2638 = vmatpush2.msra.mxu0 0.0
        %2639 = vmatprep.subr.mxu0 0.0
        %2640 = vmatpush2.msra.mxu0 0.0
        %2641 = vmatprep.subr.mxu0 0.0
        %2642 = vmatpush2.msra.mxu0 0.0
        %2643 = vmatprep.subr.mxu0 0.0
        %2644 = vmatpush2.msra.mxu0 0.0
        %2645 = vmatprep.subr.mxu0 0.0
        %2646 = vmatpush2.msra.mxu0 0.0
        %2647 = vmatprep.subr.mxu0 0.0
        %2648 = vmatpush2.msra.mxu0 0.0
        %2649 = vmatprep.subr.mxu0 0.0
        %2650 = vmatpush2.msra.mxu0 0.0
        %2651 = vmatprep.subr.mxu0 0.0
        %2652 = vmatpush2.msra.mxu0 0.0
        %2653 = vmatprep.subr.mxu0 0.0
        %2654 = vmatpush2.msra.mxu0 0.0
        %2655 = vmatprep.subr.mxu0 0.0
        %2656 = vmatpush2.msra.mxu0 0.0
        %2657 = vmatprep.subr.mxu0 0.0
        %2658 = vmatpush2.msra.mxu0 0.0
        %2659 = vmatprep.subr.mxu0 0.0
        %2660 = vmatpush2.msra.mxu0 0.0
        %2661 = vmatprep.subr.mxu0 0.0
        %2662 = vmatpush2.msra.mxu0 0.0
        %2663 = vmatprep.subr.mxu0 0.0
        %2664 = vmatpush2.msra.mxu0 0.0
        %2665 = vmatprep.subr.mxu0 0.0
        %2666 = vmatpush2.msra.mxu0 0.0
        %2667 = vmatprep.mubr.f32.mxu0 0.0
        %2668 = vmatmul.mubr.f32.gmra.mxu0 %v2601
        %v2669 = vpop.f32.mrf.mxu0
        %v2670 = vadd.f32 0.0, %v2669
        %v2671 = vpop.f32.mrf.mxu0
        %2672 = vdwg.mxu0
        %v2673 = vadd.f32 %v2590, %v2670
        %s2674 = scalar_lea.vmem %s7, 64
        %v2675 = vld [vmem:[%s2674] sm:$0xff]
        %v2676 = vld [vmem:[%s2674 + $0x8] sm:$0xff]
        %v2677 = vld [vmem:[%s2674 + $0x10] sm:$0xff]
        %v2678 = vld [vmem:[%s2674 + $0x18] sm:$0xff]
        %v2679 = vld [vmem:[%s2674 + $0x20] sm:$0xff]
        %v2680 = vld [vmem:[%s2674 + $0x28] sm:$0xff]
        %v2681 = vld [vmem:[%s2674 + $0x30] sm:$0xff]
        %v2682 = vld [vmem:[%s2674 + $0x38] sm:$0xff]
        %v2683 = vrot.slane %v2589, 1
        %v2684 = vsel %vm2599, %v2683, 0
        %2686 = vmatprep.subr.mxu0 0.0
        %2687 = vmatpush1.msra.mxu0 0.0
        %2688 = vmatprep.subr.mxu0 0.0
        %2689 = vmatpush1.msra.mxu0 0.0
        %2690 = vmatprep.subr.mxu0 0.0
        %2691 = vmatpush1.msra.mxu0 0.0
        %2692 = vmatprep.subr.mxu0 0.0
        %2693 = vmatpush1.msra.mxu0 0.0
        %2694 = vmatprep.subr.mxu0 0.0
        %2695 = vmatpush1.msra.mxu0 0.0
        %2696 = vmatprep.subr.mxu0 0.0
        %2697 = vmatpush1.msra.mxu0 0.0
        %2698 = vmatprep.subr.mxu0 0.0
        %2699 = vmatpush1.msra.mxu0 0.0
        %2700 = vmatprep.subr.mxu0 0.0
        %2701 = vmatpush1.msra.mxu0 0.0
        %2702 = vmatprep.subr.mxu0 0.0
        %2703 = vmatpush1.msra.mxu0 %v2682
        %2704 = vmatprep.subr.mxu0 0.0
        %2705 = vmatpush1.msra.mxu0 %v2681
        %2706 = vmatprep.subr.mxu0 0.0
        %2707 = vmatpush1.msra.mxu0 %v2680
        %2708 = vmatprep.subr.mxu0 0.0
        %2709 = vmatpush1.msra.mxu0 %v2679
        %2710 = vmatprep.subr.mxu0 0.0
        %2711 = vmatpush1.msra.mxu0 %v2678
        %2712 = vmatprep.subr.mxu0 0.0
        %2713 = vmatpush1.msra.mxu0 %v2677
        %2714 = vmatprep.subr.mxu0 0.0
        %2715 = vmatpush1.msra.mxu0 %v2676
        %2716 = vmatprep.subr.mxu0 0.0
        %2717 = vmatpush1.msra.mxu0 %v2675
        %2718 = vmatprep.subr.mxu0 0.0
        %2719 = vmatpush2.msra.mxu0 0.0
        %2720 = vmatprep.subr.mxu0 0.0
        %2721 = vmatpush2.msra.mxu0 0.0
        %2722 = vmatprep.subr.mxu0 0.0
        %2723 = vmatpush2.msra.mxu0 0.0
        %2724 = vmatprep.subr.mxu0 0.0
        %2725 = vmatpush2.msra.mxu0 0.0
        %2726 = vmatprep.subr.mxu0 0.0
        %2727 = vmatpush2.msra.mxu0 0.0
        %2728 = vmatprep.subr.mxu0 0.0
        %2729 = vmatpush2.msra.mxu0 0.0
        %2730 = vmatprep.subr.mxu0 0.0
        %2731 = vmatpush2.msra.mxu0 0.0
        %2732 = vmatprep.subr.mxu0 0.0
        %2733 = vmatpush2.msra.mxu0 0.0
        %2734 = vmatprep.subr.mxu0 0.0
        %2735 = vmatpush2.msra.mxu0 0.0
        %2736 = vmatprep.subr.mxu0 0.0
        %2737 = vmatpush2.msra.mxu0 0.0
        %2738 = vmatprep.subr.mxu0 0.0
        %2739 = vmatpush2.msra.mxu0 0.0
        %2740 = vmatprep.subr.mxu0 0.0
        %2741 = vmatpush2.msra.mxu0 0.0
        %2742 = vmatprep.subr.mxu0 0.0
        %2743 = vmatpush2.msra.mxu0 0.0
        %2744 = vmatprep.subr.mxu0 0.0
        %2745 = vmatpush2.msra.mxu0 0.0
        %2746 = vmatprep.subr.mxu0 0.0
        %2747 = vmatpush2.msra.mxu0 0.0
        %2748 = vmatprep.subr.mxu0 0.0
        %2749 = vmatpush2.msra.mxu0 0.0
        %2750 = vmatprep.mubr.f32.mxu0 0.0
        %2751 = vmatmul.mubr.f32.gmra.mxu0 %v2684
        %v2752 = vpop.f32.mrf.mxu0
        %v2753 = vadd.f32 0.0, %v2752
        %v2754 = vpop.f32.mrf.mxu0
        %2755 = vdwg.mxu0
        %v2756 = vadd.f32 %v2673, %v2753
        %s2757 = scalar_lea.vmem %s7, 128
        %v2758 = vld [vmem:[%s2757] sm:$0xff]
        %v2759 = vld [vmem:[%s2757 + $0x8] sm:$0xff]
        %v2760 = vld [vmem:[%s2757 + $0x10] sm:$0xff]
        %v2761 = vld [vmem:[%s2757 + $0x18] sm:$0xff]
        %v2762 = vld [vmem:[%s2757 + $0x20] sm:$0xff]
        %v2763 = vld [vmem:[%s2757 + $0x28] sm:$0xff]
        %v2764 = vld [vmem:[%s2757 + $0x30] sm:$0xff]
        %v2765 = vld [vmem:[%s2757 + $0x38] sm:$0xff]
        %v2766 = vrot.slane %v2589, 2
        %v2767 = vsel %vm2599, %v2766, 0
        %2769 = vmatprep.subr.mxu0 0.0
        %2770 = vmatpush1.msra.mxu0 0.0
        %2771 = vmatprep.subr.mxu0 0.0
        %2772 = vmatpush1.msra.mxu0 0.0
        %2773 = vmatprep.subr.mxu0 0.0
        %2774 = vmatpush1.msra.mxu0 0.0
        %2775 = vmatprep.subr.mxu0 0.0
        %2776 = vmatpush1.msra.mxu0 0.0
        %2777 = vmatprep.subr.mxu0 0.0
        %2778 = vmatpush1.msra.mxu0 0.0
        %2779 = vmatprep.subr.mxu0 0.0
        %2780 = vmatpush1.msra.mxu0 0.0
        %2781 = vmatprep.subr.mxu0 0.0
        %2782 = vmatpush1.msra.mxu0 0.0
        %2783 = vmatprep.subr.mxu0 0.0
        %2784 = vmatpush1.msra.mxu0 0.0
        %2785 = vmatprep.subr.mxu0 0.0
        %2786 = vmatpush1.msra.mxu0 %v2765
        %2787 = vmatprep.subr.mxu0 0.0
        %2788 = vmatpush1.msra.mxu0 %v2764
        %2789 = vmatprep.subr.mxu0 0.0
        %2790 = vmatpush1.msra.mxu0 %v2763
        %2791 = vmatprep.subr.mxu0 0.0
        %2792 = vmatpush1.msra.mxu0 %v2762
        %2793 = vmatprep.subr.mxu0 0.0
        %2794 = vmatpush1.msra.mxu0 %v2761
        %2795 = vmatprep.subr.mxu0 0.0
        %2796 = vmatpush1.msra.mxu0 %v2760
        %2797 = vmatprep.subr.mxu0 0.0
        %2798 = vmatpush1.msra.mxu0 %v2759
        %2799 = vmatprep.subr.mxu0 0.0
        %2800 = vmatpush1.msra.mxu0 %v2758
        %2801 = vmatprep.subr.mxu0 0.0
        %2802 = vmatpush2.msra.mxu0 0.0
        %2803 = vmatprep.subr.mxu0 0.0
        %2804 = vmatpush2.msra.mxu0 0.0
        %2805 = vmatprep.subr.mxu0 0.0
        %2806 = vmatpush2.msra.mxu0 0.0
        %2807 = vmatprep.subr.mxu0 0.0
        %2808 = vmatpush2.msra.mxu0 0.0
        %2809 = vmatprep.subr.mxu0 0.0
        %2810 = vmatpush2.msra.mxu0 0.0
        %2811 = vmatprep.subr.mxu0 0.0
        %2812 = vmatpush2.msra.mxu0 0.0
        %2813 = vmatprep.subr.mxu0 0.0
        %2814 = vmatpush2.msra.mxu0 0.0
        %2815 = vmatprep.subr.mxu0 0.0
        %2816 = vmatpush2.msra.mxu0 0.0
        %2817 = vmatprep.subr.mxu0 0.0
        %2818 = vmatpush2.msra.mxu0 0.0
        %2819 = vmatprep.subr.mxu0 0.0
        %2820 = vmatpush2.msra.mxu0 0.0
        %2821 = vmatprep.subr.mxu0 0.0
        %2822 = vmatpush2.msra.mxu0 0.0
        %2823 = vmatprep.subr.mxu0 0.0
        %2824 = vmatpush2.msra.mxu0 0.0
        %2825 = vmatprep.subr.mxu0 0.0
        %2826 = vmatpush2.msra.mxu0 0.0
        %2827 = vmatprep.subr.mxu0 0.0
        %2828 = vmatpush2.msra.mxu0 0.0
        %2829 = vmatprep.subr.mxu0 0.0
        %2830 = vmatpush2.msra.mxu0 0.0
        %2831 = vmatprep.subr.mxu0 0.0
        %2832 = vmatpush2.msra.mxu0 0.0
        %2833 = vmatprep.mubr.f32.mxu0 0.0
        %2834 = vmatmul.mubr.f32.gmra.mxu0 %v2767
        %v2835 = vpop.f32.mrf.mxu0
        %v2836 = vadd.f32 0.0, %v2835
        %v2837 = vpop.f32.mrf.mxu0
        %2838 = vdwg.mxu0
        %v2839 = vadd.f32 %v2756, %v2836
        %s2840 = scalar_lea.vmem %s7, 192
        %v2841 = vld [vmem:[%s2840] sm:$0xff]
        %v2842 = vld [vmem:[%s2840 + $0x8] sm:$0xff]
        %v2843 = vld [vmem:[%s2840 + $0x10] sm:$0xff]
        %v2844 = vld [vmem:[%s2840 + $0x18] sm:$0xff]
        %v2845 = vld [vmem:[%s2840 + $0x20] sm:$0xff]
        %v2846 = vld [vmem:[%s2840 + $0x28] sm:$0xff]
        %v2847 = vld [vmem:[%s2840 + $0x30] sm:$0xff]
        %v2848 = vld [vmem:[%s2840 + $0x38] sm:$0xff]
        %v2849 = vrot.slane %v2589, 3
        %v2850 = vsel %vm2599, %v2849, 0
        %2852 = vmatprep.subr.mxu0 0.0
        %2853 = vmatpush1.msra.mxu0 0.0
        %2854 = vmatprep.subr.mxu0 0.0
        %2855 = vmatpush1.msra.mxu0 0.0
        %2856 = vmatprep.subr.mxu0 0.0
        %2857 = vmatpush1.msra.mxu0 0.0
        %2858 = vmatprep.subr.mxu0 0.0
        %2859 = vmatpush1.msra.mxu0 0.0
        %2860 = vmatprep.subr.mxu0 0.0
        %2861 = vmatpush1.msra.mxu0 0.0
        %2862 = vmatprep.subr.mxu0 0.0
        %2863 = vmatpush1.msra.mxu0 0.0
        %2864 = vmatprep.subr.mxu0 0.0
        %2865 = vmatpush1.msra.mxu0 0.0
        %2866 = vmatprep.subr.mxu0 0.0
        %2867 = vmatpush1.msra.mxu0 0.0
        %2868 = vmatprep.subr.mxu0 0.0
        %2869 = vmatpush1.msra.mxu0 %v2848
        %2870 = vmatprep.subr.mxu0 0.0
        %2871 = vmatpush1.msra.mxu0 %v2847
        %2872 = vmatprep.subr.mxu0 0.0
        %2873 = vmatpush1.msra.mxu0 %v2846
        %2874 = vmatprep.subr.mxu0 0.0
        %2875 = vmatpush1.msra.mxu0 %v2845
        %2876 = vmatprep.subr.mxu0 0.0
        %2877 = vmatpush1.msra.mxu0 %v2844
        %2878 = vmatprep.subr.mxu0 0.0
        %2879 = vmatpush1.msra.mxu0 %v2843
        %2880 = vmatprep.subr.mxu0 0.0
        %2881 = vmatpush1.msra.mxu0 %v2842
        %2882 = vmatprep.subr.mxu0 0.0
        %2883 = vmatpush1.msra.mxu0 %v2841
        %2884 = vmatprep.subr.mxu0 0.0
        %2885 = vmatpush2.msra.mxu0 0.0
        %2886 = vmatprep.subr.mxu0 0.0
        %2887 = vmatpush2.msra.mxu0 0.0
        %2888 = vmatprep.subr.mxu0 0.0
        %2889 = vmatpush2.msra.mxu0 0.0
        %2890 = vmatprep.subr.mxu0 0.0
        %2891 = vmatpush2.msra.mxu0 0.0
        %2892 = vmatprep.subr.mxu0 0.0
        %2893 = vmatpush2.msra.mxu0 0.0
        %2894 = vmatprep.subr.mxu0 0.0
        %2895 = vmatpush2.msra.mxu0 0.0
        %2896 = vmatprep.subr.mxu0 0.0
        %2897 = vmatpush2.msra.mxu0 0.0
        %2898 = vmatprep.subr.mxu0 0.0
        %2899 = vmatpush2.msra.mxu0 0.0
        %2900 = vmatprep.subr.mxu0 0.0
        %2901 = vmatpush2.msra.mxu0 0.0
        %2902 = vmatprep.subr.mxu0 0.0
        %2903 = vmatpush2.msra.mxu0 0.0
        %2904 = vmatprep.subr.mxu0 0.0
        %2905 = vmatpush2.msra.mxu0 0.0
        %2906 = vmatprep.subr.mxu0 0.0
        %2907 = vmatpush2.msra.mxu0 0.0
        %2908 = vmatprep.subr.mxu0 0.0
        %2909 = vmatpush2.msra.mxu0 0.0
        %2910 = vmatprep.subr.mxu0 0.0
        %2911 = vmatpush2.msra.mxu0 0.0
        %2912 = vmatprep.subr.mxu0 0.0
        %2913 = vmatpush2.msra.mxu0 0.0
        %2914 = vmatprep.subr.mxu0 0.0
        %2915 = vmatpush2.msra.mxu0 0.0
        %2916 = vmatprep.mubr.f32.mxu0 0.0
        %2917 = vmatmul.mubr.f32.gmra.mxu0 %v2850
        %v2918 = vpop.f32.mrf.mxu0
        %v2919 = vadd.f32 0.0, %v2918
        %v2920 = vpop.f32.mrf.mxu0
        %2921 = vdwg.mxu0
        %v2922 = vadd.f32 %v2839, %v2919
        %v2923 = vmax.f32 %v2922, 0.0
        %v2924 = vld [vmem:[%s9] sm:$0xff]
        %v2925 = vld [vmem:[%s9 + $0x8] sm:$0xff]
        %v2926 = vld [vmem:[%s9 + $0x10] sm:$0xff]
        %v2927 = vld [vmem:[%s9 + $0x18] sm:$0xff]
        %v2928 = vld [vmem:[%s9 + $0x20] sm:$0xff]
        %v2929 = vld [vmem:[%s9 + $0x28] sm:$0xff]
        %v2930 = vld [vmem:[%s9 + $0x30] sm:$0xff]
        %v2931 = vld [vmem:[%s9 + $0x38] sm:$0xff]
        %v2932 = vld [vmem:[%s9 + $0x40] sm:$0xff]
        %v2933 = vld [vmem:[%s9 + $0x48] sm:$0xff]
        %v2934 = vld [vmem:[%s9 + $0x50] sm:$0xff]
        %v2935 = vld [vmem:[%s9 + $0x58] sm:$0xff]
        %v2936 = vld [vmem:[%s9 + $0x60] sm:$0xff]
        %v2937 = vld [vmem:[%s9 + $0x68] sm:$0xff]
        %v2938 = vld [vmem:[%s9 + $0x70] sm:$0xff]
        %v2939 = vld [vmem:[%s10] sm:$0x1]
        %vm2940 = vcmask 982016
        %v2942 = vsel %vm2940, %v2923, 0
        %2944 = vmatprep.subr.mxu0 0.0
        %2945 = vmatpush1.msra.mxu0 0.0
        %2946 = vmatprep.subr.mxu0 0.0
        %2947 = vmatpush1.msra.mxu0 %v2938
        %2948 = vmatprep.subr.mxu0 0.0
        %2949 = vmatpush1.msra.mxu0 %v2937
        %2950 = vmatprep.subr.mxu0 0.0
        %2951 = vmatpush1.msra.mxu0 %v2936
        %2952 = vmatprep.subr.mxu0 0.0
        %2953 = vmatpush1.msra.mxu0 %v2935
        %2954 = vmatprep.subr.mxu0 0.0
        %2955 = vmatpush1.msra.mxu0 %v2934
        %2956 = vmatprep.subr.mxu0 0.0
        %2957 = vmatpush1.msra.mxu0 %v2933
        %2958 = vmatprep.subr.mxu0 0.0
        %2959 = vmatpush1.msra.mxu0 %v2932
        %2960 = vmatprep.subr.mxu0 0.0
        %2961 = vmatpush1.msra.mxu0 %v2931
        %2962 = vmatprep.subr.mxu0 0.0
        %2963 = vmatpush1.msra.mxu0 %v2930
        %2964 = vmatprep.subr.mxu0 0.0
        %2965 = vmatpush1.msra.mxu0 %v2929
        %2966 = vmatprep.subr.mxu0 0.0
        %2967 = vmatpush1.msra.mxu0 %v2928
        %2968 = vmatprep.subr.mxu0 0.0
        %2969 = vmatpush1.msra.mxu0 %v2927
        %2970 = vmatprep.subr.mxu0 0.0
        %2971 = vmatpush1.msra.mxu0 %v2926
        %2972 = vmatprep.subr.mxu0 0.0
        %2973 = vmatpush1.msra.mxu0 %v2925
        %2974 = vmatprep.subr.mxu0 0.0
        %2975 = vmatpush1.msra.mxu0 %v2924
        %2976 = vmatprep.subr.mxu0 0.0
        %2977 = vmatpush2.msra.mxu0 0.0
        %2978 = vmatprep.subr.mxu0 0.0
        %2979 = vmatpush2.msra.mxu0 0.0
        %2980 = vmatprep.subr.mxu0 0.0
        %2981 = vmatpush2.msra.mxu0 0.0
        %2982 = vmatprep.subr.mxu0 0.0
        %2983 = vmatpush2.msra.mxu0 0.0
        %2984 = vmatprep.subr.mxu0 0.0
        %2985 = vmatpush2.msra.mxu0 0.0
        %2986 = vmatprep.subr.mxu0 0.0
        %2987 = vmatpush2.msra.mxu0 0.0
        %2988 = vmatprep.subr.mxu0 0.0
        %2989 = vmatpush2.msra.mxu0 0.0
        %2990 = vmatprep.subr.mxu0 0.0
        %2991 = vmatpush2.msra.mxu0 0.0
        %2992 = vmatprep.subr.mxu0 0.0
        %2993 = vmatpush2.msra.mxu0 0.0
        %2994 = vmatprep.subr.mxu0 0.0
        %2995 = vmatpush2.msra.mxu0 0.0
        %2996 = vmatprep.subr.mxu0 0.0
        %2997 = vmatpush2.msra.mxu0 0.0
        %2998 = vmatprep.subr.mxu0 0.0
        %2999 = vmatpush2.msra.mxu0 0.0
        %3000 = vmatprep.subr.mxu0 0.0
        %3001 = vmatpush2.msra.mxu0 0.0
        %3002 = vmatprep.subr.mxu0 0.0
        %3003 = vmatpush2.msra.mxu0 0.0
        %3004 = vmatprep.subr.mxu0 0.0
        %3005 = vmatpush2.msra.mxu0 0.0
        %3006 = vmatprep.subr.mxu0 0.0
        %3007 = vmatpush2.msra.mxu0 0.0
        %3008 = vmatprep.mubr.f32.mxu0 0.0
        %3009 = vmatmul.mubr.f32.gmra.mxu0 %v2942
        %v3010 = vpop.f32.mrf.mxu0
        %v3011 = vadd.f32 %v2939, %v3010
        %v3012 = vpop.f32.mrf.mxu0
        %3013 = vdwg.mxu0
        %v3014 = vmax.f32 %v3011, 0.0
        %v3015 = vld [vmem:[%s11] sm:$0xff]
        %v3016 = vld [vmem:[%s11 + $0x8] sm:$0xff]
        %v3017 = vld [vmem:[%s11 + $0x10] sm:$0xff]
        %v3018 = vld [vmem:[%s11 + $0x18] sm:$0xff]
        %v3019 = vld [vmem:[%s11 + $0x20] sm:$0xff]
        %v3020 = vld [vmem:[%s11 + $0x28] sm:$0xff]
        %v3021 = vld [vmem:[%s11 + $0x30] sm:$0xff]
        %v3022 = vld [vmem:[%s11 + $0x38] sm:$0xff]
        %v3023 = vld [vmem:[%s11 + $0x40] sm:$0xff]
        %v3024 = vld [vmem:[%s11 + $0x48] sm:$0xff]
        %v3025 = vld [vmem:[%s11 + $0x50] sm:$0xf]
        %v3026 = vld [vmem:[%s12] sm:$0x1]
        %vm3027 = vcmask 687104
        %v3029 = vsel %vm3027, %v3014, 0
        %v3032 = vsel %vm474, %v3025, 0
        %3034 = vmatprep.subr.mxu0 0.0
        %3035 = vmatpush1.msra.mxu0 0.0
        %3036 = vmatprep.subr.mxu0 0.0
        %3037 = vmatpush1.msra.mxu0 0.0
        %3038 = vmatprep.subr.mxu0 0.0
        %3039 = vmatpush1.msra.mxu0 0.0
        %3040 = vmatprep.subr.mxu0 0.0
        %3041 = vmatpush1.msra.mxu0 0.0
        %3042 = vmatprep.subr.mxu0 0.0
        %3043 = vmatpush1.msra.mxu0 0.0
        %3044 = vmatprep.subr.mxu0 0.0
        %3045 = vmatpush1.msra.mxu0 %v3032
        %3046 = vmatprep.subr.mxu0 0.0
        %3047 = vmatpush1.msra.mxu0 %v3024
        %3048 = vmatprep.subr.mxu0 0.0
        %3049 = vmatpush1.msra.mxu0 %v3023
        %3050 = vmatprep.subr.mxu0 0.0
        %3051 = vmatpush1.msra.mxu0 %v3022
        %3052 = vmatprep.subr.mxu0 0.0
        %3053 = vmatpush1.msra.mxu0 %v3021
        %3054 = vmatprep.subr.mxu0 0.0
        %3055 = vmatpush1.msra.mxu0 %v3020
        %3056 = vmatprep.subr.mxu0 0.0
        %3057 = vmatpush1.msra.mxu0 %v3019
        %3058 = vmatprep.subr.mxu0 0.0
        %3059 = vmatpush1.msra.mxu0 %v3018
        %3060 = vmatprep.subr.mxu0 0.0
        %3061 = vmatpush1.msra.mxu0 %v3017
        %3062 = vmatprep.subr.mxu0 0.0
        %3063 = vmatpush1.msra.mxu0 %v3016
        %3064 = vmatprep.subr.mxu0 0.0
        %3065 = vmatpush1.msra.mxu0 %v3015
        %3066 = vmatprep.subr.mxu0 0.0
        %3067 = vmatpush2.msra.mxu0 0.0
        %3068 = vmatprep.subr.mxu0 0.0
        %3069 = vmatpush2.msra.mxu0 0.0
        %3070 = vmatprep.subr.mxu0 0.0
        %3071 = vmatpush2.msra.mxu0 0.0
        %3072 = vmatprep.subr.mxu0 0.0
        %3073 = vmatpush2.msra.mxu0 0.0
        %3074 = vmatprep.subr.mxu0 0.0
        %3075 = vmatpush2.msra.mxu0 0.0
        %3076 = vmatprep.subr.mxu0 0.0
        %3077 = vmatpush2.msra.mxu0 0.0
        %3078 = vmatprep.subr.mxu0 0.0
        %3079 = vmatpush2.msra.mxu0 0.0
        %3080 = vmatprep.subr.mxu0 0.0
        %3081 = vmatpush2.msra.mxu0 0.0
        %3082 = vmatprep.subr.mxu0 0.0
        %3083 = vmatpush2.msra.mxu0 0.0
        %3084 = vmatprep.subr.mxu0 0.0
        %3085 = vmatpush2.msra.mxu0 0.0
        %3086 = vmatprep.subr.mxu0 0.0
        %3087 = vmatpush2.msra.mxu0 0.0
        %3088 = vmatprep.subr.mxu0 0.0
        %3089 = vmatpush2.msra.mxu0 0.0
        %3090 = vmatprep.subr.mxu0 0.0
        %3091 = vmatpush2.msra.mxu0 0.0
        %3092 = vmatprep.subr.mxu0 0.0
        %3093 = vmatpush2.msra.mxu0 0.0
        %3094 = vmatprep.subr.mxu0 0.0
        %3095 = vmatpush2.msra.mxu0 0.0
        %3096 = vmatprep.subr.mxu0 0.0
        %3097 = vmatpush2.msra.mxu0 0.0
        %3098 = vmatprep.mubr.f32.mxu0 0.0
        %3099 = vmatmul.mubr.f32.gmra.mxu0 %v3029
        %v3100 = vpop.f32.mrf.mxu0
        %v3101 = vadd.f32 %v3026, %v3100
        %v3102 = vpop.f32.mrf.mxu0
        %3103 = vdwg.mxu0
        %3104 = vst [vmem:[%s432] sm:$0x1] %v3101
        %s3105 = sand.u32 %s313, 1
        %s3106 = scalar_lea.sflag [#allocation3], %s3105
        %s3107 = sand.u32 %s313, 1
        %s3108 = scalar_lea.vmem [#allocation2], %s3107
        // Predicated region
        $region73: #{lenet_forward.1} parent=71 // pred_check
          %p3109 = pneg %p323
        $region74: #{lenet_forward.1} parent=71 // pred_check_branch
          %3111 = sbr.rel (%p3109) target = $region76
        $region75: #{lenet_forward.1} parent=71 // pred_region
          %s3113 = ssub.s32 16, 16
          %3114 = vsyncadd %s3106, %s3113
          %s3115 = smul.addr %s27, 16
          %s3116 = scalar_lea.hbm %s13, %s3115
          %s3118 = sshll.u32 %s3108, 4
          %s3119 = int_to_ptr.vmem [resolvable:$true] %s3118
          %3121 = dma.vmem_to_hbm [thread:$0]  %s3119, 16, %s3116, %s3106
        $region76: #{lenet_forward.1} parent=71 // pred_fallthru
          _
      $region72: #{lenet_forward.1} parent=5 // pred_fallthru
        _
      %p3122 = scmp.le.s32.totalorder 2, %s22
      // Predicated region
      $region77: #{lenet_forward.1} parent=5 // pred_check
        %p3123 = pneg %p3122
      $region78: #{lenet_forward.1} parent=5 // pred_check_branch
        %3125 = sbr.rel (%p3123) target = $region80
      $region79: #{lenet_forward.1} parent=5 // pred_region
        %s3126 = ssub.s32 %s22, 2
        // Predicated region
        $region81: #{lenet_forward.1} parent=79 // pred_check
          %p3127 = pneg %p329
        $region82: #{lenet_forward.1} parent=79 // pred_check_branch
          %3129 = sbr.rel (%p3127) target = $region84
        $region83: #{lenet_forward.1} parent=79 // pred_region
          %s3130 = sand.u32 %s314, 1
          %s3131 = scalar_lea.sflag [#allocation3], %s3130
          %s3132 = sand.u32 %s314, 1
          %s3133 = scalar_lea.vmem [#allocation2], %s3132
          %3134 = dma.done %s3131, 16
        $region84: #{lenet_forward.1} parent=79 // pred_fallthru
          _
      $region80: #{lenet_forward.1} parent=5 // pred_fallthru
        _
    $region6: #{lenet_forward.1} parent=1 // loop_footer
      %s26 = sadd.s32 1, %s22
    $region7: #{lenet_forward.1} parent=1 // loop_footer_branch
      %21 = sbr.rel target = $region3
    $region8: #{lenet_forward.1} parent=1 // loop_exit
      _
    %3135 = vsyncpa [#allocation3], 1
    %s3136 = scalar_lea.sflag [#allocation3], 1
    %3137 = vsyncpa %s3136, 1

</llo_original>
